<compile_context>
chip_gen: v6e
topology: v6e:2x2x1
jax: 0.10.0
libtpu: 0.0.40
codegen_flags: <defaults>
</compile_context>

<pallas_src>
import jax
import jax.numpy as jnp
from jax.experimental import pallas as pl
from jax.experimental.pallas import tpu as pltpu


_LANE = 128
_SUBLANE = 8
_TB_CANDIDATES = (2048, 1024, 512, 256, 128, 64, 32, 16)


def ntn_kernel(content_ref, tag_ref, t_ref, w1_ref, w2_ref, b_ref, o_ref):
    c16 = content_ref[...]            # (tb, D) bf16
    g16 = tag_ref[...]                # (tb, D) bf16

    # MXU at native bf16 rate, accumulating in f32.
    y = jnp.dot(c16, t_ref[...], preferred_element_type=jnp.float32)   # (tb, D)

    # Epilogue in f32 (v5e has no bf16 VPU).  Single fused cross-lane reduce:
    #   sum_j [(y + w2)_bj * g_bj + c_bj * w1_j]
    #     = bilinear(content, T, tag) + tag . W[D:] + content . W[:D]
    c = c16.astype(jnp.float32)
    g = g16.astype(jnp.float32)
    red = jnp.sum((y + w2_ref[...]) * g + c * w1_ref[...],
                  axis=1, keepdims=True)                                # (tb, 1)

    o_ref[...] = jnp.maximum(red + b_ref[...], 0.0)                     # ReLU


def _round_up(x, m):
    return ((x + m - 1) // m) * m


def _vmem_budget_bytes():
    """Per-generation VMEM budget with headroom: ~96 MiB on v5e/v6e (128 MiB
    physical), ~48 MiB on v7x (64 MiB physical); conservative fallback when
    the hardware query is unavailable."""
    try:
        cap = int(pltpu.get_tpu_info().vmem_capacity_bytes)
    except Exception:  # older/newer jax without the query, or odd tracing ctx
        cap = 64 * 1024 * 1024
    return (3 * cap) // 4


def _estimate_vmem_bytes(tb, D):
    """Worst-case VMEM footprint of one grid step (assumes default
    double-buffering everywhere, i.e. the Buffered(1) fallback path)."""
    streamed = 2 * (2 * tb * D * 2)            # content + tag bf16 tiles, 2 buffers
    resident = 2 * (D * D * 2                  # T (bf16)
                    + 2 * _SUBLANE * D * 4     # w1, w2 rows (f32, sublane-padded)
                    + _SUBLANE * _LANE * 4)    # bias tile
    out_bufs = 2 * tb * _LANE * 4              # (tb, 1) f32 output, lane-padded
    temps = 3 * tb * D * 4                     # y (f32) + epilogue temporaries
    return streamed + resident + out_bufs + temps


def _pick_batch_tile(B, D, budget):
    """Largest 16-multiple batch tile that (a) leaves >= 2 grid steps when
    B > 16 so both v7x TensorCores get work, and (b) fits the VMEM budget
    with headroom."""
    cap = 16 if B <= 16 else _round_up(-(-B // 2), 16)
    for cand in _TB_CANDIDATES:
        if cand <= cap and int(1.4 * _estimate_vmem_bytes(cand, D)) <= budget:
            return cand
    return 16


def neural_tensor_net_forward(content, tag, T, W, b, *, tb=None):
    """content, tag: (B, D); T: (D, D); W: (2D, 1); b: (1,).  Returns (B,) f32."""
    B, D = content.shape
    assert tag.shape == (B, D)
    assert T.shape == (D, D)
    assert W.shape == (2 * D, 1)
    assert D % _LANE == 0, "feature dim must be lane-aligned (module fixes D=768)"

    f32, bf16 = jnp.float32, jnp.bfloat16

    budget = _vmem_budget_bytes()
    if tb is None:
        tb = _pick_batch_tile(B, D, budget)
    assert tb % 16 == 0, "bf16 batch tile must be a multiple of 16"

    num_tiles = -(-B // tb)
    b_pad = num_tiles * tb

    # Stream the activations as bf16 (half HBM traffic / tile VMEM); pad the
    # batch up to a whole number of tiles instead of hunting for divisors.
    content16 = content.astype(bf16)
    tag16 = tag.astype(bf16)
    if b_pad != B:
        pad = ((0, b_pad - B), (0, 0))
        content16 = jnp.pad(content16, pad)
        tag16 = jnp.pad(tag16, pad)

    t16 = T.astype(bf16)                        # resident bf16 MXU operand
    w1 = W[:D, 0].reshape(1, D).astype(f32)     # content-half of the linear map
    w2 = W[D:, 0].reshape(1, D).astype(f32)     # tag-half (folded into the reduce)
    b2d = b.reshape(1, 1).astype(f32)

    vmem_limit = max(int(1.4 * _estimate_vmem_bytes(tb, D)), 32 * 1024 * 1024)

    def run(single_buffer_consts):
        const_mode = pl.Buffered(1) if single_buffer_consts else None
        return pl.pallas_call(
            ntn_kernel,
            out_shape=jax.ShapeDtypeStruct((b_pad, 1), f32),
            grid_spec=pltpu.PrefetchScalarGridSpec(
                num_scalar_prefetch=0,
                grid=(num_tiles,),
                in_specs=[
                    pl.BlockSpec((tb, D), lambda i: (i, 0)),    # content (streamed)
                    pl.BlockSpec((tb, D), lambda i: (i, 0)),    # tag     (streamed)
                    pl.BlockSpec((D, D), lambda i: (0, 0),
                                 pipeline_mode=const_mode),     # T       (resident)
                    pl.BlockSpec((1, D), lambda i: (0, 0),
                                 pipeline_mode=const_mode),     # W[:D]   (resident)
                    pl.BlockSpec((1, D), lambda i: (0, 0),
                                 pipeline_mode=const_mode),     # W[D:]   (resident)
                    pl.BlockSpec((1, 1), lambda i: (0, 0),
                                 pipeline_mode=const_mode),     # bias    (resident)
                ],
                out_specs=pl.BlockSpec((tb, 1), lambda i: (i, 0)),
            ),
            compiler_params=pltpu.CompilerParams(
                dimension_semantics=("parallel",),
                vmem_limit_bytes=vmem_limit,
            ),
        )(content16, tag16, t16, w1, w2, b2d)

    try:
        out = run(True)       # reclaim the unused second buffer of the constants
    except Exception:         # pipeline_mode=Buffered(1) unsupported -> default
        out = run(False)

    # torch's .squeeze(): (B, 1) -> (B,).  (For B == 1 torch would return a
    # 0-d scalar; we keep a length-1 vector.)
    return out[:B].reshape(B)


def _reference(content, tag, T, W, b):
    x1 = jnp.sum((content @ T) * tag, axis=1, keepdims=True)
    x2 = jnp.concatenate([content, tag], axis=1) @ W
    return jax.nn.relu(x1 + x2 + b.reshape(1, 1)).reshape(-1)


if __name__ == "__main__":
    key = jax.random.PRNGKey(0)
    B, D = 8, 768     # the module fixes the feature dim at 768

    kc, kt, kT, kW = jax.random.split(key, 4)
    content = jax.random.normal(kc, (B, D), dtype=jnp.float32)
    tag = jax.random.normal(kt, (B, D), dtype=jnp.float32)

    # Deterministic parameter init mirroring the module's __init__:
    #   T = xavier_normal_((768, 768)), W = xavier_normal_((1536, 1)), b = zeros(1)
    t_std = (2.0 / (D + D)) ** 0.5
    w_std = (2.0 / (2 * D + 1)) ** 0.5
    T = t_std * jax.random.normal(kT, (D, D), dtype=jnp.float32)
    W = w_std * jax.random.normal(kW, (2 * D, 1), dtype=jnp.float32)
    b = jnp.zeros((1,), dtype=jnp.float32)

    out = neural_tensor_net_forward(content, tag, T, W, b)
    out = jax.block_until_ready(out)
    assert out.shape == (B,)

    # Tight check against a reference with the SAME bf16 input quantization
    # (isolates MXU f32-accumulation differences only).
    q = lambda x: x.astype(jnp.bfloat16).astype(jnp.float32)
    ref_bf16 = _reference(q(content), q(tag), q(T), W, b)
    assert jnp.allclose(out, ref_bf16, rtol=1e-2, atol=5e-2), (out, ref_bf16)

    # Looser sanity bound against the full-f32 torch-equivalent reference:
    # bf16 input streaming is a deliberate precision/perf trade (outputs are
    # O(30) in magnitude; quantization noise over 768-term dots is O(0.1-0.3)).
    ref_f32 = _reference(content, tag, T, W, b)
    assert jnp.allclose(out, ref_f32, rtol=3e-2, atol=0.5), (out, ref_f32)

    print("KERNEL_OK")
</pallas_src>

<mosaic_0001>
module attributes {stable_mosaic.version = 11 : i64} {
  func.func @ntn_kernel(%arg0: i32, %arg1: memref<16x768xbf16, #tpu.memory_space<vmem>>, %arg2: memref<16x768xbf16, #tpu.memory_space<vmem>>, %arg3: memref<768x768xbf16, #tpu.memory_space<vmem>>, %arg4: memref<1x768xf32, #tpu.memory_space<vmem>>, %arg5: memref<1x768xf32, #tpu.memory_space<vmem>>, %arg6: memref<1x1xf32, #tpu.memory_space<vmem>>, %arg7: memref<16x1xf32, #tpu.memory_space<vmem>>) attributes {dimension_semantics = [#tpu.dimension_semantics<parallel>], iteration_bounds = array<i64: 1>, scalar_prefetch = 0 : i64, scratch_operands = 0 : i64, tpu.core_type = #tpu.core_type<tc>, window_params = [{transform_indices = @transform_0, window_bounds = array<i64: 16, 768>}, {transform_indices = @transform_1, window_bounds = array<i64: 16, 768>}, {pipeline_mode = #tpu.pipeline_mode<synchronous>, transform_indices = @transform_2, window_bounds = array<i64: 768, 768>}, {pipeline_mode = #tpu.pipeline_mode<synchronous>, transform_indices = @transform_3, window_bounds = array<i64: 1, 768>}, {pipeline_mode = #tpu.pipeline_mode<synchronous>, transform_indices = @transform_4, window_bounds = array<i64: 1, 768>}, {pipeline_mode = #tpu.pipeline_mode<synchronous>, transform_indices = @transform_5, window_bounds = array<i64: 1, 1>}, {transform_indices = @transform_6, window_bounds = array<i64: 16, 1>}]} {
    %c0 = arith.constant 0 : index
    %c0_0 = arith.constant 0 : index
    %0 = vector.load %arg1[%c0, %c0_0] : memref<16x768xbf16, #tpu.memory_space<vmem>>, vector<16x768xbf16>
    %c0_1 = arith.constant 0 : index
    %c0_2 = arith.constant 0 : index
    %1 = vector.load %arg2[%c0_1, %c0_2] : memref<16x768xbf16, #tpu.memory_space<vmem>>, vector<16x768xbf16>
    %c0_3 = arith.constant 0 : index
    %c0_4 = arith.constant 0 : index
    %2 = vector.load %arg3[%c0_3, %c0_4] : memref<768x768xbf16, #tpu.memory_space<vmem>>, vector<768x768xbf16>
    %cst = arith.constant dense<0.000000e+00> : vector<16x768xf32>
    %3 = tpu.matmul %0, %2, %cst {dimension_numbers = #tpu.dot_dimension_numbers<[1], [0], [0], [1], [0, 0, 1, 1], [], []>} : vector<16x768xbf16>, vector<768x768xbf16>, vector<16x768xf32> -> vector<16x768xf32>
    %4 = arith.extf %0 : vector<16x768xbf16> to vector<16x768xf32>
    %5 = arith.extf %1 : vector<16x768xbf16> to vector<16x768xf32>
    %c0_5 = arith.constant 0 : index
    %c0_6 = arith.constant 0 : index
    %6 = vector.load %arg5[%c0_5, %c0_6] : memref<1x768xf32, #tpu.memory_space<vmem>>, vector<1x768xf32>
    %7 = vector.broadcast %6 : vector<1x768xf32> to vector<16x768xf32>
    %8 = arith.addf %3, %7 : vector<16x768xf32>
    %9 = arith.mulf %8, %5 : vector<16x768xf32>
    %c0_7 = arith.constant 0 : index
    %c0_8 = arith.constant 0 : index
    %10 = vector.load %arg4[%c0_7, %c0_8] : memref<1x768xf32, #tpu.memory_space<vmem>>, vector<1x768xf32>
    %11 = vector.broadcast %10 : vector<1x768xf32> to vector<16x768xf32>
    %12 = arith.mulf %4, %11 : vector<16x768xf32>
    %13 = arith.addf %9, %12 : vector<16x768xf32>
    %cst_9 = arith.constant dense<0.000000e+00> : vector<16xf32>
    %14 = vector.multi_reduction <add>, %13, %cst_9 [1] : vector<16x768xf32> to vector<16xf32>
    %15 = vector.shape_cast %14 : vector<16xf32> to vector<16x1xf32>
    %c0_10 = arith.constant 0 : index
    %c0_11 = arith.constant 0 : index
    %16 = vector.load %arg6[%c0_10, %c0_11] : memref<1x1xf32, #tpu.memory_space<vmem>>, vector<1x1xf32>
    %17 = vector.broadcast %16 : vector<1x1xf32> to vector<16x1xf32>
    %18 = arith.addf %15, %17 : vector<16x1xf32>
    %cst_12 = arith.constant 0.000000e+00 : f32
    %19 = vector.broadcast %cst_12 : f32 to vector<16x1xf32>
    %20 = arith.maximumf %18, %19 : vector<16x1xf32>
    %c0_13 = arith.constant 0 : index
    %c0_14 = arith.constant 0 : index
    %21 = vector.load %arg7[%c0_13, %c0_14] : memref<16x1xf32, #tpu.memory_space<vmem>>, vector<16x1xf32>
    tpu.vector_store %arg7[%c0_13, %c0_14], %20 {strides = array<i32>} : memref<16x1xf32, #tpu.memory_space<vmem>>, vector<16x1xf32>,
    return
  }
  func.func @transform_0(%arg0: i32) -> (i32, i32) {
    %c0_i32 = arith.constant 0 : i32
    %c0_i32_0 = arith.constant 0 : i32
    return %arg0, %c0_i32 : i32, i32
  }
  func.func @transform_1(%arg0: i32) -> (i32, i32) {
    %c0_i32 = arith.constant 0 : i32
    %c0_i32_0 = arith.constant 0 : i32
    return %arg0, %c0_i32 : i32, i32
  }
  func.func @transform_2(%arg0: i32) -> (i32, i32) {
    %c0_i32 = arith.constant 0 : i32
    %c0_i32_0 = arith.constant 0 : i32
    %c0_i32_1 = arith.constant 0 : i32
    return %c0_i32, %c0_i32_0 : i32, i32
  }
  func.func @transform_3(%arg0: i32) -> (i32, i32) {
    %c0_i32 = arith.constant 0 : i32
    %c0_i32_0 = arith.constant 0 : i32
    %c0_i32_1 = arith.constant 0 : i32
    return %c0_i32, %c0_i32_0 : i32, i32
  }
  func.func @transform_4(%arg0: i32) -> (i32, i32) {
    %c0_i32 = arith.constant 0 : i32
    %c0_i32_0 = arith.constant 0 : i32
    %c0_i32_1 = arith.constant 0 : i32
    return %c0_i32, %c0_i32_0 : i32, i32
  }
  func.func @transform_5(%arg0: i32) -> (i32, i32) {
    %c0_i32 = arith.constant 0 : i32
    %c0_i32_0 = arith.constant 0 : i32
    %c0_i32_1 = arith.constant 0 : i32
    return %c0_i32, %c0_i32_0 : i32, i32
  }
  func.func @transform_6(%arg0: i32) -> (i32, i32) {
    %c0_i32 = arith.constant 0 : i32
    %c0_i32_0 = arith.constant 0 : i32
    return %arg0, %c0_i32 : i32, i32
  }
}

module attributes {stable_mosaic.version = 11 : i64} {
  func.func @ntn_kernel(%arg0: i32, %arg1: memref<16x768xbf16, #tpu.memory_space<vmem>>, %arg2: memref<16x768xbf16, #tpu.memory_space<vmem>>, %arg3: memref<768x768xbf16, #tpu.memory_space<vmem>>, %arg4: memref<1x768xf32, #tpu.memory_space<vmem>>, %arg5: memref<1x768xf32, #tpu.memory_space<vmem>>, %arg6: memref<1x1xf32, #tpu.memory_space<vmem>>, %arg7: memref<16x1xf32, #tpu.memory_space<vmem>>) attributes {dimension_semantics = [#tpu.dimension_semantics<parallel>], iteration_bounds = array<i64: 1>, scalar_prefetch = 0 : i64, scratch_operands = 0 : i64, tpu.core_type = #tpu.core_type<tc>, window_params = [{transform_indices = @transform_0, window_bounds = array<i64: 16, 768>}, {transform_indices = @transform_1, window_bounds = array<i64: 16, 768>}, {pipeline_mode = #tpu.pipeline_mode<synchronous>, transform_indices = @transform_2, window_bounds = array<i64: 768, 768>}, {pipeline_mode = #tpu.pipeline_mode<synchronous>, transform_indices = @transform_3, window_bounds = array<i64: 1, 768>}, {pipeline_mode = #tpu.pipeline_mode<synchronous>, transform_indices = @transform_4, window_bounds = array<i64: 1, 768>}, {pipeline_mode = #tpu.pipeline_mode<synchronous>, transform_indices = @transform_5, window_bounds = array<i64: 1, 1>}, {transform_indices = @transform_6, window_bounds = array<i64: 16, 1>}]} {
    %c0 = arith.constant 0 : index
    %c0_0 = arith.constant 0 : index
    %0 = vector.load %arg1[%c0, %c0_0] : memref<16x768xbf16, #tpu.memory_space<vmem>>, vector<16x768xbf16>
    %c0_1 = arith.constant 0 : index
    %c0_2 = arith.constant 0 : index
    %1 = vector.load %arg2[%c0_1, %c0_2] : memref<16x768xbf16, #tpu.memory_space<vmem>>, vector<16x768xbf16>
    %c0_3 = arith.constant 0 : index
    %c0_4 = arith.constant 0 : index
    %2 = vector.load %arg3[%c0_3, %c0_4] : memref<768x768xbf16, #tpu.memory_space<vmem>>, vector<768x768xbf16>
    %cst = arith.constant dense<0.000000e+00> : vector<16x768xf32>
    %3 = tpu.matmul %0, %2, %cst {dimension_numbers = #tpu.dot_dimension_numbers<[1], [0], [0], [1], [0, 0, 1, 1], [], []>} : vector<16x768xbf16>, vector<768x768xbf16>, vector<16x768xf32> -> vector<16x768xf32>
    %4 = arith.extf %0 : vector<16x768xbf16> to vector<16x768xf32>
    %5 = arith.extf %1 : vector<16x768xbf16> to vector<16x768xf32>
    %c0_5 = arith.constant 0 : index
    %c0_6 = arith.constant 0 : index
    %6 = vector.load %arg5[%c0_5, %c0_6] : memref<1x768xf32, #tpu.memory_space<vmem>>, vector<1x768xf32>
    %7 = vector.broadcast %6 : vector<1x768xf32> to vector<16x768xf32>
    %8 = arith.addf %3, %7 : vector<16x768xf32>
    %9 = arith.mulf %8, %5 : vector<16x768xf32>
    %c0_7 = arith.constant 0 : index
    %c0_8 = arith.constant 0 : index
    %10 = vector.load %arg4[%c0_7, %c0_8] : memref<1x768xf32, #tpu.memory_space<vmem>>, vector<1x768xf32>
    %11 = vector.broadcast %10 : vector<1x768xf32> to vector<16x768xf32>
    %12 = arith.mulf %4, %11 : vector<16x768xf32>
    %13 = arith.addf %9, %12 : vector<16x768xf32>
    %cst_9 = arith.constant dense<0.000000e+00> : vector<16xf32>
    %14 = vector.multi_reduction <add>, %13, %cst_9 [1] : vector<16x768xf32> to vector<16xf32>
    %15 = vector.shape_cast %14 : vector<16xf32> to vector<16x1xf32>
    %c0_10 = arith.constant 0 : index
    %c0_11 = arith.constant 0 : index
    %16 = vector.load %arg6[%c0_10, %c0_11] : memref<1x1xf32, #tpu.memory_space<vmem>>, vector<1x1xf32>
    %17 = vector.broadcast %16 : vector<1x1xf32> to vector<16x1xf32>
    %18 = arith.addf %15, %17 : vector<16x1xf32>
    %cst_12 = arith.constant 0.000000e+00 : f32
    %19 = vector.broadcast %cst_12 : f32 to vector<16x1xf32>
    %20 = arith.maximumf %18, %19 : vector<16x1xf32>
    %c0_13 = arith.constant 0 : index
    %c0_14 = arith.constant 0 : index
    %21 = vector.load %arg7[%c0_13, %c0_14] : memref<16x1xf32, #tpu.memory_space<vmem>>, vector<16x1xf32>
    tpu.vector_store %arg7[%c0_13, %c0_14], %20 {strides = array<i32>} : memref<16x1xf32, #tpu.memory_space<vmem>>, vector<16x1xf32>,
    return
  }
  func.func @transform_0(%arg0: i32) -> (i32, i32) {
    %c0_i32 = arith.constant 0 : i32
    %c0_i32_0 = arith.constant 0 : i32
    return %arg0, %c0_i32 : i32, i32
  }
  func.func @transform_1(%arg0: i32) -> (i32, i32) {
    %c0_i32 = arith.constant 0 : i32
    %c0_i32_0 = arith.constant 0 : i32
    return %arg0, %c0_i32 : i32, i32
  }
  func.func @transform_2(%arg0: i32) -> (i32, i32) {
    %c0_i32 = arith.constant 0 : i32
    %c0_i32_0 = arith.constant 0 : i32
    %c0_i32_1 = arith.constant 0 : i32
    return %c0_i32, %c0_i32_0 : i32, i32
  }
  func.func @transform_3(%arg0: i32) -> (i32, i32) {
    %c0_i32 = arith.constant 0 : i32
    %c0_i32_0 = arith.constant 0 : i32
    %c0_i32_1 = arith.constant 0 : i32
    return %c0_i32, %c0_i32_0 : i32, i32
  }
  func.func @transform_4(%arg0: i32) -> (i32, i32) {
    %c0_i32 = arith.constant 0 : i32
    %c0_i32_0 = arith.constant 0 : i32
    %c0_i32_1 = arith.constant 0 : i32
    return %c0_i32, %c0_i32_0 : i32, i32
  }
  func.func @transform_5(%arg0: i32) -> (i32, i32) {
    %c0_i32 = arith.constant 0 : i32
    %c0_i32_0 = arith.constant 0 : i32
    %c0_i32_1 = arith.constant 0 : i32
    return %c0_i32, %c0_i32_0 : i32, i32
  }
  func.func @transform_6(%arg0: i32) -> (i32, i32) {
    %c0_i32 = arith.constant 0 : i32
    %c0_i32_0 = arith.constant 0 : i32
    return %arg0, %c0_i32 : i32, i32
  }
}

</mosaic_0001>

<llo_original>
// kernel: tpu_custom_call.1
$region0: #{tpu_custom_call.1}
  #allocation0 [shape = 'u32[]', space=smem, size = 0x4, offset = 0x4, fixed_abs, tag = 'smem constant byte address 0x4 - core index']
  #allocation1 [shape = 'u32[144,128]{1,0:T(1,128)}', space=vmem, size = 0x12000, scoped, tag = 'internal scratch']
  #allocation2 [shape = 'f32[1,1]{1,0:T(1,128)S(1)}', space=vmem, size = 0x200, scoped, tag = 'scoped memory for tpu_custom_call.1']
  %s0 = inlined_call_operand.hbm [shape: bf16[16,768], index: 0, kind: input, shape index: {}]
  %s1 = inlined_call_operand.hbm [shape: bf16[16,768], index: 1, kind: input, shape index: {}]
  %s2 = inlined_call_operand.hbm [shape: bf16[768,768], index: 2, kind: input, shape index: {}]
  %s3 = inlined_call_operand.hbm [shape: f32[1,768], index: 3, kind: input, shape index: {}]
  %s4 = inlined_call_operand.hbm [shape: f32[1,768], index: 4, kind: input, shape index: {}]
  %s5 = inlined_call_operand.<no memory space> [shape: f32[1,1], index: 5, kind: input, shape index: {}]
  %s6 = inlined_call_operand.vmem [shape: f32[16,1], index: 6, kind: output, shape index: {}]
  %s7 = sld [smem:[#allocation0]]
  $region54: #{tpu_custom_call.1} parent=0
    _
  %s9 = ssub.s32 1, %s7
  %s10 = scalar_select 0, %s9, %s7
  %v11 = vstv %s5
  %12 = vst [vmem:[#allocation2] sm:$0x1] %v11
  $region1: #{tpu_custom_call.1} parent=0
    #allocation3 [shape = 'u8[24576]{0}', space=vmem, size = 0x6000, scoped, tag = 'input window, operand 0, single buffered']
    #allocation4 [shape = 's32[1]{0}', space=sflag, size = 0x4, scoped, tag = 'scoped memory for tpu_custom_call.1']
    #allocation5 [shape = 'u8[24576]{0}', space=vmem, size = 0x6000, scoped, tag = 'input window, operand 1, single buffered']
    #allocation6 [shape = 's32[1]{0}', space=sflag, size = 0x4, scoped, tag = 'scoped memory for tpu_custom_call.1']
    #allocation7 [shape = 'u8[1179648]{0}', space=vmem, size = 0x120000, scoped, tag = 'input window, operand 2, single buffered']
    #allocation8 [shape = 'u8[3072]{0}', space=vmem, size = 0xc00, scoped, tag = 'input window, operand 3, single buffered']
    #allocation9 [shape = 's32[1]{0}', space=sflag, size = 0x4, scoped, tag = 'scoped memory for tpu_custom_call.1']
    #allocation10 [shape = 'u8[3072]{0}', space=vmem, size = 0xc00, scoped, tag = 'input window, operand 4, single buffered']
    %13 = vsyncpa [#allocation4], 0
    %14 = vsyncpa [#allocation6], 0
    %15 = vsyncpa [#allocation9], 0
    // Predicated region
    $region2: #{tpu_custom_call.1} parent=1 // pred_check
      _
    $region3: #{tpu_custom_call.1} parent=1 // pred_check_branch
      %17 = sbr.rel (0) target = $region5
    $region4: #{tpu_custom_call.1} parent=1 // pred_region
      %s19 = ssub.s32 768, 768
      %20 = vsyncadd [#allocation4], %s19
      %s21 = sshll.u32 [#allocation3], 4
      %s22 = int_to_ptr.vmem [resolvable:$true] %s21
      %27 = dma.hbm_to_vmem [thread:$0]  %s0, 768, %s22, [#allocation4], 384, 384, 24
    $region5: #{tpu_custom_call.1} parent=1 // pred_fallthru
      _
    // Predicated region
    $region6: #{tpu_custom_call.1} parent=1 // pred_check
      _
    $region7: #{tpu_custom_call.1} parent=1 // pred_check_branch
      %29 = sbr.rel (0) target = $region9
    $region8: #{tpu_custom_call.1} parent=1 // pred_region
      %s31 = ssub.s32 768, 768
      %32 = vsyncadd [#allocation6], %s31
      %s33 = sshll.u32 [#allocation5], 4
      %s34 = int_to_ptr.vmem [resolvable:$true] %s33
      %39 = dma.hbm_to_vmem [thread:$0]  %s1, 768, %s34, [#allocation6], 384, 384, 24
    $region9: #{tpu_custom_call.1} parent=1 // pred_fallthru
      _
    // Predicated region
    $region10: #{tpu_custom_call.1} parent=1 // pred_check
      _
    $region11: #{tpu_custom_call.1} parent=1 // pred_check_branch
      %41 = sbr.rel (0) target = $region13
    $region12: #{tpu_custom_call.1} parent=1 // pred_region
      %s43 = ssub.s32 36864, 36864
      %44 = vsyncadd [#allocation6], %s43
      %s45 = sshll.u32 [#allocation7], 4
      %s46 = int_to_ptr.vmem [resolvable:$true] %s45
      %51 = dma.hbm_to_vmem [thread:$0]  %s2, 36864, %s46, [#allocation6], 384, 384, 24
    $region13: #{tpu_custom_call.1} parent=1 // pred_fallthru
      _
    // Predicated region
    $region14: #{tpu_custom_call.1} parent=1 // pred_check
      _
    $region15: #{tpu_custom_call.1} parent=1 // pred_check_branch
      %53 = sbr.rel (0) target = $region17
    $region16: #{tpu_custom_call.1} parent=1 // pred_region
      %s55 = ssub.s32 96, 96
      %56 = vsyncadd [#allocation9], %s55
      %s58 = sshll.u32 [#allocation8], 4
      %s59 = int_to_ptr.vmem [resolvable:$true] %s58
      %61 = dma.hbm_to_vmem [thread:$0]  %s3, 96, %s59, [#allocation9]
    $region17: #{tpu_custom_call.1} parent=1 // pred_fallthru
      _
    // Predicated region
    $region18: #{tpu_custom_call.1} parent=1 // pred_check
      _
    $region19: #{tpu_custom_call.1} parent=1 // pred_check_branch
      %63 = sbr.rel (0) target = $region21
    $region20: #{tpu_custom_call.1} parent=1 // pred_region
      %s65 = ssub.s32 96, 96
      %66 = vsyncadd [#allocation9], %s65
      %s68 = sshll.u32 [#allocation10], 4
      %s69 = int_to_ptr.vmem [resolvable:$true] %s68
      %71 = dma.hbm_to_vmem [thread:$0]  %s4, 96, %s69, [#allocation9]
    $region21: #{tpu_custom_call.1} parent=1 // pred_fallthru
      _
    // Predicated region
    $region22: #{tpu_custom_call.1} parent=1 // pred_check
      _
    $region23: #{tpu_custom_call.1} parent=1 // pred_check_branch
      %73 = sbr.rel (0) target = $region25
    $region24: #{tpu_custom_call.1} parent=1 // pred_region
      _
    $region25: #{tpu_custom_call.1} parent=1 // pred_fallthru
      _
    // Predicated region
    $region26: #{tpu_custom_call.1} parent=1 // pred_check
      _
    $region27: #{tpu_custom_call.1} parent=1 // pred_check_branch
      %75 = sbr.rel (0) target = $region29
    $region28: #{tpu_custom_call.1} parent=1 // pred_region
      %76 = dma.done [#allocation4], 768
    $region29: #{tpu_custom_call.1} parent=1 // pred_fallthru
      _
    // Predicated region
    $region30: #{tpu_custom_call.1} parent=1 // pred_check
      _
    $region31: #{tpu_custom_call.1} parent=1 // pred_check_branch
      %78 = sbr.rel (0) target = $region33
    $region32: #{tpu_custom_call.1} parent=1 // pred_region
      %79 = dma.done [#allocation6], 768
    $region33: #{tpu_custom_call.1} parent=1 // pred_fallthru
      _
    // Predicated region
    $region34: #{tpu_custom_call.1} parent=1 // pred_check
      _
    $region35: #{tpu_custom_call.1} parent=1 // pred_check_branch
      %81 = sbr.rel (0) target = $region37
    $region36: #{tpu_custom_call.1} parent=1 // pred_region
      %82 = dma.done [#allocation6], 36864
    $region37: #{tpu_custom_call.1} parent=1 // pred_fallthru
      _
    // Predicated region
    $region38: #{tpu_custom_call.1} parent=1 // pred_check
      _
    $region39: #{tpu_custom_call.1} parent=1 // pred_check_branch
      %84 = sbr.rel (0) target = $region41
    $region40: #{tpu_custom_call.1} parent=1 // pred_region
      %85 = dma.done [#allocation9], 96
    $region41: #{tpu_custom_call.1} parent=1 // pred_fallthru
      _
    // Predicated region
    $region42: #{tpu_custom_call.1} parent=1 // pred_check
      _
    $region43: #{tpu_custom_call.1} parent=1 // pred_check_branch
      %87 = sbr.rel (0) target = $region45
    $region44: #{tpu_custom_call.1} parent=1 // pred_region
      %88 = dma.done [#allocation9], 96
    $region45: #{tpu_custom_call.1} parent=1 // pred_fallthru
      _
    %v89 = vld [vmem:[#allocation3] sm:$0xff]
    %v90 = vld [vmem:[#allocation3 + $0x8] sm:$0xff]
    %v91 = vld [vmem:[#allocation3 + $0x10] sm:$0xff]
    %v92 = vld [vmem:[#allocation3 + $0x18] sm:$0xff]
    %v93 = vld [vmem:[#allocation3 + $0x20] sm:$0xff]
    %v94 = vld [vmem:[#allocation3 + $0x28] sm:$0xff]
    %v95 = vld [vmem:[#allocation5] sm:$0xff]
    %v96 = vld [vmem:[#allocation5 + $0x8] sm:$0xff]
    %v97 = vld [vmem:[#allocation5 + $0x10] sm:$0xff]
    %v98 = vld [vmem:[#allocation5 + $0x18] sm:$0xff]
    %v99 = vld [vmem:[#allocation5 + $0x20] sm:$0xff]
    %v100 = vld [vmem:[#allocation5 + $0x28] sm:$0xff]
    %v101 = vld [vmem:[#allocation7] sm:$0xff]
    %v102 = vld [vmem:[#allocation7 + $0x8] sm:$0xff]
    %v103 = vld [vmem:[#allocation7 + $0x10] sm:$0xff]
    %v104 = vld [vmem:[#allocation7 + $0x18] sm:$0xff]
    %v105 = vld [vmem:[#allocation7 + $0x20] sm:$0xff]
    %v106 = vld [vmem:[#allocation7 + $0x28] sm:$0xff]
    %v107 = vld [vmem:[#allocation7 + $0x30] sm:$0xff]
    %v108 = vld [vmem:[#allocation7 + $0x38] sm:$0xff]
    %v109 = vld [vmem:[#allocation7 + $0x40] sm:$0xff]
    %v110 = vld [vmem:[#allocation7 + $0x48] sm:$0xff]
    %v111 = vld [vmem:[#allocation7 + $0x50] sm:$0xff]
    %v112 = vld [vmem:[#allocation7 + $0x58] sm:$0xff]
    %v113 = vld [vmem:[#allocation7 + $0x60] sm:$0xff]
    %v114 = vld [vmem:[#allocation7 + $0x68] sm:$0xff]
    %v115 = vld [vmem:[#allocation7 + $0x70] sm:$0xff]
    %v116 = vld [vmem:[#allocation7 + $0x78] sm:$0xff]
    %v117 = vld [vmem:[#allocation7 + $0x80] sm:$0xff]
    %v118 = vld [vmem:[#allocation7 + $0x88] sm:$0xff]
    %v119 = vld [vmem:[#allocation7 + $0x90] sm:$0xff]
    %v120 = vld [vmem:[#allocation7 + $0x98] sm:$0xff]
    %v121 = vld [vmem:[#allocation7 + $0xa0] sm:$0xff]
    %v122 = vld [vmem:[#allocation7 + $0xa8] sm:$0xff]
    %v123 = vld [vmem:[#allocation7 + $0xb0] sm:$0xff]
    %v124 = vld [vmem:[#allocation7 + $0xb8] sm:$0xff]
    %v125 = vld [vmem:[#allocation7 + $0xc0] sm:$0xff]
    %v126 = vld [vmem:[#allocation7 + $0xc8] sm:$0xff]
    %v127 = vld [vmem:[#allocation7 + $0xd0] sm:$0xff]
    %v128 = vld [vmem:[#allocation7 + $0xd8] sm:$0xff]
    %v129 = vld [vmem:[#allocation7 + $0xe0] sm:$0xff]
    %v130 = vld [vmem:[#allocation7 + $0xe8] sm:$0xff]
    %v131 = vld [vmem:[#allocation7 + $0xf0] sm:$0xff]
    %v132 = vld [vmem:[#allocation7 + $0xf8] sm:$0xff]
    %v133 = vld [vmem:[#allocation7 + $0x100] sm:$0xff]
    %v134 = vld [vmem:[#allocation7 + $0x108] sm:$0xff]
    %v135 = vld [vmem:[#allocation7 + $0x110] sm:$0xff]
    %v136 = vld [vmem:[#allocation7 + $0x118] sm:$0xff]
    %v137 = vld [vmem:[#allocation7 + $0x120] sm:$0xff]
    %v138 = vld [vmem:[#allocation7 + $0x128] sm:$0xff]
    %v139 = vld [vmem:[#allocation7 + $0x130] sm:$0xff]
    %v140 = vld [vmem:[#allocation7 + $0x138] sm:$0xff]
    %v141 = vld [vmem:[#allocation7 + $0x140] sm:$0xff]
    %v142 = vld [vmem:[#allocation7 + $0x148] sm:$0xff]
    %v143 = vld [vmem:[#allocation7 + $0x150] sm:$0xff]
    %v144 = vld [vmem:[#allocation7 + $0x158] sm:$0xff]
    %v145 = vld [vmem:[#allocation7 + $0x160] sm:$0xff]
    %v146 = vld [vmem:[#allocation7 + $0x168] sm:$0xff]
    %v147 = vld [vmem:[#allocation7 + $0x170] sm:$0xff]
    %v148 = vld [vmem:[#allocation7 + $0x178] sm:$0xff]
    %v149 = vld [vmem:[#allocation7 + $0x180] sm:$0xff]
    %v150 = vld [vmem:[#allocation7 + $0x188] sm:$0xff]
    %v151 = vld [vmem:[#allocation7 + $0x190] sm:$0xff]
    %v152 = vld [vmem:[#allocation7 + $0x198] sm:$0xff]
    %v153 = vld [vmem:[#allocation7 + $0x1a0] sm:$0xff]
    %v154 = vld [vmem:[#allocation7 + $0x1a8] sm:$0xff]
    %v155 = vld [vmem:[#allocation7 + $0x1b0] sm:$0xff]
    %v156 = vld [vmem:[#allocation7 + $0x1b8] sm:$0xff]
    %v157 = vld [vmem:[#allocation7 + $0x1c0] sm:$0xff]
    %v158 = vld [vmem:[#allocation7 + $0x1c8] sm:$0xff]
    %v159 = vld [vmem:[#allocation7 + $0x1d0] sm:$0xff]
    %v160 = vld [vmem:[#allocation7 + $0x1d8] sm:$0xff]
    %v161 = vld [vmem:[#allocation7 + $0x1e0] sm:$0xff]
    %v162 = vld [vmem:[#allocation7 + $0x1e8] sm:$0xff]
    %v163 = vld [vmem:[#allocation7 + $0x1f0] sm:$0xff]
    %v164 = vld [vmem:[#allocation7 + $0x1f8] sm:$0xff]
    %v165 = vld [vmem:[#allocation7 + $0x200] sm:$0xff]
    %v166 = vld [vmem:[#allocation7 + $0x208] sm:$0xff]
    %v167 = vld [vmem:[#allocation7 + $0x210] sm:$0xff]
    %v168 = vld [vmem:[#allocation7 + $0x218] sm:$0xff]
    %v169 = vld [vmem:[#allocation7 + $0x220] sm:$0xff]
    %v170 = vld [vmem:[#allocation7 + $0x228] sm:$0xff]
    %v171 = vld [vmem:[#allocation7 + $0x230] sm:$0xff]
    %v172 = vld [vmem:[#allocation7 + $0x238] sm:$0xff]
    %v173 = vld [vmem:[#allocation7 + $0x240] sm:$0xff]
    %v174 = vld [vmem:[#allocation7 + $0x248] sm:$0xff]
    %v175 = vld [vmem:[#allocation7 + $0x250] sm:$0xff]
    %v176 = vld [vmem:[#allocation7 + $0x258] sm:$0xff]
    %v177 = vld [vmem:[#allocation7 + $0x260] sm:$0xff]
    %v178 = vld [vmem:[#allocation7 + $0x268] sm:$0xff]
    %v179 = vld [vmem:[#allocation7 + $0x270] sm:$0xff]
    %v180 = vld [vmem:[#allocation7 + $0x278] sm:$0xff]
    %v181 = vld [vmem:[#allocation7 + $0x280] sm:$0xff]
    %v182 = vld [vmem:[#allocation7 + $0x288] sm:$0xff]
    %v183 = vld [vmem:[#allocation7 + $0x290] sm:$0xff]
    %v184 = vld [vmem:[#allocation7 + $0x298] sm:$0xff]
    %v185 = vld [vmem:[#allocation7 + $0x2a0] sm:$0xff]
    %v186 = vld [vmem:[#allocation7 + $0x2a8] sm:$0xff]
    %v187 = vld [vmem:[#allocation7 + $0x2b0] sm:$0xff]
    %v188 = vld [vmem:[#allocation7 + $0x2b8] sm:$0xff]
    %v189 = vld [vmem:[#allocation7 + $0x2c0] sm:$0xff]
    %v190 = vld [vmem:[#allocation7 + $0x2c8] sm:$0xff]
    %v191 = vld [vmem:[#allocation7 + $0x2d0] sm:$0xff]
    %v192 = vld [vmem:[#allocation7 + $0x2d8] sm:$0xff]
    %v193 = vld [vmem:[#allocation7 + $0x2e0] sm:$0xff]
    %v194 = vld [vmem:[#allocation7 + $0x2e8] sm:$0xff]
    %v195 = vld [vmem:[#allocation7 + $0x2f0] sm:$0xff]
    %v196 = vld [vmem:[#allocation7 + $0x2f8] sm:$0xff]
    %v197 = vld [vmem:[#allocation7 + $0x300] sm:$0xff]
    %v198 = vld [vmem:[#allocation7 + $0x308] sm:$0xff]
    %v199 = vld [vmem:[#allocation7 + $0x310] sm:$0xff]
    %v200 = vld [vmem:[#allocation7 + $0x318] sm:$0xff]
    %v201 = vld [vmem:[#allocation7 + $0x320] sm:$0xff]
    %v202 = vld [vmem:[#allocation7 + $0x328] sm:$0xff]
    %v203 = vld [vmem:[#allocation7 + $0x330] sm:$0xff]
    %v204 = vld [vmem:[#allocation7 + $0x338] sm:$0xff]
    %v205 = vld [vmem:[#allocation7 + $0x340] sm:$0xff]
    %v206 = vld [vmem:[#allocation7 + $0x348] sm:$0xff]
    %v207 = vld [vmem:[#allocation7 + $0x350] sm:$0xff]
    %v208 = vld [vmem:[#allocation7 + $0x358] sm:$0xff]
    %v209 = vld [vmem:[#allocation7 + $0x360] sm:$0xff]
    %v210 = vld [vmem:[#allocation7 + $0x368] sm:$0xff]
    %v211 = vld [vmem:[#allocation7 + $0x370] sm:$0xff]
    %v212 = vld [vmem:[#allocation7 + $0x378] sm:$0xff]
    %v213 = vld [vmem:[#allocation7 + $0x380] sm:$0xff]
    %v214 = vld [vmem:[#allocation7 + $0x388] sm:$0xff]
    %v215 = vld [vmem:[#allocation7 + $0x390] sm:$0xff]
    %v216 = vld [vmem:[#allocation7 + $0x398] sm:$0xff]
    %v217 = vld [vmem:[#allocation7 + $0x3a0] sm:$0xff]
    %v218 = vld [vmem:[#allocation7 + $0x3a8] sm:$0xff]
    %v219 = vld [vmem:[#allocation7 + $0x3b0] sm:$0xff]
    %v220 = vld [vmem:[#allocation7 + $0x3b8] sm:$0xff]
    %v221 = vld [vmem:[#allocation7 + $0x3c0] sm:$0xff]
    %v222 = vld [vmem:[#allocation7 + $0x3c8] sm:$0xff]
    %v223 = vld [vmem:[#allocation7 + $0x3d0] sm:$0xff]
    %v224 = vld [vmem:[#allocation7 + $0x3d8] sm:$0xff]
    %v225 = vld [vmem:[#allocation7 + $0x3e0] sm:$0xff]
    %v226 = vld [vmem:[#allocation7 + $0x3e8] sm:$0xff]
    %v227 = vld [vmem:[#allocation7 + $0x3f0] sm:$0xff]
    %v228 = vld [vmem:[#allocation7 + $0x3f8] sm:$0xff]
    %v229 = vld [vmem:[#allocation7 + $0x400] sm:$0xff]
    %v230 = vld [vmem:[#allocation7 + $0x408] sm:$0xff]
    %v231 = vld [vmem:[#allocation7 + $0x410] sm:$0xff]
    %v232 = vld [vmem:[#allocation7 + $0x418] sm:$0xff]
    %v233 = vld [vmem:[#allocation7 + $0x420] sm:$0xff]
    %v234 = vld [vmem:[#allocation7 + $0x428] sm:$0xff]
    %v235 = vld [vmem:[#allocation7 + $0x430] sm:$0xff]
    %v236 = vld [vmem:[#allocation7 + $0x438] sm:$0xff]
    %v237 = vld [vmem:[#allocation7 + $0x440] sm:$0xff]
    %v238 = vld [vmem:[#allocation7 + $0x448] sm:$0xff]
    %v239 = vld [vmem:[#allocation7 + $0x450] sm:$0xff]
    %v240 = vld [vmem:[#allocation7 + $0x458] sm:$0xff]
    %v241 = vld [vmem:[#allocation7 + $0x460] sm:$0xff]
    %v242 = vld [vmem:[#allocation7 + $0x468] sm:$0xff]
    %v243 = vld [vmem:[#allocation7 + $0x470] sm:$0xff]
    %v244 = vld [vmem:[#allocation7 + $0x478] sm:$0xff]
    %v245 = vld [vmem:[#allocation7 + $0x480] sm:$0xff]
    %v246 = vld [vmem:[#allocation7 + $0x488] sm:$0xff]
    %v247 = vld [vmem:[#allocation7 + $0x490] sm:$0xff]
    %v248 = vld [vmem:[#allocation7 + $0x498] sm:$0xff]
    %v249 = vld [vmem:[#allocation7 + $0x4a0] sm:$0xff]
    %v250 = vld [vmem:[#allocation7 + $0x4a8] sm:$0xff]
    %v251 = vld [vmem:[#allocation7 + $0x4b0] sm:$0xff]
    %v252 = vld [vmem:[#allocation7 + $0x4b8] sm:$0xff]
    %v253 = vld [vmem:[#allocation7 + $0x4c0] sm:$0xff]
    %v254 = vld [vmem:[#allocation7 + $0x4c8] sm:$0xff]
    %v255 = vld [vmem:[#allocation7 + $0x4d0] sm:$0xff]
    %v256 = vld [vmem:[#allocation7 + $0x4d8] sm:$0xff]
    %v257 = vld [vmem:[#allocation7 + $0x4e0] sm:$0xff]
    %v258 = vld [vmem:[#allocation7 + $0x4e8] sm:$0xff]
    %v259 = vld [vmem:[#allocation7 + $0x4f0] sm:$0xff]
    %v260 = vld [vmem:[#allocation7 + $0x4f8] sm:$0xff]
    %v261 = vld [vmem:[#allocation7 + $0x500] sm:$0xff]
    %v262 = vld [vmem:[#allocation7 + $0x508] sm:$0xff]
    %v263 = vld [vmem:[#allocation7 + $0x510] sm:$0xff]
    %v264 = vld [vmem:[#allocation7 + $0x518] sm:$0xff]
    %v265 = vld [vmem:[#allocation7 + $0x520] sm:$0xff]
    %v266 = vld [vmem:[#allocation7 + $0x528] sm:$0xff]
    %v267 = vld [vmem:[#allocation7 + $0x530] sm:$0xff]
    %v268 = vld [vmem:[#allocation7 + $0x538] sm:$0xff]
    %v269 = vld [vmem:[#allocation7 + $0x540] sm:$0xff]
    %v270 = vld [vmem:[#allocation7 + $0x548] sm:$0xff]
    %v271 = vld [vmem:[#allocation7 + $0x550] sm:$0xff]
    %v272 = vld [vmem:[#allocation7 + $0x558] sm:$0xff]
    %v273 = vld [vmem:[#allocation7 + $0x560] sm:$0xff]
    %v274 = vld [vmem:[#allocation7 + $0x568] sm:$0xff]
    %v275 = vld [vmem:[#allocation7 + $0x570] sm:$0xff]
    %v276 = vld [vmem:[#allocation7 + $0x578] sm:$0xff]
    %v277 = vld [vmem:[#allocation7 + $0x580] sm:$0xff]
    %v278 = vld [vmem:[#allocation7 + $0x588] sm:$0xff]
    %v279 = vld [vmem:[#allocation7 + $0x590] sm:$0xff]
    %v280 = vld [vmem:[#allocation7 + $0x598] sm:$0xff]
    %v281 = vld [vmem:[#allocation7 + $0x5a0] sm:$0xff]
    %v282 = vld [vmem:[#allocation7 + $0x5a8] sm:$0xff]
    %v283 = vld [vmem:[#allocation7 + $0x5b0] sm:$0xff]
    %v284 = vld [vmem:[#allocation7 + $0x5b8] sm:$0xff]
    %v285 = vld [vmem:[#allocation7 + $0x5c0] sm:$0xff]
    %v286 = vld [vmem:[#allocation7 + $0x5c8] sm:$0xff]
    %v287 = vld [vmem:[#allocation7 + $0x5d0] sm:$0xff]
    %v288 = vld [vmem:[#allocation7 + $0x5d8] sm:$0xff]
    %v289 = vld [vmem:[#allocation7 + $0x5e0] sm:$0xff]
    %v290 = vld [vmem:[#allocation7 + $0x5e8] sm:$0xff]
    %v291 = vld [vmem:[#allocation7 + $0x5f0] sm:$0xff]
    %v292 = vld [vmem:[#allocation7 + $0x5f8] sm:$0xff]
    %v293 = vld [vmem:[#allocation7 + $0x600] sm:$0xff]
    %v294 = vld [vmem:[#allocation7 + $0x608] sm:$0xff]
    %v295 = vld [vmem:[#allocation7 + $0x610] sm:$0xff]
    %v296 = vld [vmem:[#allocation7 + $0x618] sm:$0xff]
    %v297 = vld [vmem:[#allocation7 + $0x620] sm:$0xff]
    %v298 = vld [vmem:[#allocation7 + $0x628] sm:$0xff]
    %v299 = vld [vmem:[#allocation7 + $0x630] sm:$0xff]
    %v300 = vld [vmem:[#allocation7 + $0x638] sm:$0xff]
    %v301 = vld [vmem:[#allocation7 + $0x640] sm:$0xff]
    %v302 = vld [vmem:[#allocation7 + $0x648] sm:$0xff]
    %v303 = vld [vmem:[#allocation7 + $0x650] sm:$0xff]
    %v304 = vld [vmem:[#allocation7 + $0x658] sm:$0xff]
    %v305 = vld [vmem:[#allocation7 + $0x660] sm:$0xff]
    %v306 = vld [vmem:[#allocation7 + $0x668] sm:$0xff]
    %v307 = vld [vmem:[#allocation7 + $0x670] sm:$0xff]
    %v308 = vld [vmem:[#allocation7 + $0x678] sm:$0xff]
    %v309 = vld [vmem:[#allocation7 + $0x680] sm:$0xff]
    %v310 = vld [vmem:[#allocation7 + $0x688] sm:$0xff]
    %v311 = vld [vmem:[#allocation7 + $0x690] sm:$0xff]
    %v312 = vld [vmem:[#allocation7 + $0x698] sm:$0xff]
    %v313 = vld [vmem:[#allocation7 + $0x6a0] sm:$0xff]
    %v314 = vld [vmem:[#allocation7 + $0x6a8] sm:$0xff]
    %v315 = vld [vmem:[#allocation7 + $0x6b0] sm:$0xff]
    %v316 = vld [vmem:[#allocation7 + $0x6b8] sm:$0xff]
    %v317 = vld [vmem:[#allocation7 + $0x6c0] sm:$0xff]
    %v318 = vld [vmem:[#allocation7 + $0x6c8] sm:$0xff]
    %v319 = vld [vmem:[#allocation7 + $0x6d0] sm:$0xff]
    %v320 = vld [vmem:[#allocation7 + $0x6d8] sm:$0xff]
    %v321 = vld [vmem:[#allocation7 + $0x6e0] sm:$0xff]
    %v322 = vld [vmem:[#allocation7 + $0x6e8] sm:$0xff]
    %v323 = vld [vmem:[#allocation7 + $0x6f0] sm:$0xff]
    %v324 = vld [vmem:[#allocation7 + $0x6f8] sm:$0xff]
    %v325 = vld [vmem:[#allocation7 + $0x700] sm:$0xff]
    %v326 = vld [vmem:[#allocation7 + $0x708] sm:$0xff]
    %v327 = vld [vmem:[#allocation7 + $0x710] sm:$0xff]
    %v328 = vld [vmem:[#allocation7 + $0x718] sm:$0xff]
    %v329 = vld [vmem:[#allocation7 + $0x720] sm:$0xff]
    %v330 = vld [vmem:[#allocation7 + $0x728] sm:$0xff]
    %v331 = vld [vmem:[#allocation7 + $0x730] sm:$0xff]
    %v332 = vld [vmem:[#allocation7 + $0x738] sm:$0xff]
    %v333 = vld [vmem:[#allocation7 + $0x740] sm:$0xff]
    %v334 = vld [vmem:[#allocation7 + $0x748] sm:$0xff]
    %v335 = vld [vmem:[#allocation7 + $0x750] sm:$0xff]
    %v336 = vld [vmem:[#allocation7 + $0x758] sm:$0xff]
    %v337 = vld [vmem:[#allocation7 + $0x760] sm:$0xff]
    %v338 = vld [vmem:[#allocation7 + $0x768] sm:$0xff]
    %v339 = vld [vmem:[#allocation7 + $0x770] sm:$0xff]
    %v340 = vld [vmem:[#allocation7 + $0x778] sm:$0xff]
    %v341 = vld [vmem:[#allocation7 + $0x780] sm:$0xff]
    %v342 = vld [vmem:[#allocation7 + $0x788] sm:$0xff]
    %v343 = vld [vmem:[#allocation7 + $0x790] sm:$0xff]
    %v344 = vld [vmem:[#allocation7 + $0x798] sm:$0xff]
    %v345 = vld [vmem:[#allocation7 + $0x7a0] sm:$0xff]
    %v346 = vld [vmem:[#allocation7 + $0x7a8] sm:$0xff]
    %v347 = vld [vmem:[#allocation7 + $0x7b0] sm:$0xff]
    %v348 = vld [vmem:[#allocation7 + $0x7b8] sm:$0xff]
    %v349 = vld [vmem:[#allocation7 + $0x7c0] sm:$0xff]
    %v350 = vld [vmem:[#allocation7 + $0x7c8] sm:$0xff]
    %v351 = vld [vmem:[#allocation7 + $0x7d0] sm:$0xff]
    %v352 = vld [vmem:[#allocation7 + $0x7d8] sm:$0xff]
    %v353 = vld [vmem:[#allocation7 + $0x7e0] sm:$0xff]
    %v354 = vld [vmem:[#allocation7 + $0x7e8] sm:$0xff]
    %v355 = vld [vmem:[#allocation7 + $0x7f0] sm:$0xff]
    %v356 = vld [vmem:[#allocation7 + $0x7f8] sm:$0xff]
    %v357 = vld [vmem:[#allocation7 + $0x800] sm:$0xff]
    %v358 = vld [vmem:[#allocation7 + $0x808] sm:$0xff]
    %v359 = vld [vmem:[#allocation7 + $0x810] sm:$0xff]
    %v360 = vld [vmem:[#allocation7 + $0x818] sm:$0xff]
    %v361 = vld [vmem:[#allocation7 + $0x820] sm:$0xff]
    %v362 = vld [vmem:[#allocation7 + $0x828] sm:$0xff]
    %v363 = vld [vmem:[#allocation7 + $0x830] sm:$0xff]
    %v364 = vld [vmem:[#allocation7 + $0x838] sm:$0xff]
    %v365 = vld [vmem:[#allocation7 + $0x840] sm:$0xff]
    %v366 = vld [vmem:[#allocation7 + $0x848] sm:$0xff]
    %v367 = vld [vmem:[#allocation7 + $0x850] sm:$0xff]
    %v368 = vld [vmem:[#allocation7 + $0x858] sm:$0xff]
    %v369 = vld [vmem:[#allocation7 + $0x860] sm:$0xff]
    %v370 = vld [vmem:[#allocation7 + $0x868] sm:$0xff]
    %v371 = vld [vmem:[#allocation7 + $0x870] sm:$0xff]
    %v372 = vld [vmem:[#allocation7 + $0x878] sm:$0xff]
    %v373 = vld [vmem:[#allocation7 + $0x880] sm:$0xff]
    %v374 = vld [vmem:[#allocation7 + $0x888] sm:$0xff]
    %v375 = vld [vmem:[#allocation7 + $0x890] sm:$0xff]
    %v376 = vld [vmem:[#allocation7 + $0x898] sm:$0xff]
    %v377 = vld [vmem:[#allocation7 + $0x8a0] sm:$0xff]
    %v378 = vld [vmem:[#allocation7 + $0x8a8] sm:$0xff]
    %v379 = vld [vmem:[#allocation7 + $0x8b0] sm:$0xff]
    %v380 = vld [vmem:[#allocation7 + $0x8b8] sm:$0xff]
    %v381 = vld [vmem:[#allocation7 + $0x8c0] sm:$0xff]
    %v382 = vld [vmem:[#allocation7 + $0x8c8] sm:$0xff]
    %v383 = vld [vmem:[#allocation7 + $0x8d0] sm:$0xff]
    %v384 = vld [vmem:[#allocation7 + $0x8d8] sm:$0xff]
    %v385 = vld [vmem:[#allocation7 + $0x8e0] sm:$0xff]
    %v386 = vld [vmem:[#allocation7 + $0x8e8] sm:$0xff]
    %v387 = vld [vmem:[#allocation7 + $0x8f0] sm:$0xff]
    %v388 = vld [vmem:[#allocation7 + $0x8f8] sm:$0xff]
    %v389 = vunpack.c.l.bf16 %v89
    %v390 = vunpack.c.h.bf16 %v89
    %v391 = vunpack.c.l.bf16 %v90
    %v392 = vunpack.c.h.bf16 %v90
    %v393 = vunpack.c.l.bf16 %v91
    %v394 = vunpack.c.h.bf16 %v91
    %v395 = vunpack.c.l.bf16 %v92
    %v396 = vunpack.c.h.bf16 %v92
    %v397 = vunpack.c.l.bf16 %v93
    %v398 = vunpack.c.h.bf16 %v93
    %v399 = vunpack.c.l.bf16 %v94
    %v400 = vunpack.c.h.bf16 %v94
    %v401 = vunpack.c.l.bf16 %v95
    %v402 = vunpack.c.h.bf16 %v95
    %v403 = vunpack.c.l.bf16 %v96
    %v404 = vunpack.c.h.bf16 %v96
    %v405 = vunpack.c.l.bf16 %v97
    %v406 = vunpack.c.h.bf16 %v97
    %v407 = vunpack.c.l.bf16 %v98
    %v408 = vunpack.c.h.bf16 %v98
    %v409 = vunpack.c.l.bf16 %v99
    %v410 = vunpack.c.h.bf16 %v99
    %v411 = vunpack.c.l.bf16 %v100
    %v412 = vunpack.c.h.bf16 %v100
    %v413 = vld [vmem:[#allocation10] sm:$0x3f]
    %v415 = vlaneseq
    %v416 = vshrl.u32 %v415, 7
    %v417 = vsub.s32 0, %v416
    %v418 = vrot.slane %v413, %v417
    %v419 = vlaneseq
    %v420 = vshrl.u32 %v419, 7
    %v421 = vsub.s32 1, %v420
    %v422 = vrot.slane %v413, %v421
    %v423 = vlaneseq
    %v424 = vshrl.u32 %v423, 7
    %v425 = vsub.s32 2, %v424
    %v426 = vrot.slane %v413, %v425
    %v427 = vlaneseq
    %v428 = vshrl.u32 %v427, 7
    %v429 = vsub.s32 3, %v428
    %v430 = vrot.slane %v413, %v429
    %v431 = vlaneseq
    %v432 = vshrl.u32 %v431, 7
    %v433 = vsub.s32 4, %v432
    %v434 = vrot.slane %v413, %v433
    %v435 = vlaneseq
    %v436 = vshrl.u32 %v435, 7
    %v437 = vsub.s32 5, %v436
    %v438 = vrot.slane %v413, %v437
    %v451 = vunpack.c.l.b16 %v89
    %v452 = vunpack.c.h.b16 %v89
    %v453 = vunpack.c.l.b16 %v90
    %v454 = vunpack.c.h.b16 %v90
    %v455 = vunpack.c.l.b16 %v91
    %v456 = vunpack.c.h.b16 %v91
    %v457 = vunpack.c.l.b16 %v92
    %v458 = vunpack.c.h.b16 %v92
    %v459 = vunpack.c.l.b16 %v93
    %v460 = vunpack.c.h.b16 %v93
    %v461 = vunpack.c.l.b16 %v94
    %v462 = vunpack.c.h.b16 %v94
    %v463 = vpack.c.b16 %v457, %v451
    %v464 = vpack.c.b16 %v458, %v452
    %v465 = vpack.c.b16 %v459, %v453
    %v466 = vpack.c.b16 %v460, %v454
    %v467 = vpack.c.b16 %v461, %v455
    %v468 = vpack.c.b16 %v462, %v456
    %v763 = vunpack.c.l.b16 %v101
    %v764 = vunpack.c.h.b16 %v101
    %v765 = vunpack.c.l.b16 %v102
    %v766 = vunpack.c.h.b16 %v102
    %v767 = vunpack.c.l.b16 %v103
    %v768 = vunpack.c.h.b16 %v103
    %v769 = vunpack.c.l.b16 %v104
    %v770 = vunpack.c.h.b16 %v104
    %v771 = vunpack.c.l.b16 %v105
    %v772 = vunpack.c.h.b16 %v105
    %v773 = vunpack.c.l.b16 %v106
    %v774 = vunpack.c.h.b16 %v106
    %v775 = vunpack.c.l.b16 %v107
    %v776 = vunpack.c.h.b16 %v107
    %v777 = vunpack.c.l.b16 %v108
    %v778 = vunpack.c.h.b16 %v108
    %v779 = vunpack.c.l.b16 %v109
    %v780 = vunpack.c.h.b16 %v109
    %v781 = vunpack.c.l.b16 %v110
    %v782 = vunpack.c.h.b16 %v110
    %v783 = vunpack.c.l.b16 %v111
    %v784 = vunpack.c.h.b16 %v111
    %v785 = vunpack.c.l.b16 %v112
    %v786 = vunpack.c.h.b16 %v112
    %v787 = vunpack.c.l.b16 %v113
    %v788 = vunpack.c.h.b16 %v113
    %v789 = vunpack.c.l.b16 %v114
    %v790 = vunpack.c.h.b16 %v114
    %v791 = vunpack.c.l.b16 %v115
    %v792 = vunpack.c.h.b16 %v115
    %v793 = vunpack.c.l.b16 %v116
    %v794 = vunpack.c.h.b16 %v116
    %v795 = vunpack.c.l.b16 %v117
    %v796 = vunpack.c.h.b16 %v117
    %v797 = vunpack.c.l.b16 %v118
    %v798 = vunpack.c.h.b16 %v118
    %v799 = vunpack.c.l.b16 %v119
    %v800 = vunpack.c.h.b16 %v119
    %v801 = vunpack.c.l.b16 %v120
    %v802 = vunpack.c.h.b16 %v120
    %v803 = vunpack.c.l.b16 %v121
    %v804 = vunpack.c.h.b16 %v121
    %v805 = vunpack.c.l.b16 %v122
    %v806 = vunpack.c.h.b16 %v122
    %v807 = vunpack.c.l.b16 %v123
    %v808 = vunpack.c.h.b16 %v123
    %v809 = vunpack.c.l.b16 %v124
    %v810 = vunpack.c.h.b16 %v124
    %v811 = vunpack.c.l.b16 %v125
    %v812 = vunpack.c.h.b16 %v125
    %v813 = vunpack.c.l.b16 %v126
    %v814 = vunpack.c.h.b16 %v126
    %v815 = vunpack.c.l.b16 %v127
    %v816 = vunpack.c.h.b16 %v127
    %v817 = vunpack.c.l.b16 %v128
    %v818 = vunpack.c.h.b16 %v128
    %v819 = vunpack.c.l.b16 %v129
    %v820 = vunpack.c.h.b16 %v129
    %v821 = vunpack.c.l.b16 %v130
    %v822 = vunpack.c.h.b16 %v130
    %v823 = vunpack.c.l.b16 %v131
    %v824 = vunpack.c.h.b16 %v131
    %v825 = vunpack.c.l.b16 %v132
    %v826 = vunpack.c.h.b16 %v132
    %v827 = vunpack.c.l.b16 %v133
    %v828 = vunpack.c.h.b16 %v133
    %v829 = vunpack.c.l.b16 %v134
    %v830 = vunpack.c.h.b16 %v134
    %v831 = vunpack.c.l.b16 %v135
    %v832 = vunpack.c.h.b16 %v135
    %v833 = vunpack.c.l.b16 %v136
    %v834 = vunpack.c.h.b16 %v136
    %v835 = vunpack.c.l.b16 %v137
    %v836 = vunpack.c.h.b16 %v137
    %v837 = vunpack.c.l.b16 %v138
    %v838 = vunpack.c.h.b16 %v138
    %v839 = vunpack.c.l.b16 %v139
    %v840 = vunpack.c.h.b16 %v139
    %v841 = vunpack.c.l.b16 %v140
    %v842 = vunpack.c.h.b16 %v140
    %v843 = vunpack.c.l.b16 %v141
    %v844 = vunpack.c.h.b16 %v141
    %v845 = vunpack.c.l.b16 %v142
    %v846 = vunpack.c.h.b16 %v142
    %v847 = vunpack.c.l.b16 %v143
    %v848 = vunpack.c.h.b16 %v143
    %v849 = vunpack.c.l.b16 %v144
    %v850 = vunpack.c.h.b16 %v144
    %v851 = vunpack.c.l.b16 %v145
    %v852 = vunpack.c.h.b16 %v145
    %v853 = vunpack.c.l.b16 %v146
    %v854 = vunpack.c.h.b16 %v146
    %v855 = vunpack.c.l.b16 %v147
    %v856 = vunpack.c.h.b16 %v147
    %v857 = vunpack.c.l.b16 %v148
    %v858 = vunpack.c.h.b16 %v148
    %v859 = vunpack.c.l.b16 %v149
    %v860 = vunpack.c.h.b16 %v149
    %v861 = vunpack.c.l.b16 %v150
    %v862 = vunpack.c.h.b16 %v150
    %v863 = vunpack.c.l.b16 %v151
    %v864 = vunpack.c.h.b16 %v151
    %v865 = vunpack.c.l.b16 %v152
    %v866 = vunpack.c.h.b16 %v152
    %v867 = vunpack.c.l.b16 %v153
    %v868 = vunpack.c.h.b16 %v153
    %v869 = vunpack.c.l.b16 %v154
    %v870 = vunpack.c.h.b16 %v154
    %v871 = vunpack.c.l.b16 %v155
    %v872 = vunpack.c.h.b16 %v155
    %v873 = vunpack.c.l.b16 %v156
    %v874 = vunpack.c.h.b16 %v156
    %v875 = vunpack.c.l.b16 %v157
    %v876 = vunpack.c.h.b16 %v157
    %v877 = vunpack.c.l.b16 %v158
    %v878 = vunpack.c.h.b16 %v158
    %v879 = vunpack.c.l.b16 %v159
    %v880 = vunpack.c.h.b16 %v159
    %v881 = vunpack.c.l.b16 %v160
    %v882 = vunpack.c.h.b16 %v160
    %v883 = vunpack.c.l.b16 %v161
    %v884 = vunpack.c.h.b16 %v161
    %v885 = vunpack.c.l.b16 %v162
    %v886 = vunpack.c.h.b16 %v162
    %v887 = vunpack.c.l.b16 %v163
    %v888 = vunpack.c.h.b16 %v163
    %v889 = vunpack.c.l.b16 %v164
    %v890 = vunpack.c.h.b16 %v164
    %v891 = vunpack.c.l.b16 %v165
    %v892 = vunpack.c.h.b16 %v165
    %v893 = vunpack.c.l.b16 %v166
    %v894 = vunpack.c.h.b16 %v166
    %v895 = vunpack.c.l.b16 %v167
    %v896 = vunpack.c.h.b16 %v167
    %v897 = vunpack.c.l.b16 %v168
    %v898 = vunpack.c.h.b16 %v168
    %v899 = vunpack.c.l.b16 %v169
    %v900 = vunpack.c.h.b16 %v169
    %v901 = vunpack.c.l.b16 %v170
    %v902 = vunpack.c.h.b16 %v170
    %v903 = vunpack.c.l.b16 %v171
    %v904 = vunpack.c.h.b16 %v171
    %v905 = vunpack.c.l.b16 %v172
    %v906 = vunpack.c.h.b16 %v172
    %v907 = vunpack.c.l.b16 %v173
    %v908 = vunpack.c.h.b16 %v173
    %v909 = vunpack.c.l.b16 %v174
    %v910 = vunpack.c.h.b16 %v174
    %v911 = vunpack.c.l.b16 %v175
    %v912 = vunpack.c.h.b16 %v175
    %v913 = vunpack.c.l.b16 %v176
    %v914 = vunpack.c.h.b16 %v176
    %v915 = vunpack.c.l.b16 %v177
    %v916 = vunpack.c.h.b16 %v177
    %v917 = vunpack.c.l.b16 %v178
    %v918 = vunpack.c.h.b16 %v178
    %v919 = vunpack.c.l.b16 %v179
    %v920 = vunpack.c.h.b16 %v179
    %v921 = vunpack.c.l.b16 %v180
    %v922 = vunpack.c.h.b16 %v180
    %v923 = vunpack.c.l.b16 %v181
    %v924 = vunpack.c.h.b16 %v181
    %v925 = vunpack.c.l.b16 %v182
    %v926 = vunpack.c.h.b16 %v182
    %v927 = vunpack.c.l.b16 %v183
    %v928 = vunpack.c.h.b16 %v183
    %v929 = vunpack.c.l.b16 %v184
    %v930 = vunpack.c.h.b16 %v184
    %v931 = vunpack.c.l.b16 %v185
    %v932 = vunpack.c.h.b16 %v185
    %v933 = vunpack.c.l.b16 %v186
    %v934 = vunpack.c.h.b16 %v186
    %v935 = vunpack.c.l.b16 %v187
    %v936 = vunpack.c.h.b16 %v187
    %v937 = vunpack.c.l.b16 %v188
    %v938 = vunpack.c.h.b16 %v188
    %v939 = vunpack.c.l.b16 %v189
    %v940 = vunpack.c.h.b16 %v189
    %v941 = vunpack.c.l.b16 %v190
    %v942 = vunpack.c.h.b16 %v190
    %v943 = vunpack.c.l.b16 %v191
    %v944 = vunpack.c.h.b16 %v191
    %v945 = vunpack.c.l.b16 %v192
    %v946 = vunpack.c.h.b16 %v192
    %v947 = vunpack.c.l.b16 %v193
    %v948 = vunpack.c.h.b16 %v193
    %v949 = vunpack.c.l.b16 %v194
    %v950 = vunpack.c.h.b16 %v194
    %v951 = vunpack.c.l.b16 %v195
    %v952 = vunpack.c.h.b16 %v195
    %v953 = vunpack.c.l.b16 %v196
    %v954 = vunpack.c.h.b16 %v196
    %v955 = vunpack.c.l.b16 %v197
    %v956 = vunpack.c.h.b16 %v197
    %v957 = vunpack.c.l.b16 %v198
    %v958 = vunpack.c.h.b16 %v198
    %v959 = vunpack.c.l.b16 %v199
    %v960 = vunpack.c.h.b16 %v199
    %v961 = vunpack.c.l.b16 %v200
    %v962 = vunpack.c.h.b16 %v200
    %v963 = vunpack.c.l.b16 %v201
    %v964 = vunpack.c.h.b16 %v201
    %v965 = vunpack.c.l.b16 %v202
    %v966 = vunpack.c.h.b16 %v202
    %v967 = vunpack.c.l.b16 %v203
    %v968 = vunpack.c.h.b16 %v203
    %v969 = vunpack.c.l.b16 %v204
    %v970 = vunpack.c.h.b16 %v204
    %v971 = vunpack.c.l.b16 %v205
    %v972 = vunpack.c.h.b16 %v205
    %v973 = vunpack.c.l.b16 %v206
    %v974 = vunpack.c.h.b16 %v206
    %v975 = vunpack.c.l.b16 %v207
    %v976 = vunpack.c.h.b16 %v207
    %v977 = vunpack.c.l.b16 %v208
    %v978 = vunpack.c.h.b16 %v208
    %v979 = vunpack.c.l.b16 %v209
    %v980 = vunpack.c.h.b16 %v209
    %v981 = vunpack.c.l.b16 %v210
    %v982 = vunpack.c.h.b16 %v210
    %v983 = vunpack.c.l.b16 %v211
    %v984 = vunpack.c.h.b16 %v211
    %v985 = vunpack.c.l.b16 %v212
    %v986 = vunpack.c.h.b16 %v212
    %v987 = vunpack.c.l.b16 %v213
    %v988 = vunpack.c.h.b16 %v213
    %v989 = vunpack.c.l.b16 %v214
    %v990 = vunpack.c.h.b16 %v214
    %v991 = vunpack.c.l.b16 %v215
    %v992 = vunpack.c.h.b16 %v215
    %v993 = vunpack.c.l.b16 %v216
    %v994 = vunpack.c.h.b16 %v216
    %v995 = vunpack.c.l.b16 %v217
    %v996 = vunpack.c.h.b16 %v217
    %v997 = vunpack.c.l.b16 %v218
    %v998 = vunpack.c.h.b16 %v218
    %v999 = vunpack.c.l.b16 %v219
    %v1000 = vunpack.c.h.b16 %v219
    %v1001 = vunpack.c.l.b16 %v220
    %v1002 = vunpack.c.h.b16 %v220
    %v1003 = vunpack.c.l.b16 %v221
    %v1004 = vunpack.c.h.b16 %v221
    %v1005 = vunpack.c.l.b16 %v222
    %v1006 = vunpack.c.h.b16 %v222
    %v1007 = vunpack.c.l.b16 %v223
    %v1008 = vunpack.c.h.b16 %v223
    %v1009 = vunpack.c.l.b16 %v224
    %v1010 = vunpack.c.h.b16 %v224
    %v1011 = vunpack.c.l.b16 %v225
    %v1012 = vunpack.c.h.b16 %v225
    %v1013 = vunpack.c.l.b16 %v226
    %v1014 = vunpack.c.h.b16 %v226
    %v1015 = vunpack.c.l.b16 %v227
    %v1016 = vunpack.c.h.b16 %v227
    %v1017 = vunpack.c.l.b16 %v228
    %v1018 = vunpack.c.h.b16 %v228
    %v1019 = vunpack.c.l.b16 %v229
    %v1020 = vunpack.c.h.b16 %v229
    %v1021 = vunpack.c.l.b16 %v230
    %v1022 = vunpack.c.h.b16 %v230
    %v1023 = vunpack.c.l.b16 %v231
    %v1024 = vunpack.c.h.b16 %v231
    %v1025 = vunpack.c.l.b16 %v232
    %v1026 = vunpack.c.h.b16 %v232
    %v1027 = vunpack.c.l.b16 %v233
    %v1028 = vunpack.c.h.b16 %v233
    %v1029 = vunpack.c.l.b16 %v234
    %v1030 = vunpack.c.h.b16 %v234
    %v1031 = vunpack.c.l.b16 %v235
    %v1032 = vunpack.c.h.b16 %v235
    %v1033 = vunpack.c.l.b16 %v236
    %v1034 = vunpack.c.h.b16 %v236
    %v1035 = vunpack.c.l.b16 %v237
    %v1036 = vunpack.c.h.b16 %v237
    %v1037 = vunpack.c.l.b16 %v238
    %v1038 = vunpack.c.h.b16 %v238
    %v1039 = vunpack.c.l.b16 %v239
    %v1040 = vunpack.c.h.b16 %v239
    %v1041 = vunpack.c.l.b16 %v240
    %v1042 = vunpack.c.h.b16 %v240
    %v1043 = vunpack.c.l.b16 %v241
    %v1044 = vunpack.c.h.b16 %v241
    %v1045 = vunpack.c.l.b16 %v242
    %v1046 = vunpack.c.h.b16 %v242
    %v1047 = vunpack.c.l.b16 %v243
    %v1048 = vunpack.c.h.b16 %v243
    %v1049 = vunpack.c.l.b16 %v244
    %v1050 = vunpack.c.h.b16 %v244
    %v1051 = vunpack.c.l.b16 %v245
    %v1052 = vunpack.c.h.b16 %v245
    %v1053 = vunpack.c.l.b16 %v246
    %v1054 = vunpack.c.h.b16 %v246
    %v1055 = vunpack.c.l.b16 %v247
    %v1056 = vunpack.c.h.b16 %v247
    %v1057 = vunpack.c.l.b16 %v248
    %v1058 = vunpack.c.h.b16 %v248
    %v1059 = vunpack.c.l.b16 %v249
    %v1060 = vunpack.c.h.b16 %v249
    %v1061 = vunpack.c.l.b16 %v250
    %v1062 = vunpack.c.h.b16 %v250
    %v1063 = vunpack.c.l.b16 %v251
    %v1064 = vunpack.c.h.b16 %v251
    %v1065 = vunpack.c.l.b16 %v252
    %v1066 = vunpack.c.h.b16 %v252
    %v1067 = vunpack.c.l.b16 %v253
    %v1068 = vunpack.c.h.b16 %v253
    %v1069 = vunpack.c.l.b16 %v254
    %v1070 = vunpack.c.h.b16 %v254
    %v1071 = vunpack.c.l.b16 %v255
    %v1072 = vunpack.c.h.b16 %v255
    %v1073 = vunpack.c.l.b16 %v256
    %v1074 = vunpack.c.h.b16 %v256
    %v1075 = vunpack.c.l.b16 %v257
    %v1076 = vunpack.c.h.b16 %v257
    %v1077 = vunpack.c.l.b16 %v258
    %v1078 = vunpack.c.h.b16 %v258
    %v1079 = vunpack.c.l.b16 %v259
    %v1080 = vunpack.c.h.b16 %v259
    %v1081 = vunpack.c.l.b16 %v260
    %v1082 = vunpack.c.h.b16 %v260
    %v1083 = vunpack.c.l.b16 %v261
    %v1084 = vunpack.c.h.b16 %v261
    %v1085 = vunpack.c.l.b16 %v262
    %v1086 = vunpack.c.h.b16 %v262
    %v1087 = vunpack.c.l.b16 %v263
    %v1088 = vunpack.c.h.b16 %v263
    %v1089 = vunpack.c.l.b16 %v264
    %v1090 = vunpack.c.h.b16 %v264
    %v1091 = vunpack.c.l.b16 %v265
    %v1092 = vunpack.c.h.b16 %v265
    %v1093 = vunpack.c.l.b16 %v266
    %v1094 = vunpack.c.h.b16 %v266
    %v1095 = vunpack.c.l.b16 %v267
    %v1096 = vunpack.c.h.b16 %v267
    %v1097 = vunpack.c.l.b16 %v268
    %v1098 = vunpack.c.h.b16 %v268
    %v1099 = vunpack.c.l.b16 %v269
    %v1100 = vunpack.c.h.b16 %v269
    %v1101 = vunpack.c.l.b16 %v270
    %v1102 = vunpack.c.h.b16 %v270
    %v1103 = vunpack.c.l.b16 %v271
    %v1104 = vunpack.c.h.b16 %v271
    %v1105 = vunpack.c.l.b16 %v272
    %v1106 = vunpack.c.h.b16 %v272
    %v1107 = vunpack.c.l.b16 %v273
    %v1108 = vunpack.c.h.b16 %v273
    %v1109 = vunpack.c.l.b16 %v274
    %v1110 = vunpack.c.h.b16 %v274
    %v1111 = vunpack.c.l.b16 %v275
    %v1112 = vunpack.c.h.b16 %v275
    %v1113 = vunpack.c.l.b16 %v276
    %v1114 = vunpack.c.h.b16 %v276
    %v1115 = vunpack.c.l.b16 %v277
    %v1116 = vunpack.c.h.b16 %v277
    %v1117 = vunpack.c.l.b16 %v278
    %v1118 = vunpack.c.h.b16 %v278
    %v1119 = vunpack.c.l.b16 %v279
    %v1120 = vunpack.c.h.b16 %v279
    %v1121 = vunpack.c.l.b16 %v280
    %v1122 = vunpack.c.h.b16 %v280
    %v1123 = vunpack.c.l.b16 %v281
    %v1124 = vunpack.c.h.b16 %v281
    %v1125 = vunpack.c.l.b16 %v282
    %v1126 = vunpack.c.h.b16 %v282
    %v1127 = vunpack.c.l.b16 %v283
    %v1128 = vunpack.c.h.b16 %v283
    %v1129 = vunpack.c.l.b16 %v284
    %v1130 = vunpack.c.h.b16 %v284
    %v1131 = vunpack.c.l.b16 %v285
    %v1132 = vunpack.c.h.b16 %v285
    %v1133 = vunpack.c.l.b16 %v286
    %v1134 = vunpack.c.h.b16 %v286
    %v1135 = vunpack.c.l.b16 %v287
    %v1136 = vunpack.c.h.b16 %v287
    %v1137 = vunpack.c.l.b16 %v288
    %v1138 = vunpack.c.h.b16 %v288
    %v1139 = vunpack.c.l.b16 %v289
    %v1140 = vunpack.c.h.b16 %v289
    %v1141 = vunpack.c.l.b16 %v290
    %v1142 = vunpack.c.h.b16 %v290
    %v1143 = vunpack.c.l.b16 %v291
    %v1144 = vunpack.c.h.b16 %v291
    %v1145 = vunpack.c.l.b16 %v292
    %v1146 = vunpack.c.h.b16 %v292
    %v1147 = vunpack.c.l.b16 %v293
    %v1148 = vunpack.c.h.b16 %v293
    %v1149 = vunpack.c.l.b16 %v294
    %v1150 = vunpack.c.h.b16 %v294
    %v1151 = vunpack.c.l.b16 %v295
    %v1152 = vunpack.c.h.b16 %v295
    %v1153 = vunpack.c.l.b16 %v296
    %v1154 = vunpack.c.h.b16 %v296
    %v1155 = vunpack.c.l.b16 %v297
    %v1156 = vunpack.c.h.b16 %v297
    %v1157 = vunpack.c.l.b16 %v298
    %v1158 = vunpack.c.h.b16 %v298
    %v1159 = vunpack.c.l.b16 %v299
    %v1160 = vunpack.c.h.b16 %v299
    %v1161 = vunpack.c.l.b16 %v300
    %v1162 = vunpack.c.h.b16 %v300
    %v1163 = vunpack.c.l.b16 %v301
    %v1164 = vunpack.c.h.b16 %v301
    %v1165 = vunpack.c.l.b16 %v302
    %v1166 = vunpack.c.h.b16 %v302
    %v1167 = vunpack.c.l.b16 %v303
    %v1168 = vunpack.c.h.b16 %v303
    %v1169 = vunpack.c.l.b16 %v304
    %v1170 = vunpack.c.h.b16 %v304
    %v1171 = vunpack.c.l.b16 %v305
    %v1172 = vunpack.c.h.b16 %v305
    %v1173 = vunpack.c.l.b16 %v306
    %v1174 = vunpack.c.h.b16 %v306
    %v1175 = vunpack.c.l.b16 %v307
    %v1176 = vunpack.c.h.b16 %v307
    %v1177 = vunpack.c.l.b16 %v308
    %v1178 = vunpack.c.h.b16 %v308
    %v1179 = vunpack.c.l.b16 %v309
    %v1180 = vunpack.c.h.b16 %v309
    %v1181 = vunpack.c.l.b16 %v310
    %v1182 = vunpack.c.h.b16 %v310
    %v1183 = vunpack.c.l.b16 %v311
    %v1184 = vunpack.c.h.b16 %v311
    %v1185 = vunpack.c.l.b16 %v312
    %v1186 = vunpack.c.h.b16 %v312
    %v1187 = vunpack.c.l.b16 %v313
    %v1188 = vunpack.c.h.b16 %v313
    %v1189 = vunpack.c.l.b16 %v314
    %v1190 = vunpack.c.h.b16 %v314
    %v1191 = vunpack.c.l.b16 %v315
    %v1192 = vunpack.c.h.b16 %v315
    %v1193 = vunpack.c.l.b16 %v316
    %v1194 = vunpack.c.h.b16 %v316
    %v1195 = vunpack.c.l.b16 %v317
    %v1196 = vunpack.c.h.b16 %v317
    %v1197 = vunpack.c.l.b16 %v318
    %v1198 = vunpack.c.h.b16 %v318
    %v1199 = vunpack.c.l.b16 %v319
    %v1200 = vunpack.c.h.b16 %v319
    %v1201 = vunpack.c.l.b16 %v320
    %v1202 = vunpack.c.h.b16 %v320
    %v1203 = vunpack.c.l.b16 %v321
    %v1204 = vunpack.c.h.b16 %v321
    %v1205 = vunpack.c.l.b16 %v322
    %v1206 = vunpack.c.h.b16 %v322
    %v1207 = vunpack.c.l.b16 %v323
    %v1208 = vunpack.c.h.b16 %v323
    %v1209 = vunpack.c.l.b16 %v324
    %v1210 = vunpack.c.h.b16 %v324
    %v1211 = vunpack.c.l.b16 %v325
    %v1212 = vunpack.c.h.b16 %v325
    %v1213 = vunpack.c.l.b16 %v326
    %v1214 = vunpack.c.h.b16 %v326
    %v1215 = vunpack.c.l.b16 %v327
    %v1216 = vunpack.c.h.b16 %v327
    %v1217 = vunpack.c.l.b16 %v328
    %v1218 = vunpack.c.h.b16 %v328
    %v1219 = vunpack.c.l.b16 %v329
    %v1220 = vunpack.c.h.b16 %v329
    %v1221 = vunpack.c.l.b16 %v330
    %v1222 = vunpack.c.h.b16 %v330
    %v1223 = vunpack.c.l.b16 %v331
    %v1224 = vunpack.c.h.b16 %v331
    %v1225 = vunpack.c.l.b16 %v332
    %v1226 = vunpack.c.h.b16 %v332
    %v1227 = vunpack.c.l.b16 %v333
    %v1228 = vunpack.c.h.b16 %v333
    %v1229 = vunpack.c.l.b16 %v334
    %v1230 = vunpack.c.h.b16 %v334
    %v1231 = vunpack.c.l.b16 %v335
    %v1232 = vunpack.c.h.b16 %v335
    %v1233 = vunpack.c.l.b16 %v336
    %v1234 = vunpack.c.h.b16 %v336
    %v1235 = vunpack.c.l.b16 %v337
    %v1236 = vunpack.c.h.b16 %v337
    %v1237 = vunpack.c.l.b16 %v338
    %v1238 = vunpack.c.h.b16 %v338
    %v1239 = vunpack.c.l.b16 %v339
    %v1240 = vunpack.c.h.b16 %v339
    %v1241 = vunpack.c.l.b16 %v340
    %v1242 = vunpack.c.h.b16 %v340
    %v1243 = vunpack.c.l.b16 %v341
    %v1244 = vunpack.c.h.b16 %v341
    %v1245 = vunpack.c.l.b16 %v342
    %v1246 = vunpack.c.h.b16 %v342
    %v1247 = vunpack.c.l.b16 %v343
    %v1248 = vunpack.c.h.b16 %v343
    %v1249 = vunpack.c.l.b16 %v344
    %v1250 = vunpack.c.h.b16 %v344
    %v1251 = vunpack.c.l.b16 %v345
    %v1252 = vunpack.c.h.b16 %v345
    %v1253 = vunpack.c.l.b16 %v346
    %v1254 = vunpack.c.h.b16 %v346
    %v1255 = vunpack.c.l.b16 %v347
    %v1256 = vunpack.c.h.b16 %v347
    %v1257 = vunpack.c.l.b16 %v348
    %v1258 = vunpack.c.h.b16 %v348
    %v1259 = vunpack.c.l.b16 %v349
    %v1260 = vunpack.c.h.b16 %v349
    %v1261 = vunpack.c.l.b16 %v350
    %v1262 = vunpack.c.h.b16 %v350
    %v1263 = vunpack.c.l.b16 %v351
    %v1264 = vunpack.c.h.b16 %v351
    %v1265 = vunpack.c.l.b16 %v352
    %v1266 = vunpack.c.h.b16 %v352
    %v1267 = vunpack.c.l.b16 %v353
    %v1268 = vunpack.c.h.b16 %v353
    %v1269 = vunpack.c.l.b16 %v354
    %v1270 = vunpack.c.h.b16 %v354
    %v1271 = vunpack.c.l.b16 %v355
    %v1272 = vunpack.c.h.b16 %v355
    %v1273 = vunpack.c.l.b16 %v356
    %v1274 = vunpack.c.h.b16 %v356
    %v1275 = vunpack.c.l.b16 %v357
    %v1276 = vunpack.c.h.b16 %v357
    %v1277 = vunpack.c.l.b16 %v358
    %v1278 = vunpack.c.h.b16 %v358
    %v1279 = vunpack.c.l.b16 %v359
    %v1280 = vunpack.c.h.b16 %v359
    %v1281 = vunpack.c.l.b16 %v360
    %v1282 = vunpack.c.h.b16 %v360
    %v1283 = vunpack.c.l.b16 %v361
    %v1284 = vunpack.c.h.b16 %v361
    %v1285 = vunpack.c.l.b16 %v362
    %v1286 = vunpack.c.h.b16 %v362
    %v1287 = vunpack.c.l.b16 %v363
    %v1288 = vunpack.c.h.b16 %v363
    %v1289 = vunpack.c.l.b16 %v364
    %v1290 = vunpack.c.h.b16 %v364
    %v1291 = vunpack.c.l.b16 %v365
    %v1292 = vunpack.c.h.b16 %v365
    %v1293 = vunpack.c.l.b16 %v366
    %v1294 = vunpack.c.h.b16 %v366
    %v1295 = vunpack.c.l.b16 %v367
    %v1296 = vunpack.c.h.b16 %v367
    %v1297 = vunpack.c.l.b16 %v368
    %v1298 = vunpack.c.h.b16 %v368
    %v1299 = vunpack.c.l.b16 %v369
    %v1300 = vunpack.c.h.b16 %v369
    %v1301 = vunpack.c.l.b16 %v370
    %v1302 = vunpack.c.h.b16 %v370
    %v1303 = vunpack.c.l.b16 %v371
    %v1304 = vunpack.c.h.b16 %v371
    %v1305 = vunpack.c.l.b16 %v372
    %v1306 = vunpack.c.h.b16 %v372
    %v1307 = vunpack.c.l.b16 %v373
    %v1308 = vunpack.c.h.b16 %v373
    %v1309 = vunpack.c.l.b16 %v374
    %v1310 = vunpack.c.h.b16 %v374
    %v1311 = vunpack.c.l.b16 %v375
    %v1312 = vunpack.c.h.b16 %v375
    %v1313 = vunpack.c.l.b16 %v376
    %v1314 = vunpack.c.h.b16 %v376
    %v1315 = vunpack.c.l.b16 %v377
    %v1316 = vunpack.c.h.b16 %v377
    %v1317 = vunpack.c.l.b16 %v378
    %v1318 = vunpack.c.h.b16 %v378
    %v1319 = vunpack.c.l.b16 %v379
    %v1320 = vunpack.c.h.b16 %v379
    %v1321 = vunpack.c.l.b16 %v380
    %v1322 = vunpack.c.h.b16 %v380
    %v1323 = vunpack.c.l.b16 %v381
    %v1324 = vunpack.c.h.b16 %v381
    %v1325 = vunpack.c.l.b16 %v382
    %v1326 = vunpack.c.h.b16 %v382
    %v1327 = vunpack.c.l.b16 %v383
    %v1328 = vunpack.c.h.b16 %v383
    %v1329 = vunpack.c.l.b16 %v384
    %v1330 = vunpack.c.h.b16 %v384
    %v1331 = vunpack.c.l.b16 %v385
    %v1332 = vunpack.c.h.b16 %v385
    %v1333 = vunpack.c.l.b16 %v386
    %v1334 = vunpack.c.h.b16 %v386
    %v1335 = vunpack.c.l.b16 %v387
    %v1336 = vunpack.c.h.b16 %v387
    %v1337 = vunpack.c.l.b16 %v388
    %v1338 = vunpack.c.h.b16 %v388
    %v1339 = vpack.c.b16 %v769, %v763
    %v1340 = vpack.c.b16 %v770, %v764
    %v1341 = vpack.c.b16 %v771, %v765
    %v1342 = vpack.c.b16 %v772, %v766
    %v1343 = vpack.c.b16 %v773, %v767
    %v1344 = vpack.c.b16 %v774, %v768
    %v1345 = vpack.c.b16 %v781, %v775
    %v1346 = vpack.c.b16 %v782, %v776
    %v1347 = vpack.c.b16 %v783, %v777
    %v1348 = vpack.c.b16 %v784, %v778
    %v1349 = vpack.c.b16 %v785, %v779
    %v1350 = vpack.c.b16 %v786, %v780
    %v1351 = vpack.c.b16 %v793, %v787
    %v1352 = vpack.c.b16 %v794, %v788
    %v1353 = vpack.c.b16 %v795, %v789
    %v1354 = vpack.c.b16 %v796, %v790
    %v1355 = vpack.c.b16 %v797, %v791
    %v1356 = vpack.c.b16 %v798, %v792
    %v1357 = vpack.c.b16 %v805, %v799
    %v1358 = vpack.c.b16 %v806, %v800
    %v1359 = vpack.c.b16 %v807, %v801
    %v1360 = vpack.c.b16 %v808, %v802
    %v1361 = vpack.c.b16 %v809, %v803
    %v1362 = vpack.c.b16 %v810, %v804
    %v1363 = vpack.c.b16 %v817, %v811
    %v1364 = vpack.c.b16 %v818, %v812
    %v1365 = vpack.c.b16 %v819, %v813
    %v1366 = vpack.c.b16 %v820, %v814
    %v1367 = vpack.c.b16 %v821, %v815
    %v1368 = vpack.c.b16 %v822, %v816
    %v1369 = vpack.c.b16 %v829, %v823
    %v1370 = vpack.c.b16 %v830, %v824
    %v1371 = vpack.c.b16 %v831, %v825
    %v1372 = vpack.c.b16 %v832, %v826
    %v1373 = vpack.c.b16 %v833, %v827
    %v1374 = vpack.c.b16 %v834, %v828
    %v1375 = vpack.c.b16 %v841, %v835
    %v1376 = vpack.c.b16 %v842, %v836
    %v1377 = vpack.c.b16 %v843, %v837
    %v1378 = vpack.c.b16 %v844, %v838
    %v1379 = vpack.c.b16 %v845, %v839
    %v1380 = vpack.c.b16 %v846, %v840
    %v1381 = vpack.c.b16 %v853, %v847
    %v1382 = vpack.c.b16 %v854, %v848
    %v1383 = vpack.c.b16 %v855, %v849
    %v1384 = vpack.c.b16 %v856, %v850
    %v1385 = vpack.c.b16 %v857, %v851
    %v1386 = vpack.c.b16 %v858, %v852
    %v1387 = vpack.c.b16 %v865, %v859
    %v1388 = vpack.c.b16 %v866, %v860
    %v1389 = vpack.c.b16 %v867, %v861
    %v1390 = vpack.c.b16 %v868, %v862
    %v1391 = vpack.c.b16 %v869, %v863
    %v1392 = vpack.c.b16 %v870, %v864
    %v1393 = vpack.c.b16 %v877, %v871
    %v1394 = vpack.c.b16 %v878, %v872
    %v1395 = vpack.c.b16 %v879, %v873
    %v1396 = vpack.c.b16 %v880, %v874
    %v1397 = vpack.c.b16 %v881, %v875
    %v1398 = vpack.c.b16 %v882, %v876
    %v1399 = vpack.c.b16 %v889, %v883
    %v1400 = vpack.c.b16 %v890, %v884
    %v1401 = vpack.c.b16 %v891, %v885
    %v1402 = vpack.c.b16 %v892, %v886
    %v1403 = vpack.c.b16 %v893, %v887
    %v1404 = vpack.c.b16 %v894, %v888
    %v1405 = vpack.c.b16 %v901, %v895
    %v1406 = vpack.c.b16 %v902, %v896
    %v1407 = vpack.c.b16 %v903, %v897
    %v1408 = vpack.c.b16 %v904, %v898
    %v1409 = vpack.c.b16 %v905, %v899
    %v1410 = vpack.c.b16 %v906, %v900
    %v1411 = vpack.c.b16 %v913, %v907
    %v1412 = vpack.c.b16 %v914, %v908
    %v1413 = vpack.c.b16 %v915, %v909
    %v1414 = vpack.c.b16 %v916, %v910
    %v1415 = vpack.c.b16 %v917, %v911
    %v1416 = vpack.c.b16 %v918, %v912
    %v1417 = vpack.c.b16 %v925, %v919
    %v1418 = vpack.c.b16 %v926, %v920
    %v1419 = vpack.c.b16 %v927, %v921
    %v1420 = vpack.c.b16 %v928, %v922
    %v1421 = vpack.c.b16 %v929, %v923
    %v1422 = vpack.c.b16 %v930, %v924
    %v1423 = vpack.c.b16 %v937, %v931
    %v1424 = vpack.c.b16 %v938, %v932
    %v1425 = vpack.c.b16 %v939, %v933
    %v1426 = vpack.c.b16 %v940, %v934
    %v1427 = vpack.c.b16 %v941, %v935
    %v1428 = vpack.c.b16 %v942, %v936
    %v1429 = vpack.c.b16 %v949, %v943
    %v1430 = vpack.c.b16 %v950, %v944
    %v1431 = vpack.c.b16 %v951, %v945
    %v1432 = vpack.c.b16 %v952, %v946
    %v1433 = vpack.c.b16 %v953, %v947
    %v1434 = vpack.c.b16 %v954, %v948
    %v1435 = vpack.c.b16 %v961, %v955
    %v1436 = vpack.c.b16 %v962, %v956
    %v1437 = vpack.c.b16 %v963, %v957
    %v1438 = vpack.c.b16 %v964, %v958
    %v1439 = vpack.c.b16 %v965, %v959
    %v1440 = vpack.c.b16 %v966, %v960
    %v1441 = vpack.c.b16 %v973, %v967
    %v1442 = vpack.c.b16 %v974, %v968
    %v1443 = vpack.c.b16 %v975, %v969
    %v1444 = vpack.c.b16 %v976, %v970
    %v1445 = vpack.c.b16 %v977, %v971
    %v1446 = vpack.c.b16 %v978, %v972
    %v1447 = vpack.c.b16 %v985, %v979
    %v1448 = vpack.c.b16 %v986, %v980
    %v1449 = vpack.c.b16 %v987, %v981
    %v1450 = vpack.c.b16 %v988, %v982
    %v1451 = vpack.c.b16 %v989, %v983
    %v1452 = vpack.c.b16 %v990, %v984
    %v1453 = vpack.c.b16 %v997, %v991
    %v1454 = vpack.c.b16 %v998, %v992
    %v1455 = vpack.c.b16 %v999, %v993
    %v1456 = vpack.c.b16 %v1000, %v994
    %v1457 = vpack.c.b16 %v1001, %v995
    %v1458 = vpack.c.b16 %v1002, %v996
    %v1459 = vpack.c.b16 %v1009, %v1003
    %v1460 = vpack.c.b16 %v1010, %v1004
    %v1461 = vpack.c.b16 %v1011, %v1005
    %v1462 = vpack.c.b16 %v1012, %v1006
    %v1463 = vpack.c.b16 %v1013, %v1007
    %v1464 = vpack.c.b16 %v1014, %v1008
    %v1465 = vpack.c.b16 %v1021, %v1015
    %v1466 = vpack.c.b16 %v1022, %v1016
    %v1467 = vpack.c.b16 %v1023, %v1017
    %v1468 = vpack.c.b16 %v1024, %v1018
    %v1469 = vpack.c.b16 %v1025, %v1019
    %v1470 = vpack.c.b16 %v1026, %v1020
    %v1471 = vpack.c.b16 %v1033, %v1027
    %v1472 = vpack.c.b16 %v1034, %v1028
    %v1473 = vpack.c.b16 %v1035, %v1029
    %v1474 = vpack.c.b16 %v1036, %v1030
    %v1475 = vpack.c.b16 %v1037, %v1031
    %v1476 = vpack.c.b16 %v1038, %v1032
    %v1477 = vpack.c.b16 %v1045, %v1039
    %v1478 = vpack.c.b16 %v1046, %v1040
    %v1479 = vpack.c.b16 %v1047, %v1041
    %v1480 = vpack.c.b16 %v1048, %v1042
    %v1481 = vpack.c.b16 %v1049, %v1043
    %v1482 = vpack.c.b16 %v1050, %v1044
    %v1483 = vpack.c.b16 %v1057, %v1051
    %v1484 = vpack.c.b16 %v1058, %v1052
    %v1485 = vpack.c.b16 %v1059, %v1053
    %v1486 = vpack.c.b16 %v1060, %v1054
    %v1487 = vpack.c.b16 %v1061, %v1055
    %v1488 = vpack.c.b16 %v1062, %v1056
    %v1489 = vpack.c.b16 %v1069, %v1063
    %v1490 = vpack.c.b16 %v1070, %v1064
    %v1491 = vpack.c.b16 %v1071, %v1065
    %v1492 = vpack.c.b16 %v1072, %v1066
    %v1493 = vpack.c.b16 %v1073, %v1067
    %v1494 = vpack.c.b16 %v1074, %v1068
    %v1495 = vpack.c.b16 %v1081, %v1075
    %v1496 = vpack.c.b16 %v1082, %v1076
    %v1497 = vpack.c.b16 %v1083, %v1077
    %v1498 = vpack.c.b16 %v1084, %v1078
    %v1499 = vpack.c.b16 %v1085, %v1079
    %v1500 = vpack.c.b16 %v1086, %v1080
    %v1501 = vpack.c.b16 %v1093, %v1087
    %v1502 = vpack.c.b16 %v1094, %v1088
    %v1503 = vpack.c.b16 %v1095, %v1089
    %v1504 = vpack.c.b16 %v1096, %v1090
    %v1505 = vpack.c.b16 %v1097, %v1091
    %v1506 = vpack.c.b16 %v1098, %v1092
    %v1507 = vpack.c.b16 %v1105, %v1099
    %v1508 = vpack.c.b16 %v1106, %v1100
    %v1509 = vpack.c.b16 %v1107, %v1101
    %v1510 = vpack.c.b16 %v1108, %v1102
    %v1511 = vpack.c.b16 %v1109, %v1103
    %v1512 = vpack.c.b16 %v1110, %v1104
    %v1513 = vpack.c.b16 %v1117, %v1111
    %v1514 = vpack.c.b16 %v1118, %v1112
    %v1515 = vpack.c.b16 %v1119, %v1113
    %v1516 = vpack.c.b16 %v1120, %v1114
    %v1517 = vpack.c.b16 %v1121, %v1115
    %v1518 = vpack.c.b16 %v1122, %v1116
    %v1519 = vpack.c.b16 %v1129, %v1123
    %v1520 = vpack.c.b16 %v1130, %v1124
    %v1521 = vpack.c.b16 %v1131, %v1125
    %v1522 = vpack.c.b16 %v1132, %v1126
    %v1523 = vpack.c.b16 %v1133, %v1127
    %v1524 = vpack.c.b16 %v1134, %v1128
    %v1525 = vpack.c.b16 %v1141, %v1135
    %v1526 = vpack.c.b16 %v1142, %v1136
    %v1527 = vpack.c.b16 %v1143, %v1137
    %v1528 = vpack.c.b16 %v1144, %v1138
    %v1529 = vpack.c.b16 %v1145, %v1139
    %v1530 = vpack.c.b16 %v1146, %v1140
    %v1531 = vpack.c.b16 %v1153, %v1147
    %v1532 = vpack.c.b16 %v1154, %v1148
    %v1533 = vpack.c.b16 %v1155, %v1149
    %v1534 = vpack.c.b16 %v1156, %v1150
    %v1535 = vpack.c.b16 %v1157, %v1151
    %v1536 = vpack.c.b16 %v1158, %v1152
    %v1537 = vpack.c.b16 %v1165, %v1159
    %v1538 = vpack.c.b16 %v1166, %v1160
    %v1539 = vpack.c.b16 %v1167, %v1161
    %v1540 = vpack.c.b16 %v1168, %v1162
    %v1541 = vpack.c.b16 %v1169, %v1163
    %v1542 = vpack.c.b16 %v1170, %v1164
    %v1543 = vpack.c.b16 %v1177, %v1171
    %v1544 = vpack.c.b16 %v1178, %v1172
    %v1545 = vpack.c.b16 %v1179, %v1173
    %v1546 = vpack.c.b16 %v1180, %v1174
    %v1547 = vpack.c.b16 %v1181, %v1175
    %v1548 = vpack.c.b16 %v1182, %v1176
    %v1549 = vpack.c.b16 %v1189, %v1183
    %v1550 = vpack.c.b16 %v1190, %v1184
    %v1551 = vpack.c.b16 %v1191, %v1185
    %v1552 = vpack.c.b16 %v1192, %v1186
    %v1553 = vpack.c.b16 %v1193, %v1187
    %v1554 = vpack.c.b16 %v1194, %v1188
    %v1555 = vpack.c.b16 %v1201, %v1195
    %v1556 = vpack.c.b16 %v1202, %v1196
    %v1557 = vpack.c.b16 %v1203, %v1197
    %v1558 = vpack.c.b16 %v1204, %v1198
    %v1559 = vpack.c.b16 %v1205, %v1199
    %v1560 = vpack.c.b16 %v1206, %v1200
    %v1561 = vpack.c.b16 %v1213, %v1207
    %v1562 = vpack.c.b16 %v1214, %v1208
    %v1563 = vpack.c.b16 %v1215, %v1209
    %v1564 = vpack.c.b16 %v1216, %v1210
    %v1565 = vpack.c.b16 %v1217, %v1211
    %v1566 = vpack.c.b16 %v1218, %v1212
    %v1567 = vpack.c.b16 %v1225, %v1219
    %v1568 = vpack.c.b16 %v1226, %v1220
    %v1569 = vpack.c.b16 %v1227, %v1221
    %v1570 = vpack.c.b16 %v1228, %v1222
    %v1571 = vpack.c.b16 %v1229, %v1223
    %v1572 = vpack.c.b16 %v1230, %v1224
    %v1573 = vpack.c.b16 %v1237, %v1231
    %v1574 = vpack.c.b16 %v1238, %v1232
    %v1575 = vpack.c.b16 %v1239, %v1233
    %v1576 = vpack.c.b16 %v1240, %v1234
    %v1577 = vpack.c.b16 %v1241, %v1235
    %v1578 = vpack.c.b16 %v1242, %v1236
    %v1579 = vpack.c.b16 %v1249, %v1243
    %v1580 = vpack.c.b16 %v1250, %v1244
    %v1581 = vpack.c.b16 %v1251, %v1245
    %v1582 = vpack.c.b16 %v1252, %v1246
    %v1583 = vpack.c.b16 %v1253, %v1247
    %v1584 = vpack.c.b16 %v1254, %v1248
    %v1585 = vpack.c.b16 %v1261, %v1255
    %v1586 = vpack.c.b16 %v1262, %v1256
    %v1587 = vpack.c.b16 %v1263, %v1257
    %v1588 = vpack.c.b16 %v1264, %v1258
    %v1589 = vpack.c.b16 %v1265, %v1259
    %v1590 = vpack.c.b16 %v1266, %v1260
    %v1591 = vpack.c.b16 %v1273, %v1267
    %v1592 = vpack.c.b16 %v1274, %v1268
    %v1593 = vpack.c.b16 %v1275, %v1269
    %v1594 = vpack.c.b16 %v1276, %v1270
    %v1595 = vpack.c.b16 %v1277, %v1271
    %v1596 = vpack.c.b16 %v1278, %v1272
    %v1597 = vpack.c.b16 %v1285, %v1279
    %v1598 = vpack.c.b16 %v1286, %v1280
    %v1599 = vpack.c.b16 %v1287, %v1281
    %v1600 = vpack.c.b16 %v1288, %v1282
    %v1601 = vpack.c.b16 %v1289, %v1283
    %v1602 = vpack.c.b16 %v1290, %v1284
    %v1603 = vpack.c.b16 %v1297, %v1291
    %v1604 = vpack.c.b16 %v1298, %v1292
    %v1605 = vpack.c.b16 %v1299, %v1293
    %v1606 = vpack.c.b16 %v1300, %v1294
    %v1607 = vpack.c.b16 %v1301, %v1295
    %v1608 = vpack.c.b16 %v1302, %v1296
    %v1609 = vpack.c.b16 %v1309, %v1303
    %v1610 = vpack.c.b16 %v1310, %v1304
    %v1611 = vpack.c.b16 %v1311, %v1305
    %v1612 = vpack.c.b16 %v1312, %v1306
    %v1613 = vpack.c.b16 %v1313, %v1307
    %v1614 = vpack.c.b16 %v1314, %v1308
    %v1615 = vpack.c.b16 %v1321, %v1315
    %v1616 = vpack.c.b16 %v1322, %v1316
    %v1617 = vpack.c.b16 %v1323, %v1317
    %v1618 = vpack.c.b16 %v1324, %v1318
    %v1619 = vpack.c.b16 %v1325, %v1319
    %v1620 = vpack.c.b16 %v1326, %v1320
    %v1621 = vpack.c.b16 %v1333, %v1327
    %v1622 = vpack.c.b16 %v1334, %v1328
    %v1623 = vpack.c.b16 %v1335, %v1329
    %v1624 = vpack.c.b16 %v1336, %v1330
    %v1625 = vpack.c.b16 %v1337, %v1331
    %v1626 = vpack.c.b16 %v1338, %v1332
    %1915 = vmatprep.subr.bf16.mxu0 %v1382
    %1916 = vmatpush1.bf16.msra.mxu0 %v1381
    %1917 = vmatprep.subr.bf16.mxu0 %v1376
    %1918 = vmatpush1.bf16.msra.mxu0 %v1375
    %1919 = vmatprep.subr.bf16.mxu0 %v1370
    %1920 = vmatpush1.bf16.msra.mxu0 %v1369
    %1921 = vmatprep.subr.bf16.mxu0 %v1364
    %1922 = vmatpush1.bf16.msra.mxu0 %v1363
    %1923 = vmatprep.subr.bf16.mxu0 %v1358
    %1924 = vmatpush1.bf16.msra.mxu0 %v1357
    %1925 = vmatprep.subr.bf16.mxu0 %v1352
    %1926 = vmatpush1.bf16.msra.mxu0 %v1351
    %1927 = vmatprep.subr.bf16.mxu0 %v1346
    %1928 = vmatpush1.bf16.msra.mxu0 %v1345
    %1929 = vmatprep.subr.bf16.mxu0 %v1340
    %1930 = vmatpush1.bf16.msra.mxu0 %v1339
    %1931 = vmatprep.subr.bf16.mxu0 %v1430
    %1932 = vmatpush2.bf16.msra.mxu0 %v1429
    %1933 = vmatprep.subr.bf16.mxu0 %v1424
    %1934 = vmatpush2.bf16.msra.mxu0 %v1423
    %1935 = vmatprep.subr.bf16.mxu0 %v1418
    %1936 = vmatpush2.bf16.msra.mxu0 %v1417
    %1937 = vmatprep.subr.bf16.mxu0 %v1412
    %1938 = vmatpush2.bf16.msra.mxu0 %v1411
    %1939 = vmatprep.subr.bf16.mxu0 %v1406
    %1940 = vmatpush2.bf16.msra.mxu0 %v1405
    %1941 = vmatprep.subr.bf16.mxu0 %v1400
    %1942 = vmatpush2.bf16.msra.mxu0 %v1399
    %1943 = vmatprep.subr.bf16.mxu0 %v1394
    %1944 = vmatpush2.bf16.msra.mxu0 %v1393
    %1945 = vmatprep.subr.bf16.mxu0 %v1388
    %1946 = vmatpush2.bf16.msra.mxu0 %v1387
    %1947 = vmatprep.mubr.bf16.mxu0 %v464
    %1948 = vmatmul.mubr.bf16.gmra.mxu0 %v463
    %v1949 = vpop.f32.mrf.mxu0
    %v1950 = vadd.f32 %v418, %v1949
    %v1951 = vpop.f32.mrf.mxu0
    %v1952 = vadd.f32 %v422, %v1951
    %v1953 = vpop.f32.mrf.mxu0
    %v1954 = vadd.f32 %v418, %v1953
    %v1955 = vpop.f32.mrf.mxu0
    %v1956 = vadd.f32 %v422, %v1955
    %1957 = vdwg.mxu0
    %1958 = vmatprep.subr.bf16.mxu0 %v1478
    %1959 = vmatpush1.bf16.msra.mxu0 %v1477
    %1960 = vmatprep.subr.bf16.mxu0 %v1472
    %1961 = vmatpush1.bf16.msra.mxu0 %v1471
    %1962 = vmatprep.subr.bf16.mxu0 %v1466
    %1963 = vmatpush1.bf16.msra.mxu0 %v1465
    %1964 = vmatprep.subr.bf16.mxu0 %v1460
    %1965 = vmatpush1.bf16.msra.mxu0 %v1459
    %1966 = vmatprep.subr.bf16.mxu0 %v1454
    %1967 = vmatpush1.bf16.msra.mxu0 %v1453
    %1968 = vmatprep.subr.bf16.mxu0 %v1448
    %1969 = vmatpush1.bf16.msra.mxu0 %v1447
    %1970 = vmatprep.subr.bf16.mxu0 %v1442
    %1971 = vmatpush1.bf16.msra.mxu0 %v1441
    %1972 = vmatprep.subr.bf16.mxu0 %v1436
    %1973 = vmatpush1.bf16.msra.mxu0 %v1435
    %1974 = vmatprep.subr.bf16.mxu0 %v1526
    %1975 = vmatpush2.bf16.msra.mxu0 %v1525
    %1976 = vmatprep.subr.bf16.mxu0 %v1520
    %1977 = vmatpush2.bf16.msra.mxu0 %v1519
    %1978 = vmatprep.subr.bf16.mxu0 %v1514
    %1979 = vmatpush2.bf16.msra.mxu0 %v1513
    %1980 = vmatprep.subr.bf16.mxu0 %v1508
    %1981 = vmatpush2.bf16.msra.mxu0 %v1507
    %1982 = vmatprep.subr.bf16.mxu0 %v1502
    %1983 = vmatpush2.bf16.msra.mxu0 %v1501
    %1984 = vmatprep.subr.bf16.mxu0 %v1496
    %1985 = vmatpush2.bf16.msra.mxu0 %v1495
    %1986 = vmatprep.subr.bf16.mxu0 %v1490
    %1987 = vmatpush2.bf16.msra.mxu0 %v1489
    %1988 = vmatprep.subr.bf16.mxu0 %v1484
    %1989 = vmatpush2.bf16.msra.mxu0 %v1483
    %1990 = vmatprep.mubr.bf16.mxu0 %v466
    %1991 = vmatmul.mubr.bf16.gmra.mxu0 %v465
    %v1992 = vpop.f32.mrf.mxu0
    %v1993 = vadd.f32 %v1950, %v1992
    %v1994 = vpop.f32.mrf.mxu0
    %v1995 = vadd.f32 %v1952, %v1994
    %v1996 = vpop.f32.mrf.mxu0
    %v1997 = vadd.f32 %v1954, %v1996
    %v1998 = vpop.f32.mrf.mxu0
    %v1999 = vadd.f32 %v1956, %v1998
    %2000 = vdwg.mxu0
    %2001 = vmatprep.subr.bf16.mxu0 %v1574
    %2002 = vmatpush1.bf16.msra.mxu0 %v1573
    %2003 = vmatprep.subr.bf16.mxu0 %v1568
    %2004 = vmatpush1.bf16.msra.mxu0 %v1567
    %2005 = vmatprep.subr.bf16.mxu0 %v1562
    %2006 = vmatpush1.bf16.msra.mxu0 %v1561
    %2007 = vmatprep.subr.bf16.mxu0 %v1556
    %2008 = vmatpush1.bf16.msra.mxu0 %v1555
    %2009 = vmatprep.subr.bf16.mxu0 %v1550
    %2010 = vmatpush1.bf16.msra.mxu0 %v1549
    %2011 = vmatprep.subr.bf16.mxu0 %v1544
    %2012 = vmatpush1.bf16.msra.mxu0 %v1543
    %2013 = vmatprep.subr.bf16.mxu0 %v1538
    %2014 = vmatpush1.bf16.msra.mxu0 %v1537
    %2015 = vmatprep.subr.bf16.mxu0 %v1532
    %2016 = vmatpush1.bf16.msra.mxu0 %v1531
    %2017 = vmatprep.subr.bf16.mxu0 %v1622
    %2018 = vmatpush2.bf16.msra.mxu0 %v1621
    %2019 = vmatprep.subr.bf16.mxu0 %v1616
    %2020 = vmatpush2.bf16.msra.mxu0 %v1615
    %2021 = vmatprep.subr.bf16.mxu0 %v1610
    %2022 = vmatpush2.bf16.msra.mxu0 %v1609
    %2023 = vmatprep.subr.bf16.mxu0 %v1604
    %2024 = vmatpush2.bf16.msra.mxu0 %v1603
    %2025 = vmatprep.subr.bf16.mxu0 %v1598
    %2026 = vmatpush2.bf16.msra.mxu0 %v1597
    %2027 = vmatprep.subr.bf16.mxu0 %v1592
    %2028 = vmatpush2.bf16.msra.mxu0 %v1591
    %2029 = vmatprep.subr.bf16.mxu0 %v1586
    %2030 = vmatpush2.bf16.msra.mxu0 %v1585
    %2031 = vmatprep.subr.bf16.mxu0 %v1580
    %2032 = vmatpush2.bf16.msra.mxu0 %v1579
    %2033 = vmatprep.mubr.bf16.mxu0 %v468
    %2034 = vmatmul.mubr.bf16.gmra.mxu0 %v467
    %v2035 = vpop.f32.mrf.mxu0
    %v2036 = vadd.f32 %v1993, %v2035
    %v2037 = vpop.f32.mrf.mxu0
    %v2038 = vadd.f32 %v1995, %v2037
    %v2039 = vpop.f32.mrf.mxu0
    %v2040 = vadd.f32 %v1997, %v2039
    %v2041 = vpop.f32.mrf.mxu0
    %v2042 = vadd.f32 %v1999, %v2041
    %2043 = vdwg.mxu0
    %2044 = vmatprep.subr.bf16.mxu0 %v1384
    %2045 = vmatpush1.bf16.msra.mxu0 %v1383
    %2046 = vmatprep.subr.bf16.mxu0 %v1378
    %2047 = vmatpush1.bf16.msra.mxu0 %v1377
    %2048 = vmatprep.subr.bf16.mxu0 %v1372
    %2049 = vmatpush1.bf16.msra.mxu0 %v1371
    %2050 = vmatprep.subr.bf16.mxu0 %v1366
    %2051 = vmatpush1.bf16.msra.mxu0 %v1365
    %2052 = vmatprep.subr.bf16.mxu0 %v1360
    %2053 = vmatpush1.bf16.msra.mxu0 %v1359
    %2054 = vmatprep.subr.bf16.mxu0 %v1354
    %2055 = vmatpush1.bf16.msra.mxu0 %v1353
    %2056 = vmatprep.subr.bf16.mxu0 %v1348
    %2057 = vmatpush1.bf16.msra.mxu0 %v1347
    %2058 = vmatprep.subr.bf16.mxu0 %v1342
    %2059 = vmatpush1.bf16.msra.mxu0 %v1341
    %2060 = vmatprep.subr.bf16.mxu0 %v1432
    %2061 = vmatpush2.bf16.msra.mxu0 %v1431
    %2062 = vmatprep.subr.bf16.mxu0 %v1426
    %2063 = vmatpush2.bf16.msra.mxu0 %v1425
    %2064 = vmatprep.subr.bf16.mxu0 %v1420
    %2065 = vmatpush2.bf16.msra.mxu0 %v1419
    %2066 = vmatprep.subr.bf16.mxu0 %v1414
    %2067 = vmatpush2.bf16.msra.mxu0 %v1413
    %2068 = vmatprep.subr.bf16.mxu0 %v1408
    %2069 = vmatpush2.bf16.msra.mxu0 %v1407
    %2070 = vmatprep.subr.bf16.mxu0 %v1402
    %2071 = vmatpush2.bf16.msra.mxu0 %v1401
    %2072 = vmatprep.subr.bf16.mxu0 %v1396
    %2073 = vmatpush2.bf16.msra.mxu0 %v1395
    %2074 = vmatprep.subr.bf16.mxu0 %v1390
    %2075 = vmatpush2.bf16.msra.mxu0 %v1389
    %2076 = vmatprep.mubr.bf16.mxu0 %v464
    %2077 = vmatmul.mubr.bf16.gmra.mxu0 %v463
    %v2078 = vpop.f32.mrf.mxu0
    %v2079 = vadd.f32 %v426, %v2078
    %v2080 = vpop.f32.mrf.mxu0
    %v2081 = vadd.f32 %v430, %v2080
    %v2082 = vpop.f32.mrf.mxu0
    %v2083 = vadd.f32 %v426, %v2082
    %v2084 = vpop.f32.mrf.mxu0
    %v2085 = vadd.f32 %v430, %v2084
    %2086 = vdwg.mxu0
    %2087 = vmatprep.subr.bf16.mxu0 %v1480
    %2088 = vmatpush1.bf16.msra.mxu0 %v1479
    %2089 = vmatprep.subr.bf16.mxu0 %v1474
    %2090 = vmatpush1.bf16.msra.mxu0 %v1473
    %2091 = vmatprep.subr.bf16.mxu0 %v1468
    %2092 = vmatpush1.bf16.msra.mxu0 %v1467
    %2093 = vmatprep.subr.bf16.mxu0 %v1462
    %2094 = vmatpush1.bf16.msra.mxu0 %v1461
    %2095 = vmatprep.subr.bf16.mxu0 %v1456
    %2096 = vmatpush1.bf16.msra.mxu0 %v1455
    %2097 = vmatprep.subr.bf16.mxu0 %v1450
    %2098 = vmatpush1.bf16.msra.mxu0 %v1449
    %2099 = vmatprep.subr.bf16.mxu0 %v1444
    %2100 = vmatpush1.bf16.msra.mxu0 %v1443
    %2101 = vmatprep.subr.bf16.mxu0 %v1438
    %2102 = vmatpush1.bf16.msra.mxu0 %v1437
    %2103 = vmatprep.subr.bf16.mxu0 %v1528
    %2104 = vmatpush2.bf16.msra.mxu0 %v1527
    %2105 = vmatprep.subr.bf16.mxu0 %v1522
    %2106 = vmatpush2.bf16.msra.mxu0 %v1521
    %2107 = vmatprep.subr.bf16.mxu0 %v1516
    %2108 = vmatpush2.bf16.msra.mxu0 %v1515
    %2109 = vmatprep.subr.bf16.mxu0 %v1510
    %2110 = vmatpush2.bf16.msra.mxu0 %v1509
    %2111 = vmatprep.subr.bf16.mxu0 %v1504
    %2112 = vmatpush2.bf16.msra.mxu0 %v1503
    %2113 = vmatprep.subr.bf16.mxu0 %v1498
    %2114 = vmatpush2.bf16.msra.mxu0 %v1497
    %2115 = vmatprep.subr.bf16.mxu0 %v1492
    %2116 = vmatpush2.bf16.msra.mxu0 %v1491
    %2117 = vmatprep.subr.bf16.mxu0 %v1486
    %2118 = vmatpush2.bf16.msra.mxu0 %v1485
    %2119 = vmatprep.mubr.bf16.mxu0 %v466
    %2120 = vmatmul.mubr.bf16.gmra.mxu0 %v465
    %v2121 = vpop.f32.mrf.mxu0
    %v2122 = vadd.f32 %v2079, %v2121
    %v2123 = vpop.f32.mrf.mxu0
    %v2124 = vadd.f32 %v2081, %v2123
    %v2125 = vpop.f32.mrf.mxu0
    %v2126 = vadd.f32 %v2083, %v2125
    %v2127 = vpop.f32.mrf.mxu0
    %v2128 = vadd.f32 %v2085, %v2127
    %2129 = vdwg.mxu0
    %2130 = vmatprep.subr.bf16.mxu0 %v1576
    %2131 = vmatpush1.bf16.msra.mxu0 %v1575
    %2132 = vmatprep.subr.bf16.mxu0 %v1570
    %2133 = vmatpush1.bf16.msra.mxu0 %v1569
    %2134 = vmatprep.subr.bf16.mxu0 %v1564
    %2135 = vmatpush1.bf16.msra.mxu0 %v1563
    %2136 = vmatprep.subr.bf16.mxu0 %v1558
    %2137 = vmatpush1.bf16.msra.mxu0 %v1557
    %2138 = vmatprep.subr.bf16.mxu0 %v1552
    %2139 = vmatpush1.bf16.msra.mxu0 %v1551
    %2140 = vmatprep.subr.bf16.mxu0 %v1546
    %2141 = vmatpush1.bf16.msra.mxu0 %v1545
    %2142 = vmatprep.subr.bf16.mxu0 %v1540
    %2143 = vmatpush1.bf16.msra.mxu0 %v1539
    %2144 = vmatprep.subr.bf16.mxu0 %v1534
    %2145 = vmatpush1.bf16.msra.mxu0 %v1533
    %2146 = vmatprep.subr.bf16.mxu0 %v1624
    %2147 = vmatpush2.bf16.msra.mxu0 %v1623
    %2148 = vmatprep.subr.bf16.mxu0 %v1618
    %2149 = vmatpush2.bf16.msra.mxu0 %v1617
    %2150 = vmatprep.subr.bf16.mxu0 %v1612
    %2151 = vmatpush2.bf16.msra.mxu0 %v1611
    %2152 = vmatprep.subr.bf16.mxu0 %v1606
    %2153 = vmatpush2.bf16.msra.mxu0 %v1605
    %2154 = vmatprep.subr.bf16.mxu0 %v1600
    %2155 = vmatpush2.bf16.msra.mxu0 %v1599
    %2156 = vmatprep.subr.bf16.mxu0 %v1594
    %2157 = vmatpush2.bf16.msra.mxu0 %v1593
    %2158 = vmatprep.subr.bf16.mxu0 %v1588
    %2159 = vmatpush2.bf16.msra.mxu0 %v1587
    %2160 = vmatprep.subr.bf16.mxu0 %v1582
    %2161 = vmatpush2.bf16.msra.mxu0 %v1581
    %2162 = vmatprep.mubr.bf16.mxu0 %v468
    %2163 = vmatmul.mubr.bf16.gmra.mxu0 %v467
    %v2164 = vpop.f32.mrf.mxu0
    %v2165 = vadd.f32 %v2122, %v2164
    %v2166 = vpop.f32.mrf.mxu0
    %v2167 = vadd.f32 %v2124, %v2166
    %v2168 = vpop.f32.mrf.mxu0
    %v2169 = vadd.f32 %v2126, %v2168
    %v2170 = vpop.f32.mrf.mxu0
    %v2171 = vadd.f32 %v2128, %v2170
    %2172 = vdwg.mxu0
    %2173 = vmatprep.subr.bf16.mxu0 %v1386
    %2174 = vmatpush1.bf16.msra.mxu0 %v1385
    %2175 = vmatprep.subr.bf16.mxu0 %v1380
    %2176 = vmatpush1.bf16.msra.mxu0 %v1379
    %2177 = vmatprep.subr.bf16.mxu0 %v1374
    %2178 = vmatpush1.bf16.msra.mxu0 %v1373
    %2179 = vmatprep.subr.bf16.mxu0 %v1368
    %2180 = vmatpush1.bf16.msra.mxu0 %v1367
    %2181 = vmatprep.subr.bf16.mxu0 %v1362
    %2182 = vmatpush1.bf16.msra.mxu0 %v1361
    %2183 = vmatprep.subr.bf16.mxu0 %v1356
    %2184 = vmatpush1.bf16.msra.mxu0 %v1355
    %2185 = vmatprep.subr.bf16.mxu0 %v1350
    %2186 = vmatpush1.bf16.msra.mxu0 %v1349
    %2187 = vmatprep.subr.bf16.mxu0 %v1344
    %2188 = vmatpush1.bf16.msra.mxu0 %v1343
    %2189 = vmatprep.subr.bf16.mxu0 %v1434
    %2190 = vmatpush2.bf16.msra.mxu0 %v1433
    %2191 = vmatprep.subr.bf16.mxu0 %v1428
    %2192 = vmatpush2.bf16.msra.mxu0 %v1427
    %2193 = vmatprep.subr.bf16.mxu0 %v1422
    %2194 = vmatpush2.bf16.msra.mxu0 %v1421
    %2195 = vmatprep.subr.bf16.mxu0 %v1416
    %2196 = vmatpush2.bf16.msra.mxu0 %v1415
    %2197 = vmatprep.subr.bf16.mxu0 %v1410
    %2198 = vmatpush2.bf16.msra.mxu0 %v1409
    %2199 = vmatprep.subr.bf16.mxu0 %v1404
    %2200 = vmatpush2.bf16.msra.mxu0 %v1403
    %2201 = vmatprep.subr.bf16.mxu0 %v1398
    %2202 = vmatpush2.bf16.msra.mxu0 %v1397
    %2203 = vmatprep.subr.bf16.mxu0 %v1392
    %2204 = vmatpush2.bf16.msra.mxu0 %v1391
    %2205 = vmatprep.mubr.bf16.mxu0 %v464
    %2206 = vmatmul.mubr.bf16.gmra.mxu0 %v463
    %v2207 = vpop.f32.mrf.mxu0
    %v2208 = vadd.f32 %v434, %v2207
    %v2209 = vpop.f32.mrf.mxu0
    %v2210 = vadd.f32 %v438, %v2209
    %v2211 = vpop.f32.mrf.mxu0
    %v2212 = vadd.f32 %v434, %v2211
    %v2213 = vpop.f32.mrf.mxu0
    %v2214 = vadd.f32 %v438, %v2213
    %2215 = vdwg.mxu0
    %2216 = vmatprep.subr.bf16.mxu0 %v1482
    %2217 = vmatpush1.bf16.msra.mxu0 %v1481
    %2218 = vmatprep.subr.bf16.mxu0 %v1476
    %2219 = vmatpush1.bf16.msra.mxu0 %v1475
    %2220 = vmatprep.subr.bf16.mxu0 %v1470
    %2221 = vmatpush1.bf16.msra.mxu0 %v1469
    %2222 = vmatprep.subr.bf16.mxu0 %v1464
    %2223 = vmatpush1.bf16.msra.mxu0 %v1463
    %2224 = vmatprep.subr.bf16.mxu0 %v1458
    %2225 = vmatpush1.bf16.msra.mxu0 %v1457
    %2226 = vmatprep.subr.bf16.mxu0 %v1452
    %2227 = vmatpush1.bf16.msra.mxu0 %v1451
    %2228 = vmatprep.subr.bf16.mxu0 %v1446
    %2229 = vmatpush1.bf16.msra.mxu0 %v1445
    %2230 = vmatprep.subr.bf16.mxu0 %v1440
    %2231 = vmatpush1.bf16.msra.mxu0 %v1439
    %2232 = vmatprep.subr.bf16.mxu0 %v1530
    %2233 = vmatpush2.bf16.msra.mxu0 %v1529
    %2234 = vmatprep.subr.bf16.mxu0 %v1524
    %2235 = vmatpush2.bf16.msra.mxu0 %v1523
    %2236 = vmatprep.subr.bf16.mxu0 %v1518
    %2237 = vmatpush2.bf16.msra.mxu0 %v1517
    %2238 = vmatprep.subr.bf16.mxu0 %v1512
    %2239 = vmatpush2.bf16.msra.mxu0 %v1511
    %2240 = vmatprep.subr.bf16.mxu0 %v1506
    %2241 = vmatpush2.bf16.msra.mxu0 %v1505
    %2242 = vmatprep.subr.bf16.mxu0 %v1500
    %2243 = vmatpush2.bf16.msra.mxu0 %v1499
    %2244 = vmatprep.subr.bf16.mxu0 %v1494
    %2245 = vmatpush2.bf16.msra.mxu0 %v1493
    %2246 = vmatprep.subr.bf16.mxu0 %v1488
    %2247 = vmatpush2.bf16.msra.mxu0 %v1487
    %2248 = vmatprep.mubr.bf16.mxu0 %v466
    %2249 = vmatmul.mubr.bf16.gmra.mxu0 %v465
    %v2250 = vpop.f32.mrf.mxu0
    %v2251 = vadd.f32 %v2208, %v2250
    %v2252 = vpop.f32.mrf.mxu0
    %v2253 = vadd.f32 %v2210, %v2252
    %v2254 = vpop.f32.mrf.mxu0
    %v2255 = vadd.f32 %v2212, %v2254
    %v2256 = vpop.f32.mrf.mxu0
    %v2257 = vadd.f32 %v2214, %v2256
    %2258 = vdwg.mxu0
    %2259 = vmatprep.subr.bf16.mxu0 %v1578
    %2260 = vmatpush1.bf16.msra.mxu0 %v1577
    %2261 = vmatprep.subr.bf16.mxu0 %v1572
    %2262 = vmatpush1.bf16.msra.mxu0 %v1571
    %2263 = vmatprep.subr.bf16.mxu0 %v1566
    %2264 = vmatpush1.bf16.msra.mxu0 %v1565
    %2265 = vmatprep.subr.bf16.mxu0 %v1560
    %2266 = vmatpush1.bf16.msra.mxu0 %v1559
    %2267 = vmatprep.subr.bf16.mxu0 %v1554
    %2268 = vmatpush1.bf16.msra.mxu0 %v1553
    %2269 = vmatprep.subr.bf16.mxu0 %v1548
    %2270 = vmatpush1.bf16.msra.mxu0 %v1547
    %2271 = vmatprep.subr.bf16.mxu0 %v1542
    %2272 = vmatpush1.bf16.msra.mxu0 %v1541
    %2273 = vmatprep.subr.bf16.mxu0 %v1536
    %2274 = vmatpush1.bf16.msra.mxu0 %v1535
    %2275 = vmatprep.subr.bf16.mxu0 %v1626
    %2276 = vmatpush2.bf16.msra.mxu0 %v1625
    %2277 = vmatprep.subr.bf16.mxu0 %v1620
    %2278 = vmatpush2.bf16.msra.mxu0 %v1619
    %2279 = vmatprep.subr.bf16.mxu0 %v1614
    %2280 = vmatpush2.bf16.msra.mxu0 %v1613
    %2281 = vmatprep.subr.bf16.mxu0 %v1608
    %2282 = vmatpush2.bf16.msra.mxu0 %v1607
    %2283 = vmatprep.subr.bf16.mxu0 %v1602
    %2284 = vmatpush2.bf16.msra.mxu0 %v1601
    %2285 = vmatprep.subr.bf16.mxu0 %v1596
    %2286 = vmatpush2.bf16.msra.mxu0 %v1595
    %2287 = vmatprep.subr.bf16.mxu0 %v1590
    %2288 = vmatpush2.bf16.msra.mxu0 %v1589
    %2289 = vmatprep.subr.bf16.mxu0 %v1584
    %2290 = vmatpush2.bf16.msra.mxu0 %v1583
    %2291 = vmatprep.mubr.bf16.mxu0 %v468
    %2292 = vmatmul.mubr.bf16.gmra.mxu0 %v467
    %v2293 = vpop.f32.mrf.mxu0
    %v2294 = vadd.f32 %v2251, %v2293
    %v2295 = vpop.f32.mrf.mxu0
    %v2296 = vadd.f32 %v2253, %v2295
    %v2297 = vpop.f32.mrf.mxu0
    %v2298 = vadd.f32 %v2255, %v2297
    %v2299 = vpop.f32.mrf.mxu0
    %v2300 = vadd.f32 %v2257, %v2299
    %2301 = vdwg.mxu0
    %v2302 = vmul.f32 %v2036, %v401
    %v2303 = vmul.f32 %v2038, %v402
    %v2304 = vmul.f32 %v2165, %v403
    %v2305 = vmul.f32 %v2167, %v404
    %v2306 = vmul.f32 %v2294, %v405
    %v2307 = vmul.f32 %v2296, %v406
    %v2308 = vmul.f32 %v2040, %v407
    %v2309 = vmul.f32 %v2042, %v408
    %v2310 = vmul.f32 %v2169, %v409
    %v2311 = vmul.f32 %v2171, %v410
    %v2312 = vmul.f32 %v2298, %v411
    %v2313 = vmul.f32 %v2300, %v412
    %v2314 = vld [vmem:[#allocation8] sm:$0x3f]
    %v2316 = vlaneseq
    %v2317 = vshrl.u32 %v2316, 7
    %v2318 = vsub.s32 0, %v2317
    %v2319 = vrot.slane %v2314, %v2318
    %v2320 = vlaneseq
    %v2321 = vshrl.u32 %v2320, 7
    %v2322 = vsub.s32 1, %v2321
    %v2323 = vrot.slane %v2314, %v2322
    %v2324 = vlaneseq
    %v2325 = vshrl.u32 %v2324, 7
    %v2326 = vsub.s32 2, %v2325
    %v2327 = vrot.slane %v2314, %v2326
    %v2328 = vlaneseq
    %v2329 = vshrl.u32 %v2328, 7
    %v2330 = vsub.s32 3, %v2329
    %v2331 = vrot.slane %v2314, %v2330
    %v2332 = vlaneseq
    %v2333 = vshrl.u32 %v2332, 7
    %v2334 = vsub.s32 4, %v2333
    %v2335 = vrot.slane %v2314, %v2334
    %v2336 = vlaneseq
    %v2337 = vshrl.u32 %v2336, 7
    %v2338 = vsub.s32 5, %v2337
    %v2339 = vrot.slane %v2314, %v2338
    %v2346 = vmul.f32 %v389, %v2319
    %v2347 = vmul.f32 %v390, %v2323
    %v2348 = vmul.f32 %v391, %v2327
    %v2349 = vmul.f32 %v392, %v2331
    %v2350 = vmul.f32 %v393, %v2335
    %v2351 = vmul.f32 %v394, %v2339
    %v2352 = vmul.f32 %v395, %v2319
    %v2353 = vmul.f32 %v396, %v2323
    %v2354 = vmul.f32 %v397, %v2327
    %v2355 = vmul.f32 %v398, %v2331
    %v2356 = vmul.f32 %v399, %v2335
    %v2357 = vmul.f32 %v400, %v2339
    %v2358 = vadd.f32 %v2302, %v2346
    %v2359 = vadd.f32 %v2303, %v2347
    %v2360 = vadd.f32 %v2304, %v2348
    %v2361 = vadd.f32 %v2305, %v2349
    %v2362 = vadd.f32 %v2306, %v2350
    %v2363 = vadd.f32 %v2307, %v2351
    %v2364 = vadd.f32 %v2308, %v2352
    %v2365 = vadd.f32 %v2309, %v2353
    %v2366 = vadd.f32 %v2310, %v2354
    %v2367 = vadd.f32 %v2311, %v2355
    %v2368 = vadd.f32 %v2312, %v2356
    %v2369 = vadd.f32 %v2313, %v2357
    %v2370 = vadd.f32 %v2358, %v2359
    %v2371 = vadd.f32 %v2370, %v2360
    %v2372 = vadd.f32 %v2371, %v2361
    %v2373 = vadd.f32 %v2372, %v2362
    %v2374 = vadd.f32 %v2373, %v2363
    %2375 = vadd.xlane.f32.xlu0 %v2374
    %v2376 = vpop.xlane.xlu0 %2375
    %v2377 = vadd.f32 %v2364, %v2365
    %v2378 = vadd.f32 %v2377, %v2366
    %v2379 = vadd.f32 %v2378, %v2367
    %v2380 = vadd.f32 %v2379, %v2368
    %v2381 = vadd.f32 %v2380, %v2369
    %2382 = vadd.xlane.f32.xlu0 %v2381
    %v2383 = vpop.xlane.xlu0 %2382
    %v2384 = vld [vmem:[#allocation2] sm:$0x1]
    %v2386 = vlaneseq
    %v2387 = vshrl.u32 %v2386, 7
    %v2388 = vsub.s32 0, %v2387
    %v2389 = vrot.slane %v2384, %v2388
    %v2391 = vadd.f32 %v2376, %v2389
    %v2392 = vadd.f32 %v2383, %v2389
    %v2393 = vmax.f32 %v2391, 0.0
    %v2394 = vmax.f32 %v2392, 0.0
    %vm2395 = vcmask 7168
    %2396 = vst.msk [vmem:[%s6] sm:$0xff] %vm2395, %v2393
    %2397 = vst.msk [vmem:[%s6 + $0x8] sm:$0xff] %vm2395, %v2394
    // Predicated region
    $region46: #{tpu_custom_call.1} parent=1 // pred_check
      _
    $region47: #{tpu_custom_call.1} parent=1 // pred_check_branch
      %2399 = sbr.rel (0) target = $region49
    $region48: #{tpu_custom_call.1} parent=1 // pred_region
      _
    $region49: #{tpu_custom_call.1} parent=1 // pred_fallthru
      _
    // Predicated region
    $region50: #{tpu_custom_call.1} parent=1 // pred_check
      _
    $region51: #{tpu_custom_call.1} parent=1 // pred_check_branch
      %2401 = sbr.rel (0) target = $region53
    $region52: #{tpu_custom_call.1} parent=1 // pred_region
      _
    $region53: #{tpu_custom_call.1} parent=1 // pred_fallthru
      _
    %2402 = vsyncpa [#allocation4], 1
    %2403 = vsyncpa [#allocation6], 1
    %2404 = vsyncpa [#allocation9], 1

// kernel: tpu_custom_call.1
$region0: #{tpu_custom_call.1}
  #allocation0 [shape = 'u32[]', space=smem, size = 0x4, offset = 0x4, fixed_abs, tag = 'smem constant byte address 0x4 - core index']
  #allocation1 [shape = 'u32[144,128]{1,0:T(1,128)}', space=vmem, size = 0x12000, scoped, tag = 'internal scratch']
  #allocation2 [shape = 'f32[1,1]{1,0:T(1,128)S(1)}', space=vmem, size = 0x200, scoped, tag = 'scoped memory for tpu_custom_call.1']
  %s0 = inlined_call_operand.hbm [shape: bf16[16,768], index: 0, kind: input, shape index: {}]
  %s1 = inlined_call_operand.hbm [shape: bf16[16,768], index: 1, kind: input, shape index: {}]
  %s2 = inlined_call_operand.hbm [shape: bf16[768,768], index: 2, kind: input, shape index: {}]
  %s3 = inlined_call_operand.hbm [shape: f32[1,768], index: 3, kind: input, shape index: {}]
  %s4 = inlined_call_operand.hbm [shape: f32[1,768], index: 4, kind: input, shape index: {}]
  %s5 = inlined_call_operand.<no memory space> [shape: f32[1,1], index: 5, kind: input, shape index: {}]
  %s6 = inlined_call_operand.vmem [shape: f32[16,1], index: 6, kind: output, shape index: {}]
  %s7 = sld [smem:[#allocation0]]
  $region54: #{tpu_custom_call.1} parent=0
    _
  %s9 = ssub.s32 1, %s7
  %s10 = scalar_select 0, %s9, %s7
  %v11 = vstv %s5
  %12 = vst [vmem:[#allocation2] sm:$0x1] %v11
  $region1: #{tpu_custom_call.1} parent=0
    #allocation3 [shape = 'u8[24576]{0}', space=vmem, size = 0x6000, scoped, tag = 'input window, operand 0, single buffered']
    #allocation4 [shape = 's32[1]{0}', space=sflag, size = 0x4, scoped, tag = 'scoped memory for tpu_custom_call.1']
    #allocation5 [shape = 'u8[24576]{0}', space=vmem, size = 0x6000, scoped, tag = 'input window, operand 1, single buffered']
    #allocation6 [shape = 's32[1]{0}', space=sflag, size = 0x4, scoped, tag = 'scoped memory for tpu_custom_call.1']
    #allocation7 [shape = 'u8[1179648]{0}', space=vmem, size = 0x120000, scoped, tag = 'input window, operand 2, single buffered']
    #allocation8 [shape = 'u8[3072]{0}', space=vmem, size = 0xc00, scoped, tag = 'input window, operand 3, single buffered']
    #allocation9 [shape = 's32[1]{0}', space=sflag, size = 0x4, scoped, tag = 'scoped memory for tpu_custom_call.1']
    #allocation10 [shape = 'u8[3072]{0}', space=vmem, size = 0xc00, scoped, tag = 'input window, operand 4, single buffered']
    %13 = vsyncpa [#allocation4], 0
    %14 = vsyncpa [#allocation6], 0
    %15 = vsyncpa [#allocation9], 0
    // Predicated region
    $region2: #{tpu_custom_call.1} parent=1 // pred_check
      _
    $region3: #{tpu_custom_call.1} parent=1 // pred_check_branch
      %17 = sbr.rel (0) target = $region5
    $region4: #{tpu_custom_call.1} parent=1 // pred_region
      %s19 = ssub.s32 768, 768
      %20 = vsyncadd [#allocation4], %s19
      %s21 = sshll.u32 [#allocation3], 4
      %s22 = int_to_ptr.vmem [resolvable:$true] %s21
      %27 = dma.hbm_to_vmem [thread:$0]  %s0, 768, %s22, [#allocation4], 384, 384, 24
    $region5: #{tpu_custom_call.1} parent=1 // pred_fallthru
      _
    // Predicated region
    $region6: #{tpu_custom_call.1} parent=1 // pred_check
      _
    $region7: #{tpu_custom_call.1} parent=1 // pred_check_branch
      %29 = sbr.rel (0) target = $region9
    $region8: #{tpu_custom_call.1} parent=1 // pred_region
      %s31 = ssub.s32 768, 768
      %32 = vsyncadd [#allocation6], %s31
      %s33 = sshll.u32 [#allocation5], 4
      %s34 = int_to_ptr.vmem [resolvable:$true] %s33
      %39 = dma.hbm_to_vmem [thread:$0]  %s1, 768, %s34, [#allocation6], 384, 384, 24
    $region9: #{tpu_custom_call.1} parent=1 // pred_fallthru
      _
    // Predicated region
    $region10: #{tpu_custom_call.1} parent=1 // pred_check
      _
    $region11: #{tpu_custom_call.1} parent=1 // pred_check_branch
      %41 = sbr.rel (0) target = $region13
    $region12: #{tpu_custom_call.1} parent=1 // pred_region
      %s43 = ssub.s32 36864, 36864
      %44 = vsyncadd [#allocation6], %s43
      %s45 = sshll.u32 [#allocation7], 4
      %s46 = int_to_ptr.vmem [resolvable:$true] %s45
      %51 = dma.hbm_to_vmem [thread:$0]  %s2, 36864, %s46, [#allocation6], 384, 384, 24
    $region13: #{tpu_custom_call.1} parent=1 // pred_fallthru
      _
    // Predicated region
    $region14: #{tpu_custom_call.1} parent=1 // pred_check
      _
    $region15: #{tpu_custom_call.1} parent=1 // pred_check_branch
      %53 = sbr.rel (0) target = $region17
    $region16: #{tpu_custom_call.1} parent=1 // pred_region
      %s55 = ssub.s32 96, 96
      %56 = vsyncadd [#allocation9], %s55
      %s58 = sshll.u32 [#allocation8], 4
      %s59 = int_to_ptr.vmem [resolvable:$true] %s58
      %61 = dma.hbm_to_vmem [thread:$0]  %s3, 96, %s59, [#allocation9]
    $region17: #{tpu_custom_call.1} parent=1 // pred_fallthru
      _
    // Predicated region
    $region18: #{tpu_custom_call.1} parent=1 // pred_check
      _
    $region19: #{tpu_custom_call.1} parent=1 // pred_check_branch
      %63 = sbr.rel (0) target = $region21
    $region20: #{tpu_custom_call.1} parent=1 // pred_region
      %s65 = ssub.s32 96, 96
      %66 = vsyncadd [#allocation9], %s65
      %s68 = sshll.u32 [#allocation10], 4
      %s69 = int_to_ptr.vmem [resolvable:$true] %s68
      %71 = dma.hbm_to_vmem [thread:$0]  %s4, 96, %s69, [#allocation9]
    $region21: #{tpu_custom_call.1} parent=1 // pred_fallthru
      _
    // Predicated region
    $region22: #{tpu_custom_call.1} parent=1 // pred_check
      _
    $region23: #{tpu_custom_call.1} parent=1 // pred_check_branch
      %73 = sbr.rel (0) target = $region25
    $region24: #{tpu_custom_call.1} parent=1 // pred_region
      _
    $region25: #{tpu_custom_call.1} parent=1 // pred_fallthru
      _
    // Predicated region
    $region26: #{tpu_custom_call.1} parent=1 // pred_check
      _
    $region27: #{tpu_custom_call.1} parent=1 // pred_check_branch
      %75 = sbr.rel (0) target = $region29
    $region28: #{tpu_custom_call.1} parent=1 // pred_region
      %76 = dma.done [#allocation4], 768
    $region29: #{tpu_custom_call.1} parent=1 // pred_fallthru
      _
    // Predicated region
    $region30: #{tpu_custom_call.1} parent=1 // pred_check
      _
    $region31: #{tpu_custom_call.1} parent=1 // pred_check_branch
      %78 = sbr.rel (0) target = $region33
    $region32: #{tpu_custom_call.1} parent=1 // pred_region
      %79 = dma.done [#allocation6], 768
    $region33: #{tpu_custom_call.1} parent=1 // pred_fallthru
      _
    // Predicated region
    $region34: #{tpu_custom_call.1} parent=1 // pred_check
      _
    $region35: #{tpu_custom_call.1} parent=1 // pred_check_branch
      %81 = sbr.rel (0) target = $region37
    $region36: #{tpu_custom_call.1} parent=1 // pred_region
      %82 = dma.done [#allocation6], 36864
    $region37: #{tpu_custom_call.1} parent=1 // pred_fallthru
      _
    // Predicated region
    $region38: #{tpu_custom_call.1} parent=1 // pred_check
      _
    $region39: #{tpu_custom_call.1} parent=1 // pred_check_branch
      %84 = sbr.rel (0) target = $region41
    $region40: #{tpu_custom_call.1} parent=1 // pred_region
      %85 = dma.done [#allocation9], 96
    $region41: #{tpu_custom_call.1} parent=1 // pred_fallthru
      _
    // Predicated region
    $region42: #{tpu_custom_call.1} parent=1 // pred_check
      _
    $region43: #{tpu_custom_call.1} parent=1 // pred_check_branch
      %87 = sbr.rel (0) target = $region45
    $region44: #{tpu_custom_call.1} parent=1 // pred_region
      %88 = dma.done [#allocation9], 96
    $region45: #{tpu_custom_call.1} parent=1 // pred_fallthru
      _
    %v89 = vld [vmem:[#allocation3] sm:$0xff]
    %v90 = vld [vmem:[#allocation3 + $0x8] sm:$0xff]
    %v91 = vld [vmem:[#allocation3 + $0x10] sm:$0xff]
    %v92 = vld [vmem:[#allocation3 + $0x18] sm:$0xff]
    %v93 = vld [vmem:[#allocation3 + $0x20] sm:$0xff]
    %v94 = vld [vmem:[#allocation3 + $0x28] sm:$0xff]
    %v95 = vld [vmem:[#allocation5] sm:$0xff]
    %v96 = vld [vmem:[#allocation5 + $0x8] sm:$0xff]
    %v97 = vld [vmem:[#allocation5 + $0x10] sm:$0xff]
    %v98 = vld [vmem:[#allocation5 + $0x18] sm:$0xff]
    %v99 = vld [vmem:[#allocation5 + $0x20] sm:$0xff]
    %v100 = vld [vmem:[#allocation5 + $0x28] sm:$0xff]
    %v101 = vld [vmem:[#allocation7] sm:$0xff]
    %v102 = vld [vmem:[#allocation7 + $0x8] sm:$0xff]
    %v103 = vld [vmem:[#allocation7 + $0x10] sm:$0xff]
    %v104 = vld [vmem:[#allocation7 + $0x18] sm:$0xff]
    %v105 = vld [vmem:[#allocation7 + $0x20] sm:$0xff]
    %v106 = vld [vmem:[#allocation7 + $0x28] sm:$0xff]
    %v107 = vld [vmem:[#allocation7 + $0x30] sm:$0xff]
    %v108 = vld [vmem:[#allocation7 + $0x38] sm:$0xff]
    %v109 = vld [vmem:[#allocation7 + $0x40] sm:$0xff]
    %v110 = vld [vmem:[#allocation7 + $0x48] sm:$0xff]
    %v111 = vld [vmem:[#allocation7 + $0x50] sm:$0xff]
    %v112 = vld [vmem:[#allocation7 + $0x58] sm:$0xff]
    %v113 = vld [vmem:[#allocation7 + $0x60] sm:$0xff]
    %v114 = vld [vmem:[#allocation7 + $0x68] sm:$0xff]
    %v115 = vld [vmem:[#allocation7 + $0x70] sm:$0xff]
    %v116 = vld [vmem:[#allocation7 + $0x78] sm:$0xff]
    %v117 = vld [vmem:[#allocation7 + $0x80] sm:$0xff]
    %v118 = vld [vmem:[#allocation7 + $0x88] sm:$0xff]
    %v119 = vld [vmem:[#allocation7 + $0x90] sm:$0xff]
    %v120 = vld [vmem:[#allocation7 + $0x98] sm:$0xff]
    %v121 = vld [vmem:[#allocation7 + $0xa0] sm:$0xff]
    %v122 = vld [vmem:[#allocation7 + $0xa8] sm:$0xff]
    %v123 = vld [vmem:[#allocation7 + $0xb0] sm:$0xff]
    %v124 = vld [vmem:[#allocation7 + $0xb8] sm:$0xff]
    %v125 = vld [vmem:[#allocation7 + $0xc0] sm:$0xff]
    %v126 = vld [vmem:[#allocation7 + $0xc8] sm:$0xff]
    %v127 = vld [vmem:[#allocation7 + $0xd0] sm:$0xff]
    %v128 = vld [vmem:[#allocation7 + $0xd8] sm:$0xff]
    %v129 = vld [vmem:[#allocation7 + $0xe0] sm:$0xff]
    %v130 = vld [vmem:[#allocation7 + $0xe8] sm:$0xff]
    %v131 = vld [vmem:[#allocation7 + $0xf0] sm:$0xff]
    %v132 = vld [vmem:[#allocation7 + $0xf8] sm:$0xff]
    %v133 = vld [vmem:[#allocation7 + $0x100] sm:$0xff]
    %v134 = vld [vmem:[#allocation7 + $0x108] sm:$0xff]
    %v135 = vld [vmem:[#allocation7 + $0x110] sm:$0xff]
    %v136 = vld [vmem:[#allocation7 + $0x118] sm:$0xff]
    %v137 = vld [vmem:[#allocation7 + $0x120] sm:$0xff]
    %v138 = vld [vmem:[#allocation7 + $0x128] sm:$0xff]
    %v139 = vld [vmem:[#allocation7 + $0x130] sm:$0xff]
    %v140 = vld [vmem:[#allocation7 + $0x138] sm:$0xff]
    %v141 = vld [vmem:[#allocation7 + $0x140] sm:$0xff]
    %v142 = vld [vmem:[#allocation7 + $0x148] sm:$0xff]
    %v143 = vld [vmem:[#allocation7 + $0x150] sm:$0xff]
    %v144 = vld [vmem:[#allocation7 + $0x158] sm:$0xff]
    %v145 = vld [vmem:[#allocation7 + $0x160] sm:$0xff]
    %v146 = vld [vmem:[#allocation7 + $0x168] sm:$0xff]
    %v147 = vld [vmem:[#allocation7 + $0x170] sm:$0xff]
    %v148 = vld [vmem:[#allocation7 + $0x178] sm:$0xff]
    %v149 = vld [vmem:[#allocation7 + $0x180] sm:$0xff]
    %v150 = vld [vmem:[#allocation7 + $0x188] sm:$0xff]
    %v151 = vld [vmem:[#allocation7 + $0x190] sm:$0xff]
    %v152 = vld [vmem:[#allocation7 + $0x198] sm:$0xff]
    %v153 = vld [vmem:[#allocation7 + $0x1a0] sm:$0xff]
    %v154 = vld [vmem:[#allocation7 + $0x1a8] sm:$0xff]
    %v155 = vld [vmem:[#allocation7 + $0x1b0] sm:$0xff]
    %v156 = vld [vmem:[#allocation7 + $0x1b8] sm:$0xff]
    %v157 = vld [vmem:[#allocation7 + $0x1c0] sm:$0xff]
    %v158 = vld [vmem:[#allocation7 + $0x1c8] sm:$0xff]
    %v159 = vld [vmem:[#allocation7 + $0x1d0] sm:$0xff]
    %v160 = vld [vmem:[#allocation7 + $0x1d8] sm:$0xff]
    %v161 = vld [vmem:[#allocation7 + $0x1e0] sm:$0xff]
    %v162 = vld [vmem:[#allocation7 + $0x1e8] sm:$0xff]
    %v163 = vld [vmem:[#allocation7 + $0x1f0] sm:$0xff]
    %v164 = vld [vmem:[#allocation7 + $0x1f8] sm:$0xff]
    %v165 = vld [vmem:[#allocation7 + $0x200] sm:$0xff]
    %v166 = vld [vmem:[#allocation7 + $0x208] sm:$0xff]
    %v167 = vld [vmem:[#allocation7 + $0x210] sm:$0xff]
    %v168 = vld [vmem:[#allocation7 + $0x218] sm:$0xff]
    %v169 = vld [vmem:[#allocation7 + $0x220] sm:$0xff]
    %v170 = vld [vmem:[#allocation7 + $0x228] sm:$0xff]
    %v171 = vld [vmem:[#allocation7 + $0x230] sm:$0xff]
    %v172 = vld [vmem:[#allocation7 + $0x238] sm:$0xff]
    %v173 = vld [vmem:[#allocation7 + $0x240] sm:$0xff]
    %v174 = vld [vmem:[#allocation7 + $0x248] sm:$0xff]
    %v175 = vld [vmem:[#allocation7 + $0x250] sm:$0xff]
    %v176 = vld [vmem:[#allocation7 + $0x258] sm:$0xff]
    %v177 = vld [vmem:[#allocation7 + $0x260] sm:$0xff]
    %v178 = vld [vmem:[#allocation7 + $0x268] sm:$0xff]
    %v179 = vld [vmem:[#allocation7 + $0x270] sm:$0xff]
    %v180 = vld [vmem:[#allocation7 + $0x278] sm:$0xff]
    %v181 = vld [vmem:[#allocation7 + $0x280] sm:$0xff]
    %v182 = vld [vmem:[#allocation7 + $0x288] sm:$0xff]
    %v183 = vld [vmem:[#allocation7 + $0x290] sm:$0xff]
    %v184 = vld [vmem:[#allocation7 + $0x298] sm:$0xff]
    %v185 = vld [vmem:[#allocation7 + $0x2a0] sm:$0xff]
    %v186 = vld [vmem:[#allocation7 + $0x2a8] sm:$0xff]
    %v187 = vld [vmem:[#allocation7 + $0x2b0] sm:$0xff]
    %v188 = vld [vmem:[#allocation7 + $0x2b8] sm:$0xff]
    %v189 = vld [vmem:[#allocation7 + $0x2c0] sm:$0xff]
    %v190 = vld [vmem:[#allocation7 + $0x2c8] sm:$0xff]
    %v191 = vld [vmem:[#allocation7 + $0x2d0] sm:$0xff]
    %v192 = vld [vmem:[#allocation7 + $0x2d8] sm:$0xff]
    %v193 = vld [vmem:[#allocation7 + $0x2e0] sm:$0xff]
    %v194 = vld [vmem:[#allocation7 + $0x2e8] sm:$0xff]
    %v195 = vld [vmem:[#allocation7 + $0x2f0] sm:$0xff]
    %v196 = vld [vmem:[#allocation7 + $0x2f8] sm:$0xff]
    %v197 = vld [vmem:[#allocation7 + $0x300] sm:$0xff]
    %v198 = vld [vmem:[#allocation7 + $0x308] sm:$0xff]
    %v199 = vld [vmem:[#allocation7 + $0x310] sm:$0xff]
    %v200 = vld [vmem:[#allocation7 + $0x318] sm:$0xff]
    %v201 = vld [vmem:[#allocation7 + $0x320] sm:$0xff]
    %v202 = vld [vmem:[#allocation7 + $0x328] sm:$0xff]
    %v203 = vld [vmem:[#allocation7 + $0x330] sm:$0xff]
    %v204 = vld [vmem:[#allocation7 + $0x338] sm:$0xff]
    %v205 = vld [vmem:[#allocation7 + $0x340] sm:$0xff]
    %v206 = vld [vmem:[#allocation7 + $0x348] sm:$0xff]
    %v207 = vld [vmem:[#allocation7 + $0x350] sm:$0xff]
    %v208 = vld [vmem:[#allocation7 + $0x358] sm:$0xff]
    %v209 = vld [vmem:[#allocation7 + $0x360] sm:$0xff]
    %v210 = vld [vmem:[#allocation7 + $0x368] sm:$0xff]
    %v211 = vld [vmem:[#allocation7 + $0x370] sm:$0xff]
    %v212 = vld [vmem:[#allocation7 + $0x378] sm:$0xff]
    %v213 = vld [vmem:[#allocation7 + $0x380] sm:$0xff]
    %v214 = vld [vmem:[#allocation7 + $0x388] sm:$0xff]
    %v215 = vld [vmem:[#allocation7 + $0x390] sm:$0xff]
    %v216 = vld [vmem:[#allocation7 + $0x398] sm:$0xff]
    %v217 = vld [vmem:[#allocation7 + $0x3a0] sm:$0xff]
    %v218 = vld [vmem:[#allocation7 + $0x3a8] sm:$0xff]
    %v219 = vld [vmem:[#allocation7 + $0x3b0] sm:$0xff]
    %v220 = vld [vmem:[#allocation7 + $0x3b8] sm:$0xff]
    %v221 = vld [vmem:[#allocation7 + $0x3c0] sm:$0xff]
    %v222 = vld [vmem:[#allocation7 + $0x3c8] sm:$0xff]
    %v223 = vld [vmem:[#allocation7 + $0x3d0] sm:$0xff]
    %v224 = vld [vmem:[#allocation7 + $0x3d8] sm:$0xff]
    %v225 = vld [vmem:[#allocation7 + $0x3e0] sm:$0xff]
    %v226 = vld [vmem:[#allocation7 + $0x3e8] sm:$0xff]
    %v227 = vld [vmem:[#allocation7 + $0x3f0] sm:$0xff]
    %v228 = vld [vmem:[#allocation7 + $0x3f8] sm:$0xff]
    %v229 = vld [vmem:[#allocation7 + $0x400] sm:$0xff]
    %v230 = vld [vmem:[#allocation7 + $0x408] sm:$0xff]
    %v231 = vld [vmem:[#allocation7 + $0x410] sm:$0xff]
    %v232 = vld [vmem:[#allocation7 + $0x418] sm:$0xff]
    %v233 = vld [vmem:[#allocation7 + $0x420] sm:$0xff]
    %v234 = vld [vmem:[#allocation7 + $0x428] sm:$0xff]
    %v235 = vld [vmem:[#allocation7 + $0x430] sm:$0xff]
    %v236 = vld [vmem:[#allocation7 + $0x438] sm:$0xff]
    %v237 = vld [vmem:[#allocation7 + $0x440] sm:$0xff]
    %v238 = vld [vmem:[#allocation7 + $0x448] sm:$0xff]
    %v239 = vld [vmem:[#allocation7 + $0x450] sm:$0xff]
    %v240 = vld [vmem:[#allocation7 + $0x458] sm:$0xff]
    %v241 = vld [vmem:[#allocation7 + $0x460] sm:$0xff]
    %v242 = vld [vmem:[#allocation7 + $0x468] sm:$0xff]
    %v243 = vld [vmem:[#allocation7 + $0x470] sm:$0xff]
    %v244 = vld [vmem:[#allocation7 + $0x478] sm:$0xff]
    %v245 = vld [vmem:[#allocation7 + $0x480] sm:$0xff]
    %v246 = vld [vmem:[#allocation7 + $0x488] sm:$0xff]
    %v247 = vld [vmem:[#allocation7 + $0x490] sm:$0xff]
    %v248 = vld [vmem:[#allocation7 + $0x498] sm:$0xff]
    %v249 = vld [vmem:[#allocation7 + $0x4a0] sm:$0xff]
    %v250 = vld [vmem:[#allocation7 + $0x4a8] sm:$0xff]
    %v251 = vld [vmem:[#allocation7 + $0x4b0] sm:$0xff]
    %v252 = vld [vmem:[#allocation7 + $0x4b8] sm:$0xff]
    %v253 = vld [vmem:[#allocation7 + $0x4c0] sm:$0xff]
    %v254 = vld [vmem:[#allocation7 + $0x4c8] sm:$0xff]
    %v255 = vld [vmem:[#allocation7 + $0x4d0] sm:$0xff]
    %v256 = vld [vmem:[#allocation7 + $0x4d8] sm:$0xff]
    %v257 = vld [vmem:[#allocation7 + $0x4e0] sm:$0xff]
    %v258 = vld [vmem:[#allocation7 + $0x4e8] sm:$0xff]
    %v259 = vld [vmem:[#allocation7 + $0x4f0] sm:$0xff]
    %v260 = vld [vmem:[#allocation7 + $0x4f8] sm:$0xff]
    %v261 = vld [vmem:[#allocation7 + $0x500] sm:$0xff]
    %v262 = vld [vmem:[#allocation7 + $0x508] sm:$0xff]
    %v263 = vld [vmem:[#allocation7 + $0x510] sm:$0xff]
    %v264 = vld [vmem:[#allocation7 + $0x518] sm:$0xff]
    %v265 = vld [vmem:[#allocation7 + $0x520] sm:$0xff]
    %v266 = vld [vmem:[#allocation7 + $0x528] sm:$0xff]
    %v267 = vld [vmem:[#allocation7 + $0x530] sm:$0xff]
    %v268 = vld [vmem:[#allocation7 + $0x538] sm:$0xff]
    %v269 = vld [vmem:[#allocation7 + $0x540] sm:$0xff]
    %v270 = vld [vmem:[#allocation7 + $0x548] sm:$0xff]
    %v271 = vld [vmem:[#allocation7 + $0x550] sm:$0xff]
    %v272 = vld [vmem:[#allocation7 + $0x558] sm:$0xff]
    %v273 = vld [vmem:[#allocation7 + $0x560] sm:$0xff]
    %v274 = vld [vmem:[#allocation7 + $0x568] sm:$0xff]
    %v275 = vld [vmem:[#allocation7 + $0x570] sm:$0xff]
    %v276 = vld [vmem:[#allocation7 + $0x578] sm:$0xff]
    %v277 = vld [vmem:[#allocation7 + $0x580] sm:$0xff]
    %v278 = vld [vmem:[#allocation7 + $0x588] sm:$0xff]
    %v279 = vld [vmem:[#allocation7 + $0x590] sm:$0xff]
    %v280 = vld [vmem:[#allocation7 + $0x598] sm:$0xff]
    %v281 = vld [vmem:[#allocation7 + $0x5a0] sm:$0xff]
    %v282 = vld [vmem:[#allocation7 + $0x5a8] sm:$0xff]
    %v283 = vld [vmem:[#allocation7 + $0x5b0] sm:$0xff]
    %v284 = vld [vmem:[#allocation7 + $0x5b8] sm:$0xff]
    %v285 = vld [vmem:[#allocation7 + $0x5c0] sm:$0xff]
    %v286 = vld [vmem:[#allocation7 + $0x5c8] sm:$0xff]
    %v287 = vld [vmem:[#allocation7 + $0x5d0] sm:$0xff]
    %v288 = vld [vmem:[#allocation7 + $0x5d8] sm:$0xff]
    %v289 = vld [vmem:[#allocation7 + $0x5e0] sm:$0xff]
    %v290 = vld [vmem:[#allocation7 + $0x5e8] sm:$0xff]
    %v291 = vld [vmem:[#allocation7 + $0x5f0] sm:$0xff]
    %v292 = vld [vmem:[#allocation7 + $0x5f8] sm:$0xff]
    %v293 = vld [vmem:[#allocation7 + $0x600] sm:$0xff]
    %v294 = vld [vmem:[#allocation7 + $0x608] sm:$0xff]
    %v295 = vld [vmem:[#allocation7 + $0x610] sm:$0xff]
    %v296 = vld [vmem:[#allocation7 + $0x618] sm:$0xff]
    %v297 = vld [vmem:[#allocation7 + $0x620] sm:$0xff]
    %v298 = vld [vmem:[#allocation7 + $0x628] sm:$0xff]
    %v299 = vld [vmem:[#allocation7 + $0x630] sm:$0xff]
    %v300 = vld [vmem:[#allocation7 + $0x638] sm:$0xff]
    %v301 = vld [vmem:[#allocation7 + $0x640] sm:$0xff]
    %v302 = vld [vmem:[#allocation7 + $0x648] sm:$0xff]
    %v303 = vld [vmem:[#allocation7 + $0x650] sm:$0xff]
    %v304 = vld [vmem:[#allocation7 + $0x658] sm:$0xff]
    %v305 = vld [vmem:[#allocation7 + $0x660] sm:$0xff]
    %v306 = vld [vmem:[#allocation7 + $0x668] sm:$0xff]
    %v307 = vld [vmem:[#allocation7 + $0x670] sm:$0xff]
    %v308 = vld [vmem:[#allocation7 + $0x678] sm:$0xff]
    %v309 = vld [vmem:[#allocation7 + $0x680] sm:$0xff]
    %v310 = vld [vmem:[#allocation7 + $0x688] sm:$0xff]
    %v311 = vld [vmem:[#allocation7 + $0x690] sm:$0xff]
    %v312 = vld [vmem:[#allocation7 + $0x698] sm:$0xff]
    %v313 = vld [vmem:[#allocation7 + $0x6a0] sm:$0xff]
    %v314 = vld [vmem:[#allocation7 + $0x6a8] sm:$0xff]
    %v315 = vld [vmem:[#allocation7 + $0x6b0] sm:$0xff]
    %v316 = vld [vmem:[#allocation7 + $0x6b8] sm:$0xff]
    %v317 = vld [vmem:[#allocation7 + $0x6c0] sm:$0xff]
    %v318 = vld [vmem:[#allocation7 + $0x6c8] sm:$0xff]
    %v319 = vld [vmem:[#allocation7 + $0x6d0] sm:$0xff]
    %v320 = vld [vmem:[#allocation7 + $0x6d8] sm:$0xff]
    %v321 = vld [vmem:[#allocation7 + $0x6e0] sm:$0xff]
    %v322 = vld [vmem:[#allocation7 + $0x6e8] sm:$0xff]
    %v323 = vld [vmem:[#allocation7 + $0x6f0] sm:$0xff]
    %v324 = vld [vmem:[#allocation7 + $0x6f8] sm:$0xff]
    %v325 = vld [vmem:[#allocation7 + $0x700] sm:$0xff]
    %v326 = vld [vmem:[#allocation7 + $0x708] sm:$0xff]
    %v327 = vld [vmem:[#allocation7 + $0x710] sm:$0xff]
    %v328 = vld [vmem:[#allocation7 + $0x718] sm:$0xff]
    %v329 = vld [vmem:[#allocation7 + $0x720] sm:$0xff]
    %v330 = vld [vmem:[#allocation7 + $0x728] sm:$0xff]
    %v331 = vld [vmem:[#allocation7 + $0x730] sm:$0xff]
    %v332 = vld [vmem:[#allocation7 + $0x738] sm:$0xff]
    %v333 = vld [vmem:[#allocation7 + $0x740] sm:$0xff]
    %v334 = vld [vmem:[#allocation7 + $0x748] sm:$0xff]
    %v335 = vld [vmem:[#allocation7 + $0x750] sm:$0xff]
    %v336 = vld [vmem:[#allocation7 + $0x758] sm:$0xff]
    %v337 = vld [vmem:[#allocation7 + $0x760] sm:$0xff]
    %v338 = vld [vmem:[#allocation7 + $0x768] sm:$0xff]
    %v339 = vld [vmem:[#allocation7 + $0x770] sm:$0xff]
    %v340 = vld [vmem:[#allocation7 + $0x778] sm:$0xff]
    %v341 = vld [vmem:[#allocation7 + $0x780] sm:$0xff]
    %v342 = vld [vmem:[#allocation7 + $0x788] sm:$0xff]
    %v343 = vld [vmem:[#allocation7 + $0x790] sm:$0xff]
    %v344 = vld [vmem:[#allocation7 + $0x798] sm:$0xff]
    %v345 = vld [vmem:[#allocation7 + $0x7a0] sm:$0xff]
    %v346 = vld [vmem:[#allocation7 + $0x7a8] sm:$0xff]
    %v347 = vld [vmem:[#allocation7 + $0x7b0] sm:$0xff]
    %v348 = vld [vmem:[#allocation7 + $0x7b8] sm:$0xff]
    %v349 = vld [vmem:[#allocation7 + $0x7c0] sm:$0xff]
    %v350 = vld [vmem:[#allocation7 + $0x7c8] sm:$0xff]
    %v351 = vld [vmem:[#allocation7 + $0x7d0] sm:$0xff]
    %v352 = vld [vmem:[#allocation7 + $0x7d8] sm:$0xff]
    %v353 = vld [vmem:[#allocation7 + $0x7e0] sm:$0xff]
    %v354 = vld [vmem:[#allocation7 + $0x7e8] sm:$0xff]
    %v355 = vld [vmem:[#allocation7 + $0x7f0] sm:$0xff]
    %v356 = vld [vmem:[#allocation7 + $0x7f8] sm:$0xff]
    %v357 = vld [vmem:[#allocation7 + $0x800] sm:$0xff]
    %v358 = vld [vmem:[#allocation7 + $0x808] sm:$0xff]
    %v359 = vld [vmem:[#allocation7 + $0x810] sm:$0xff]
    %v360 = vld [vmem:[#allocation7 + $0x818] sm:$0xff]
    %v361 = vld [vmem:[#allocation7 + $0x820] sm:$0xff]
    %v362 = vld [vmem:[#allocation7 + $0x828] sm:$0xff]
    %v363 = vld [vmem:[#allocation7 + $0x830] sm:$0xff]
    %v364 = vld [vmem:[#allocation7 + $0x838] sm:$0xff]
    %v365 = vld [vmem:[#allocation7 + $0x840] sm:$0xff]
    %v366 = vld [vmem:[#allocation7 + $0x848] sm:$0xff]
    %v367 = vld [vmem:[#allocation7 + $0x850] sm:$0xff]
    %v368 = vld [vmem:[#allocation7 + $0x858] sm:$0xff]
    %v369 = vld [vmem:[#allocation7 + $0x860] sm:$0xff]
    %v370 = vld [vmem:[#allocation7 + $0x868] sm:$0xff]
    %v371 = vld [vmem:[#allocation7 + $0x870] sm:$0xff]
    %v372 = vld [vmem:[#allocation7 + $0x878] sm:$0xff]
    %v373 = vld [vmem:[#allocation7 + $0x880] sm:$0xff]
    %v374 = vld [vmem:[#allocation7 + $0x888] sm:$0xff]
    %v375 = vld [vmem:[#allocation7 + $0x890] sm:$0xff]
    %v376 = vld [vmem:[#allocation7 + $0x898] sm:$0xff]
    %v377 = vld [vmem:[#allocation7 + $0x8a0] sm:$0xff]
    %v378 = vld [vmem:[#allocation7 + $0x8a8] sm:$0xff]
    %v379 = vld [vmem:[#allocation7 + $0x8b0] sm:$0xff]
    %v380 = vld [vmem:[#allocation7 + $0x8b8] sm:$0xff]
    %v381 = vld [vmem:[#allocation7 + $0x8c0] sm:$0xff]
    %v382 = vld [vmem:[#allocation7 + $0x8c8] sm:$0xff]
    %v383 = vld [vmem:[#allocation7 + $0x8d0] sm:$0xff]
    %v384 = vld [vmem:[#allocation7 + $0x8d8] sm:$0xff]
    %v385 = vld [vmem:[#allocation7 + $0x8e0] sm:$0xff]
    %v386 = vld [vmem:[#allocation7 + $0x8e8] sm:$0xff]
    %v387 = vld [vmem:[#allocation7 + $0x8f0] sm:$0xff]
    %v388 = vld [vmem:[#allocation7 + $0x8f8] sm:$0xff]
    %v389 = vunpack.c.l.bf16 %v89
    %v390 = vunpack.c.h.bf16 %v89
    %v391 = vunpack.c.l.bf16 %v90
    %v392 = vunpack.c.h.bf16 %v90
    %v393 = vunpack.c.l.bf16 %v91
    %v394 = vunpack.c.h.bf16 %v91
    %v395 = vunpack.c.l.bf16 %v92
    %v396 = vunpack.c.h.bf16 %v92
    %v397 = vunpack.c.l.bf16 %v93
    %v398 = vunpack.c.h.bf16 %v93
    %v399 = vunpack.c.l.bf16 %v94
    %v400 = vunpack.c.h.bf16 %v94
    %v401 = vunpack.c.l.bf16 %v95
    %v402 = vunpack.c.h.bf16 %v95
    %v403 = vunpack.c.l.bf16 %v96
    %v404 = vunpack.c.h.bf16 %v96
    %v405 = vunpack.c.l.bf16 %v97
    %v406 = vunpack.c.h.bf16 %v97
    %v407 = vunpack.c.l.bf16 %v98
    %v408 = vunpack.c.h.bf16 %v98
    %v409 = vunpack.c.l.bf16 %v99
    %v410 = vunpack.c.h.bf16 %v99
    %v411 = vunpack.c.l.bf16 %v100
    %v412 = vunpack.c.h.bf16 %v100
    %v413 = vld [vmem:[#allocation10] sm:$0x3f]
    %v415 = vlaneseq
    %v416 = vshrl.u32 %v415, 7
    %v417 = vsub.s32 0, %v416
    %v418 = vrot.slane %v413, %v417
    %v419 = vlaneseq
    %v420 = vshrl.u32 %v419, 7
    %v421 = vsub.s32 1, %v420
    %v422 = vrot.slane %v413, %v421
    %v423 = vlaneseq
    %v424 = vshrl.u32 %v423, 7
    %v425 = vsub.s32 2, %v424
    %v426 = vrot.slane %v413, %v425
    %v427 = vlaneseq
    %v428 = vshrl.u32 %v427, 7
    %v429 = vsub.s32 3, %v428
    %v430 = vrot.slane %v413, %v429
    %v431 = vlaneseq
    %v432 = vshrl.u32 %v431, 7
    %v433 = vsub.s32 4, %v432
    %v434 = vrot.slane %v413, %v433
    %v435 = vlaneseq
    %v436 = vshrl.u32 %v435, 7
    %v437 = vsub.s32 5, %v436
    %v438 = vrot.slane %v413, %v437
    %v451 = vunpack.c.l.b16 %v89
    %v452 = vunpack.c.h.b16 %v89
    %v453 = vunpack.c.l.b16 %v90
    %v454 = vunpack.c.h.b16 %v90
    %v455 = vunpack.c.l.b16 %v91
    %v456 = vunpack.c.h.b16 %v91
    %v457 = vunpack.c.l.b16 %v92
    %v458 = vunpack.c.h.b16 %v92
    %v459 = vunpack.c.l.b16 %v93
    %v460 = vunpack.c.h.b16 %v93
    %v461 = vunpack.c.l.b16 %v94
    %v462 = vunpack.c.h.b16 %v94
    %v463 = vpack.c.b16 %v457, %v451
    %v464 = vpack.c.b16 %v458, %v452
    %v465 = vpack.c.b16 %v459, %v453
    %v466 = vpack.c.b16 %v460, %v454
    %v467 = vpack.c.b16 %v461, %v455
    %v468 = vpack.c.b16 %v462, %v456
    %v763 = vunpack.c.l.b16 %v101
    %v764 = vunpack.c.h.b16 %v101
    %v765 = vunpack.c.l.b16 %v102
    %v766 = vunpack.c.h.b16 %v102
    %v767 = vunpack.c.l.b16 %v103
    %v768 = vunpack.c.h.b16 %v103
    %v769 = vunpack.c.l.b16 %v104
    %v770 = vunpack.c.h.b16 %v104
    %v771 = vunpack.c.l.b16 %v105
    %v772 = vunpack.c.h.b16 %v105
    %v773 = vunpack.c.l.b16 %v106
    %v774 = vunpack.c.h.b16 %v106
    %v775 = vunpack.c.l.b16 %v107
    %v776 = vunpack.c.h.b16 %v107
    %v777 = vunpack.c.l.b16 %v108
    %v778 = vunpack.c.h.b16 %v108
    %v779 = vunpack.c.l.b16 %v109
    %v780 = vunpack.c.h.b16 %v109
    %v781 = vunpack.c.l.b16 %v110
    %v782 = vunpack.c.h.b16 %v110
    %v783 = vunpack.c.l.b16 %v111
    %v784 = vunpack.c.h.b16 %v111
    %v785 = vunpack.c.l.b16 %v112
    %v786 = vunpack.c.h.b16 %v112
    %v787 = vunpack.c.l.b16 %v113
    %v788 = vunpack.c.h.b16 %v113
    %v789 = vunpack.c.l.b16 %v114
    %v790 = vunpack.c.h.b16 %v114
    %v791 = vunpack.c.l.b16 %v115
    %v792 = vunpack.c.h.b16 %v115
    %v793 = vunpack.c.l.b16 %v116
    %v794 = vunpack.c.h.b16 %v116
    %v795 = vunpack.c.l.b16 %v117
    %v796 = vunpack.c.h.b16 %v117
    %v797 = vunpack.c.l.b16 %v118
    %v798 = vunpack.c.h.b16 %v118
    %v799 = vunpack.c.l.b16 %v119
    %v800 = vunpack.c.h.b16 %v119
    %v801 = vunpack.c.l.b16 %v120
    %v802 = vunpack.c.h.b16 %v120
    %v803 = vunpack.c.l.b16 %v121
    %v804 = vunpack.c.h.b16 %v121
    %v805 = vunpack.c.l.b16 %v122
    %v806 = vunpack.c.h.b16 %v122
    %v807 = vunpack.c.l.b16 %v123
    %v808 = vunpack.c.h.b16 %v123
    %v809 = vunpack.c.l.b16 %v124
    %v810 = vunpack.c.h.b16 %v124
    %v811 = vunpack.c.l.b16 %v125
    %v812 = vunpack.c.h.b16 %v125
    %v813 = vunpack.c.l.b16 %v126
    %v814 = vunpack.c.h.b16 %v126
    %v815 = vunpack.c.l.b16 %v127
    %v816 = vunpack.c.h.b16 %v127
    %v817 = vunpack.c.l.b16 %v128
    %v818 = vunpack.c.h.b16 %v128
    %v819 = vunpack.c.l.b16 %v129
    %v820 = vunpack.c.h.b16 %v129
    %v821 = vunpack.c.l.b16 %v130
    %v822 = vunpack.c.h.b16 %v130
    %v823 = vunpack.c.l.b16 %v131
    %v824 = vunpack.c.h.b16 %v131
    %v825 = vunpack.c.l.b16 %v132
    %v826 = vunpack.c.h.b16 %v132
    %v827 = vunpack.c.l.b16 %v133
    %v828 = vunpack.c.h.b16 %v133
    %v829 = vunpack.c.l.b16 %v134
    %v830 = vunpack.c.h.b16 %v134
    %v831 = vunpack.c.l.b16 %v135
    %v832 = vunpack.c.h.b16 %v135
    %v833 = vunpack.c.l.b16 %v136
    %v834 = vunpack.c.h.b16 %v136
    %v835 = vunpack.c.l.b16 %v137
    %v836 = vunpack.c.h.b16 %v137
    %v837 = vunpack.c.l.b16 %v138
    %v838 = vunpack.c.h.b16 %v138
    %v839 = vunpack.c.l.b16 %v139
    %v840 = vunpack.c.h.b16 %v139
    %v841 = vunpack.c.l.b16 %v140
    %v842 = vunpack.c.h.b16 %v140
    %v843 = vunpack.c.l.b16 %v141
    %v844 = vunpack.c.h.b16 %v141
    %v845 = vunpack.c.l.b16 %v142
    %v846 = vunpack.c.h.b16 %v142
    %v847 = vunpack.c.l.b16 %v143
    %v848 = vunpack.c.h.b16 %v143
    %v849 = vunpack.c.l.b16 %v144
    %v850 = vunpack.c.h.b16 %v144
    %v851 = vunpack.c.l.b16 %v145
    %v852 = vunpack.c.h.b16 %v145
    %v853 = vunpack.c.l.b16 %v146
    %v854 = vunpack.c.h.b16 %v146
    %v855 = vunpack.c.l.b16 %v147
    %v856 = vunpack.c.h.b16 %v147
    %v857 = vunpack.c.l.b16 %v148
    %v858 = vunpack.c.h.b16 %v148
    %v859 = vunpack.c.l.b16 %v149
    %v860 = vunpack.c.h.b16 %v149
    %v861 = vunpack.c.l.b16 %v150
    %v862 = vunpack.c.h.b16 %v150
    %v863 = vunpack.c.l.b16 %v151
    %v864 = vunpack.c.h.b16 %v151
    %v865 = vunpack.c.l.b16 %v152
    %v866 = vunpack.c.h.b16 %v152
    %v867 = vunpack.c.l.b16 %v153
    %v868 = vunpack.c.h.b16 %v153
    %v869 = vunpack.c.l.b16 %v154
    %v870 = vunpack.c.h.b16 %v154
    %v871 = vunpack.c.l.b16 %v155
    %v872 = vunpack.c.h.b16 %v155
    %v873 = vunpack.c.l.b16 %v156
    %v874 = vunpack.c.h.b16 %v156
    %v875 = vunpack.c.l.b16 %v157
    %v876 = vunpack.c.h.b16 %v157
    %v877 = vunpack.c.l.b16 %v158
    %v878 = vunpack.c.h.b16 %v158
    %v879 = vunpack.c.l.b16 %v159
    %v880 = vunpack.c.h.b16 %v159
    %v881 = vunpack.c.l.b16 %v160
    %v882 = vunpack.c.h.b16 %v160
    %v883 = vunpack.c.l.b16 %v161
    %v884 = vunpack.c.h.b16 %v161
    %v885 = vunpack.c.l.b16 %v162
    %v886 = vunpack.c.h.b16 %v162
    %v887 = vunpack.c.l.b16 %v163
    %v888 = vunpack.c.h.b16 %v163
    %v889 = vunpack.c.l.b16 %v164
    %v890 = vunpack.c.h.b16 %v164
    %v891 = vunpack.c.l.b16 %v165
    %v892 = vunpack.c.h.b16 %v165
    %v893 = vunpack.c.l.b16 %v166
    %v894 = vunpack.c.h.b16 %v166
    %v895 = vunpack.c.l.b16 %v167
    %v896 = vunpack.c.h.b16 %v167
    %v897 = vunpack.c.l.b16 %v168
    %v898 = vunpack.c.h.b16 %v168
    %v899 = vunpack.c.l.b16 %v169
    %v900 = vunpack.c.h.b16 %v169
    %v901 = vunpack.c.l.b16 %v170
    %v902 = vunpack.c.h.b16 %v170
    %v903 = vunpack.c.l.b16 %v171
    %v904 = vunpack.c.h.b16 %v171
    %v905 = vunpack.c.l.b16 %v172
    %v906 = vunpack.c.h.b16 %v172
    %v907 = vunpack.c.l.b16 %v173
    %v908 = vunpack.c.h.b16 %v173
    %v909 = vunpack.c.l.b16 %v174
    %v910 = vunpack.c.h.b16 %v174
    %v911 = vunpack.c.l.b16 %v175
    %v912 = vunpack.c.h.b16 %v175
    %v913 = vunpack.c.l.b16 %v176
    %v914 = vunpack.c.h.b16 %v176
    %v915 = vunpack.c.l.b16 %v177
    %v916 = vunpack.c.h.b16 %v177
    %v917 = vunpack.c.l.b16 %v178
    %v918 = vunpack.c.h.b16 %v178
    %v919 = vunpack.c.l.b16 %v179
    %v920 = vunpack.c.h.b16 %v179
    %v921 = vunpack.c.l.b16 %v180
    %v922 = vunpack.c.h.b16 %v180
    %v923 = vunpack.c.l.b16 %v181
    %v924 = vunpack.c.h.b16 %v181
    %v925 = vunpack.c.l.b16 %v182
    %v926 = vunpack.c.h.b16 %v182
    %v927 = vunpack.c.l.b16 %v183
    %v928 = vunpack.c.h.b16 %v183
    %v929 = vunpack.c.l.b16 %v184
    %v930 = vunpack.c.h.b16 %v184
    %v931 = vunpack.c.l.b16 %v185
    %v932 = vunpack.c.h.b16 %v185
    %v933 = vunpack.c.l.b16 %v186
    %v934 = vunpack.c.h.b16 %v186
    %v935 = vunpack.c.l.b16 %v187
    %v936 = vunpack.c.h.b16 %v187
    %v937 = vunpack.c.l.b16 %v188
    %v938 = vunpack.c.h.b16 %v188
    %v939 = vunpack.c.l.b16 %v189
    %v940 = vunpack.c.h.b16 %v189
    %v941 = vunpack.c.l.b16 %v190
    %v942 = vunpack.c.h.b16 %v190
    %v943 = vunpack.c.l.b16 %v191
    %v944 = vunpack.c.h.b16 %v191
    %v945 = vunpack.c.l.b16 %v192
    %v946 = vunpack.c.h.b16 %v192
    %v947 = vunpack.c.l.b16 %v193
    %v948 = vunpack.c.h.b16 %v193
    %v949 = vunpack.c.l.b16 %v194
    %v950 = vunpack.c.h.b16 %v194
    %v951 = vunpack.c.l.b16 %v195
    %v952 = vunpack.c.h.b16 %v195
    %v953 = vunpack.c.l.b16 %v196
    %v954 = vunpack.c.h.b16 %v196
    %v955 = vunpack.c.l.b16 %v197
    %v956 = vunpack.c.h.b16 %v197
    %v957 = vunpack.c.l.b16 %v198
    %v958 = vunpack.c.h.b16 %v198
    %v959 = vunpack.c.l.b16 %v199
    %v960 = vunpack.c.h.b16 %v199
    %v961 = vunpack.c.l.b16 %v200
    %v962 = vunpack.c.h.b16 %v200
    %v963 = vunpack.c.l.b16 %v201
    %v964 = vunpack.c.h.b16 %v201
    %v965 = vunpack.c.l.b16 %v202
    %v966 = vunpack.c.h.b16 %v202
    %v967 = vunpack.c.l.b16 %v203
    %v968 = vunpack.c.h.b16 %v203
    %v969 = vunpack.c.l.b16 %v204
    %v970 = vunpack.c.h.b16 %v204
    %v971 = vunpack.c.l.b16 %v205
    %v972 = vunpack.c.h.b16 %v205
    %v973 = vunpack.c.l.b16 %v206
    %v974 = vunpack.c.h.b16 %v206
    %v975 = vunpack.c.l.b16 %v207
    %v976 = vunpack.c.h.b16 %v207
    %v977 = vunpack.c.l.b16 %v208
    %v978 = vunpack.c.h.b16 %v208
    %v979 = vunpack.c.l.b16 %v209
    %v980 = vunpack.c.h.b16 %v209
    %v981 = vunpack.c.l.b16 %v210
    %v982 = vunpack.c.h.b16 %v210
    %v983 = vunpack.c.l.b16 %v211
    %v984 = vunpack.c.h.b16 %v211
    %v985 = vunpack.c.l.b16 %v212
    %v986 = vunpack.c.h.b16 %v212
    %v987 = vunpack.c.l.b16 %v213
    %v988 = vunpack.c.h.b16 %v213
    %v989 = vunpack.c.l.b16 %v214
    %v990 = vunpack.c.h.b16 %v214
    %v991 = vunpack.c.l.b16 %v215
    %v992 = vunpack.c.h.b16 %v215
    %v993 = vunpack.c.l.b16 %v216
    %v994 = vunpack.c.h.b16 %v216
    %v995 = vunpack.c.l.b16 %v217
    %v996 = vunpack.c.h.b16 %v217
    %v997 = vunpack.c.l.b16 %v218
    %v998 = vunpack.c.h.b16 %v218
    %v999 = vunpack.c.l.b16 %v219
    %v1000 = vunpack.c.h.b16 %v219
    %v1001 = vunpack.c.l.b16 %v220
    %v1002 = vunpack.c.h.b16 %v220
    %v1003 = vunpack.c.l.b16 %v221
    %v1004 = vunpack.c.h.b16 %v221
    %v1005 = vunpack.c.l.b16 %v222
    %v1006 = vunpack.c.h.b16 %v222
    %v1007 = vunpack.c.l.b16 %v223
    %v1008 = vunpack.c.h.b16 %v223
    %v1009 = vunpack.c.l.b16 %v224
    %v1010 = vunpack.c.h.b16 %v224
    %v1011 = vunpack.c.l.b16 %v225
    %v1012 = vunpack.c.h.b16 %v225
    %v1013 = vunpack.c.l.b16 %v226
    %v1014 = vunpack.c.h.b16 %v226
    %v1015 = vunpack.c.l.b16 %v227
    %v1016 = vunpack.c.h.b16 %v227
    %v1017 = vunpack.c.l.b16 %v228
    %v1018 = vunpack.c.h.b16 %v228
    %v1019 = vunpack.c.l.b16 %v229
    %v1020 = vunpack.c.h.b16 %v229
    %v1021 = vunpack.c.l.b16 %v230
    %v1022 = vunpack.c.h.b16 %v230
    %v1023 = vunpack.c.l.b16 %v231
    %v1024 = vunpack.c.h.b16 %v231
    %v1025 = vunpack.c.l.b16 %v232
    %v1026 = vunpack.c.h.b16 %v232
    %v1027 = vunpack.c.l.b16 %v233
    %v1028 = vunpack.c.h.b16 %v233
    %v1029 = vunpack.c.l.b16 %v234
    %v1030 = vunpack.c.h.b16 %v234
    %v1031 = vunpack.c.l.b16 %v235
    %v1032 = vunpack.c.h.b16 %v235
    %v1033 = vunpack.c.l.b16 %v236
    %v1034 = vunpack.c.h.b16 %v236
    %v1035 = vunpack.c.l.b16 %v237
    %v1036 = vunpack.c.h.b16 %v237
    %v1037 = vunpack.c.l.b16 %v238
    %v1038 = vunpack.c.h.b16 %v238
    %v1039 = vunpack.c.l.b16 %v239
    %v1040 = vunpack.c.h.b16 %v239
    %v1041 = vunpack.c.l.b16 %v240
    %v1042 = vunpack.c.h.b16 %v240
    %v1043 = vunpack.c.l.b16 %v241
    %v1044 = vunpack.c.h.b16 %v241
    %v1045 = vunpack.c.l.b16 %v242
    %v1046 = vunpack.c.h.b16 %v242
    %v1047 = vunpack.c.l.b16 %v243
    %v1048 = vunpack.c.h.b16 %v243
    %v1049 = vunpack.c.l.b16 %v244
    %v1050 = vunpack.c.h.b16 %v244
    %v1051 = vunpack.c.l.b16 %v245
    %v1052 = vunpack.c.h.b16 %v245
    %v1053 = vunpack.c.l.b16 %v246
    %v1054 = vunpack.c.h.b16 %v246
    %v1055 = vunpack.c.l.b16 %v247
    %v1056 = vunpack.c.h.b16 %v247
    %v1057 = vunpack.c.l.b16 %v248
    %v1058 = vunpack.c.h.b16 %v248
    %v1059 = vunpack.c.l.b16 %v249
    %v1060 = vunpack.c.h.b16 %v249
    %v1061 = vunpack.c.l.b16 %v250
    %v1062 = vunpack.c.h.b16 %v250
    %v1063 = vunpack.c.l.b16 %v251
    %v1064 = vunpack.c.h.b16 %v251
    %v1065 = vunpack.c.l.b16 %v252
    %v1066 = vunpack.c.h.b16 %v252
    %v1067 = vunpack.c.l.b16 %v253
    %v1068 = vunpack.c.h.b16 %v253
    %v1069 = vunpack.c.l.b16 %v254
    %v1070 = vunpack.c.h.b16 %v254
    %v1071 = vunpack.c.l.b16 %v255
    %v1072 = vunpack.c.h.b16 %v255
    %v1073 = vunpack.c.l.b16 %v256
    %v1074 = vunpack.c.h.b16 %v256
    %v1075 = vunpack.c.l.b16 %v257
    %v1076 = vunpack.c.h.b16 %v257
    %v1077 = vunpack.c.l.b16 %v258
    %v1078 = vunpack.c.h.b16 %v258
    %v1079 = vunpack.c.l.b16 %v259
    %v1080 = vunpack.c.h.b16 %v259
    %v1081 = vunpack.c.l.b16 %v260
    %v1082 = vunpack.c.h.b16 %v260
    %v1083 = vunpack.c.l.b16 %v261
    %v1084 = vunpack.c.h.b16 %v261
    %v1085 = vunpack.c.l.b16 %v262
    %v1086 = vunpack.c.h.b16 %v262
    %v1087 = vunpack.c.l.b16 %v263
    %v1088 = vunpack.c.h.b16 %v263
    %v1089 = vunpack.c.l.b16 %v264
    %v1090 = vunpack.c.h.b16 %v264
    %v1091 = vunpack.c.l.b16 %v265
    %v1092 = vunpack.c.h.b16 %v265
    %v1093 = vunpack.c.l.b16 %v266
    %v1094 = vunpack.c.h.b16 %v266
    %v1095 = vunpack.c.l.b16 %v267
    %v1096 = vunpack.c.h.b16 %v267
    %v1097 = vunpack.c.l.b16 %v268
    %v1098 = vunpack.c.h.b16 %v268
    %v1099 = vunpack.c.l.b16 %v269
    %v1100 = vunpack.c.h.b16 %v269
    %v1101 = vunpack.c.l.b16 %v270
    %v1102 = vunpack.c.h.b16 %v270
    %v1103 = vunpack.c.l.b16 %v271
    %v1104 = vunpack.c.h.b16 %v271
    %v1105 = vunpack.c.l.b16 %v272
    %v1106 = vunpack.c.h.b16 %v272
    %v1107 = vunpack.c.l.b16 %v273
    %v1108 = vunpack.c.h.b16 %v273
    %v1109 = vunpack.c.l.b16 %v274
    %v1110 = vunpack.c.h.b16 %v274
    %v1111 = vunpack.c.l.b16 %v275
    %v1112 = vunpack.c.h.b16 %v275
    %v1113 = vunpack.c.l.b16 %v276
    %v1114 = vunpack.c.h.b16 %v276
    %v1115 = vunpack.c.l.b16 %v277
    %v1116 = vunpack.c.h.b16 %v277
    %v1117 = vunpack.c.l.b16 %v278
    %v1118 = vunpack.c.h.b16 %v278
    %v1119 = vunpack.c.l.b16 %v279
    %v1120 = vunpack.c.h.b16 %v279
    %v1121 = vunpack.c.l.b16 %v280
    %v1122 = vunpack.c.h.b16 %v280
    %v1123 = vunpack.c.l.b16 %v281
    %v1124 = vunpack.c.h.b16 %v281
    %v1125 = vunpack.c.l.b16 %v282
    %v1126 = vunpack.c.h.b16 %v282
    %v1127 = vunpack.c.l.b16 %v283
    %v1128 = vunpack.c.h.b16 %v283
    %v1129 = vunpack.c.l.b16 %v284
    %v1130 = vunpack.c.h.b16 %v284
    %v1131 = vunpack.c.l.b16 %v285
    %v1132 = vunpack.c.h.b16 %v285
    %v1133 = vunpack.c.l.b16 %v286
    %v1134 = vunpack.c.h.b16 %v286
    %v1135 = vunpack.c.l.b16 %v287
    %v1136 = vunpack.c.h.b16 %v287
    %v1137 = vunpack.c.l.b16 %v288
    %v1138 = vunpack.c.h.b16 %v288
    %v1139 = vunpack.c.l.b16 %v289
    %v1140 = vunpack.c.h.b16 %v289
    %v1141 = vunpack.c.l.b16 %v290
    %v1142 = vunpack.c.h.b16 %v290
    %v1143 = vunpack.c.l.b16 %v291
    %v1144 = vunpack.c.h.b16 %v291
    %v1145 = vunpack.c.l.b16 %v292
    %v1146 = vunpack.c.h.b16 %v292
    %v1147 = vunpack.c.l.b16 %v293
    %v1148 = vunpack.c.h.b16 %v293
    %v1149 = vunpack.c.l.b16 %v294
    %v1150 = vunpack.c.h.b16 %v294
    %v1151 = vunpack.c.l.b16 %v295
    %v1152 = vunpack.c.h.b16 %v295
    %v1153 = vunpack.c.l.b16 %v296
    %v1154 = vunpack.c.h.b16 %v296
    %v1155 = vunpack.c.l.b16 %v297
    %v1156 = vunpack.c.h.b16 %v297
    %v1157 = vunpack.c.l.b16 %v298
    %v1158 = vunpack.c.h.b16 %v298
    %v1159 = vunpack.c.l.b16 %v299
    %v1160 = vunpack.c.h.b16 %v299
    %v1161 = vunpack.c.l.b16 %v300
    %v1162 = vunpack.c.h.b16 %v300
    %v1163 = vunpack.c.l.b16 %v301
    %v1164 = vunpack.c.h.b16 %v301
    %v1165 = vunpack.c.l.b16 %v302
    %v1166 = vunpack.c.h.b16 %v302
    %v1167 = vunpack.c.l.b16 %v303
    %v1168 = vunpack.c.h.b16 %v303
    %v1169 = vunpack.c.l.b16 %v304
    %v1170 = vunpack.c.h.b16 %v304
    %v1171 = vunpack.c.l.b16 %v305
    %v1172 = vunpack.c.h.b16 %v305
    %v1173 = vunpack.c.l.b16 %v306
    %v1174 = vunpack.c.h.b16 %v306
    %v1175 = vunpack.c.l.b16 %v307
    %v1176 = vunpack.c.h.b16 %v307
    %v1177 = vunpack.c.l.b16 %v308
    %v1178 = vunpack.c.h.b16 %v308
    %v1179 = vunpack.c.l.b16 %v309
    %v1180 = vunpack.c.h.b16 %v309
    %v1181 = vunpack.c.l.b16 %v310
    %v1182 = vunpack.c.h.b16 %v310
    %v1183 = vunpack.c.l.b16 %v311
    %v1184 = vunpack.c.h.b16 %v311
    %v1185 = vunpack.c.l.b16 %v312
    %v1186 = vunpack.c.h.b16 %v312
    %v1187 = vunpack.c.l.b16 %v313
    %v1188 = vunpack.c.h.b16 %v313
    %v1189 = vunpack.c.l.b16 %v314
    %v1190 = vunpack.c.h.b16 %v314
    %v1191 = vunpack.c.l.b16 %v315
    %v1192 = vunpack.c.h.b16 %v315
    %v1193 = vunpack.c.l.b16 %v316
    %v1194 = vunpack.c.h.b16 %v316
    %v1195 = vunpack.c.l.b16 %v317
    %v1196 = vunpack.c.h.b16 %v317
    %v1197 = vunpack.c.l.b16 %v318
    %v1198 = vunpack.c.h.b16 %v318
    %v1199 = vunpack.c.l.b16 %v319
    %v1200 = vunpack.c.h.b16 %v319
    %v1201 = vunpack.c.l.b16 %v320
    %v1202 = vunpack.c.h.b16 %v320
    %v1203 = vunpack.c.l.b16 %v321
    %v1204 = vunpack.c.h.b16 %v321
    %v1205 = vunpack.c.l.b16 %v322
    %v1206 = vunpack.c.h.b16 %v322
    %v1207 = vunpack.c.l.b16 %v323
    %v1208 = vunpack.c.h.b16 %v323
    %v1209 = vunpack.c.l.b16 %v324
    %v1210 = vunpack.c.h.b16 %v324
    %v1211 = vunpack.c.l.b16 %v325
    %v1212 = vunpack.c.h.b16 %v325
    %v1213 = vunpack.c.l.b16 %v326
    %v1214 = vunpack.c.h.b16 %v326
    %v1215 = vunpack.c.l.b16 %v327
    %v1216 = vunpack.c.h.b16 %v327
    %v1217 = vunpack.c.l.b16 %v328
    %v1218 = vunpack.c.h.b16 %v328
    %v1219 = vunpack.c.l.b16 %v329
    %v1220 = vunpack.c.h.b16 %v329
    %v1221 = vunpack.c.l.b16 %v330
    %v1222 = vunpack.c.h.b16 %v330
    %v1223 = vunpack.c.l.b16 %v331
    %v1224 = vunpack.c.h.b16 %v331
    %v1225 = vunpack.c.l.b16 %v332
    %v1226 = vunpack.c.h.b16 %v332
    %v1227 = vunpack.c.l.b16 %v333
    %v1228 = vunpack.c.h.b16 %v333
    %v1229 = vunpack.c.l.b16 %v334
    %v1230 = vunpack.c.h.b16 %v334
    %v1231 = vunpack.c.l.b16 %v335
    %v1232 = vunpack.c.h.b16 %v335
    %v1233 = vunpack.c.l.b16 %v336
    %v1234 = vunpack.c.h.b16 %v336
    %v1235 = vunpack.c.l.b16 %v337
    %v1236 = vunpack.c.h.b16 %v337
    %v1237 = vunpack.c.l.b16 %v338
    %v1238 = vunpack.c.h.b16 %v338
    %v1239 = vunpack.c.l.b16 %v339
    %v1240 = vunpack.c.h.b16 %v339
    %v1241 = vunpack.c.l.b16 %v340
    %v1242 = vunpack.c.h.b16 %v340
    %v1243 = vunpack.c.l.b16 %v341
    %v1244 = vunpack.c.h.b16 %v341
    %v1245 = vunpack.c.l.b16 %v342
    %v1246 = vunpack.c.h.b16 %v342
    %v1247 = vunpack.c.l.b16 %v343
    %v1248 = vunpack.c.h.b16 %v343
    %v1249 = vunpack.c.l.b16 %v344
    %v1250 = vunpack.c.h.b16 %v344
    %v1251 = vunpack.c.l.b16 %v345
    %v1252 = vunpack.c.h.b16 %v345
    %v1253 = vunpack.c.l.b16 %v346
    %v1254 = vunpack.c.h.b16 %v346
    %v1255 = vunpack.c.l.b16 %v347
    %v1256 = vunpack.c.h.b16 %v347
    %v1257 = vunpack.c.l.b16 %v348
    %v1258 = vunpack.c.h.b16 %v348
    %v1259 = vunpack.c.l.b16 %v349
    %v1260 = vunpack.c.h.b16 %v349
    %v1261 = vunpack.c.l.b16 %v350
    %v1262 = vunpack.c.h.b16 %v350
    %v1263 = vunpack.c.l.b16 %v351
    %v1264 = vunpack.c.h.b16 %v351
    %v1265 = vunpack.c.l.b16 %v352
    %v1266 = vunpack.c.h.b16 %v352
    %v1267 = vunpack.c.l.b16 %v353
    %v1268 = vunpack.c.h.b16 %v353
    %v1269 = vunpack.c.l.b16 %v354
    %v1270 = vunpack.c.h.b16 %v354
    %v1271 = vunpack.c.l.b16 %v355
    %v1272 = vunpack.c.h.b16 %v355
    %v1273 = vunpack.c.l.b16 %v356
    %v1274 = vunpack.c.h.b16 %v356
    %v1275 = vunpack.c.l.b16 %v357
    %v1276 = vunpack.c.h.b16 %v357
    %v1277 = vunpack.c.l.b16 %v358
    %v1278 = vunpack.c.h.b16 %v358
    %v1279 = vunpack.c.l.b16 %v359
    %v1280 = vunpack.c.h.b16 %v359
    %v1281 = vunpack.c.l.b16 %v360
    %v1282 = vunpack.c.h.b16 %v360
    %v1283 = vunpack.c.l.b16 %v361
    %v1284 = vunpack.c.h.b16 %v361
    %v1285 = vunpack.c.l.b16 %v362
    %v1286 = vunpack.c.h.b16 %v362
    %v1287 = vunpack.c.l.b16 %v363
    %v1288 = vunpack.c.h.b16 %v363
    %v1289 = vunpack.c.l.b16 %v364
    %v1290 = vunpack.c.h.b16 %v364
    %v1291 = vunpack.c.l.b16 %v365
    %v1292 = vunpack.c.h.b16 %v365
    %v1293 = vunpack.c.l.b16 %v366
    %v1294 = vunpack.c.h.b16 %v366
    %v1295 = vunpack.c.l.b16 %v367
    %v1296 = vunpack.c.h.b16 %v367
    %v1297 = vunpack.c.l.b16 %v368
    %v1298 = vunpack.c.h.b16 %v368
    %v1299 = vunpack.c.l.b16 %v369
    %v1300 = vunpack.c.h.b16 %v369
    %v1301 = vunpack.c.l.b16 %v370
    %v1302 = vunpack.c.h.b16 %v370
    %v1303 = vunpack.c.l.b16 %v371
    %v1304 = vunpack.c.h.b16 %v371
    %v1305 = vunpack.c.l.b16 %v372
    %v1306 = vunpack.c.h.b16 %v372
    %v1307 = vunpack.c.l.b16 %v373
    %v1308 = vunpack.c.h.b16 %v373
    %v1309 = vunpack.c.l.b16 %v374
    %v1310 = vunpack.c.h.b16 %v374
    %v1311 = vunpack.c.l.b16 %v375
    %v1312 = vunpack.c.h.b16 %v375
    %v1313 = vunpack.c.l.b16 %v376
    %v1314 = vunpack.c.h.b16 %v376
    %v1315 = vunpack.c.l.b16 %v377
    %v1316 = vunpack.c.h.b16 %v377
    %v1317 = vunpack.c.l.b16 %v378
    %v1318 = vunpack.c.h.b16 %v378
    %v1319 = vunpack.c.l.b16 %v379
    %v1320 = vunpack.c.h.b16 %v379
    %v1321 = vunpack.c.l.b16 %v380
    %v1322 = vunpack.c.h.b16 %v380
    %v1323 = vunpack.c.l.b16 %v381
    %v1324 = vunpack.c.h.b16 %v381
    %v1325 = vunpack.c.l.b16 %v382
    %v1326 = vunpack.c.h.b16 %v382
    %v1327 = vunpack.c.l.b16 %v383
    %v1328 = vunpack.c.h.b16 %v383
    %v1329 = vunpack.c.l.b16 %v384
    %v1330 = vunpack.c.h.b16 %v384
    %v1331 = vunpack.c.l.b16 %v385
    %v1332 = vunpack.c.h.b16 %v385
    %v1333 = vunpack.c.l.b16 %v386
    %v1334 = vunpack.c.h.b16 %v386
    %v1335 = vunpack.c.l.b16 %v387
    %v1336 = vunpack.c.h.b16 %v387
    %v1337 = vunpack.c.l.b16 %v388
    %v1338 = vunpack.c.h.b16 %v388
    %v1339 = vpack.c.b16 %v769, %v763
    %v1340 = vpack.c.b16 %v770, %v764
    %v1341 = vpack.c.b16 %v771, %v765
    %v1342 = vpack.c.b16 %v772, %v766
    %v1343 = vpack.c.b16 %v773, %v767
    %v1344 = vpack.c.b16 %v774, %v768
    %v1345 = vpack.c.b16 %v781, %v775
    %v1346 = vpack.c.b16 %v782, %v776
    %v1347 = vpack.c.b16 %v783, %v777
    %v1348 = vpack.c.b16 %v784, %v778
    %v1349 = vpack.c.b16 %v785, %v779
    %v1350 = vpack.c.b16 %v786, %v780
    %v1351 = vpack.c.b16 %v793, %v787
    %v1352 = vpack.c.b16 %v794, %v788
    %v1353 = vpack.c.b16 %v795, %v789
    %v1354 = vpack.c.b16 %v796, %v790
    %v1355 = vpack.c.b16 %v797, %v791
    %v1356 = vpack.c.b16 %v798, %v792
    %v1357 = vpack.c.b16 %v805, %v799
    %v1358 = vpack.c.b16 %v806, %v800
    %v1359 = vpack.c.b16 %v807, %v801
    %v1360 = vpack.c.b16 %v808, %v802
    %v1361 = vpack.c.b16 %v809, %v803
    %v1362 = vpack.c.b16 %v810, %v804
    %v1363 = vpack.c.b16 %v817, %v811
    %v1364 = vpack.c.b16 %v818, %v812
    %v1365 = vpack.c.b16 %v819, %v813
    %v1366 = vpack.c.b16 %v820, %v814
    %v1367 = vpack.c.b16 %v821, %v815
    %v1368 = vpack.c.b16 %v822, %v816
    %v1369 = vpack.c.b16 %v829, %v823
    %v1370 = vpack.c.b16 %v830, %v824
    %v1371 = vpack.c.b16 %v831, %v825
    %v1372 = vpack.c.b16 %v832, %v826
    %v1373 = vpack.c.b16 %v833, %v827
    %v1374 = vpack.c.b16 %v834, %v828
    %v1375 = vpack.c.b16 %v841, %v835
    %v1376 = vpack.c.b16 %v842, %v836
    %v1377 = vpack.c.b16 %v843, %v837
    %v1378 = vpack.c.b16 %v844, %v838
    %v1379 = vpack.c.b16 %v845, %v839
    %v1380 = vpack.c.b16 %v846, %v840
    %v1381 = vpack.c.b16 %v853, %v847
    %v1382 = vpack.c.b16 %v854, %v848
    %v1383 = vpack.c.b16 %v855, %v849
    %v1384 = vpack.c.b16 %v856, %v850
    %v1385 = vpack.c.b16 %v857, %v851
    %v1386 = vpack.c.b16 %v858, %v852
    %v1387 = vpack.c.b16 %v865, %v859
    %v1388 = vpack.c.b16 %v866, %v860
    %v1389 = vpack.c.b16 %v867, %v861
    %v1390 = vpack.c.b16 %v868, %v862
    %v1391 = vpack.c.b16 %v869, %v863
    %v1392 = vpack.c.b16 %v870, %v864
    %v1393 = vpack.c.b16 %v877, %v871
    %v1394 = vpack.c.b16 %v878, %v872
    %v1395 = vpack.c.b16 %v879, %v873
    %v1396 = vpack.c.b16 %v880, %v874
    %v1397 = vpack.c.b16 %v881, %v875
    %v1398 = vpack.c.b16 %v882, %v876
    %v1399 = vpack.c.b16 %v889, %v883
    %v1400 = vpack.c.b16 %v890, %v884
    %v1401 = vpack.c.b16 %v891, %v885
    %v1402 = vpack.c.b16 %v892, %v886
    %v1403 = vpack.c.b16 %v893, %v887
    %v1404 = vpack.c.b16 %v894, %v888
    %v1405 = vpack.c.b16 %v901, %v895
    %v1406 = vpack.c.b16 %v902, %v896
    %v1407 = vpack.c.b16 %v903, %v897
    %v1408 = vpack.c.b16 %v904, %v898
    %v1409 = vpack.c.b16 %v905, %v899
    %v1410 = vpack.c.b16 %v906, %v900
    %v1411 = vpack.c.b16 %v913, %v907
    %v1412 = vpack.c.b16 %v914, %v908
    %v1413 = vpack.c.b16 %v915, %v909
    %v1414 = vpack.c.b16 %v916, %v910
    %v1415 = vpack.c.b16 %v917, %v911
    %v1416 = vpack.c.b16 %v918, %v912
    %v1417 = vpack.c.b16 %v925, %v919
    %v1418 = vpack.c.b16 %v926, %v920
    %v1419 = vpack.c.b16 %v927, %v921
    %v1420 = vpack.c.b16 %v928, %v922
    %v1421 = vpack.c.b16 %v929, %v923
    %v1422 = vpack.c.b16 %v930, %v924
    %v1423 = vpack.c.b16 %v937, %v931
    %v1424 = vpack.c.b16 %v938, %v932
    %v1425 = vpack.c.b16 %v939, %v933
    %v1426 = vpack.c.b16 %v940, %v934
    %v1427 = vpack.c.b16 %v941, %v935
    %v1428 = vpack.c.b16 %v942, %v936
    %v1429 = vpack.c.b16 %v949, %v943
    %v1430 = vpack.c.b16 %v950, %v944
    %v1431 = vpack.c.b16 %v951, %v945
    %v1432 = vpack.c.b16 %v952, %v946
    %v1433 = vpack.c.b16 %v953, %v947
    %v1434 = vpack.c.b16 %v954, %v948
    %v1435 = vpack.c.b16 %v961, %v955
    %v1436 = vpack.c.b16 %v962, %v956
    %v1437 = vpack.c.b16 %v963, %v957
    %v1438 = vpack.c.b16 %v964, %v958
    %v1439 = vpack.c.b16 %v965, %v959
    %v1440 = vpack.c.b16 %v966, %v960
    %v1441 = vpack.c.b16 %v973, %v967
    %v1442 = vpack.c.b16 %v974, %v968
    %v1443 = vpack.c.b16 %v975, %v969
    %v1444 = vpack.c.b16 %v976, %v970
    %v1445 = vpack.c.b16 %v977, %v971
    %v1446 = vpack.c.b16 %v978, %v972
    %v1447 = vpack.c.b16 %v985, %v979
    %v1448 = vpack.c.b16 %v986, %v980
    %v1449 = vpack.c.b16 %v987, %v981
    %v1450 = vpack.c.b16 %v988, %v982
    %v1451 = vpack.c.b16 %v989, %v983
    %v1452 = vpack.c.b16 %v990, %v984
    %v1453 = vpack.c.b16 %v997, %v991
    %v1454 = vpack.c.b16 %v998, %v992
    %v1455 = vpack.c.b16 %v999, %v993
    %v1456 = vpack.c.b16 %v1000, %v994
    %v1457 = vpack.c.b16 %v1001, %v995
    %v1458 = vpack.c.b16 %v1002, %v996
    %v1459 = vpack.c.b16 %v1009, %v1003
    %v1460 = vpack.c.b16 %v1010, %v1004
    %v1461 = vpack.c.b16 %v1011, %v1005
    %v1462 = vpack.c.b16 %v1012, %v1006
    %v1463 = vpack.c.b16 %v1013, %v1007
    %v1464 = vpack.c.b16 %v1014, %v1008
    %v1465 = vpack.c.b16 %v1021, %v1015
    %v1466 = vpack.c.b16 %v1022, %v1016
    %v1467 = vpack.c.b16 %v1023, %v1017
    %v1468 = vpack.c.b16 %v1024, %v1018
    %v1469 = vpack.c.b16 %v1025, %v1019
    %v1470 = vpack.c.b16 %v1026, %v1020
    %v1471 = vpack.c.b16 %v1033, %v1027
    %v1472 = vpack.c.b16 %v1034, %v1028
    %v1473 = vpack.c.b16 %v1035, %v1029
    %v1474 = vpack.c.b16 %v1036, %v1030
    %v1475 = vpack.c.b16 %v1037, %v1031
    %v1476 = vpack.c.b16 %v1038, %v1032
    %v1477 = vpack.c.b16 %v1045, %v1039
    %v1478 = vpack.c.b16 %v1046, %v1040
    %v1479 = vpack.c.b16 %v1047, %v1041
    %v1480 = vpack.c.b16 %v1048, %v1042
    %v1481 = vpack.c.b16 %v1049, %v1043
    %v1482 = vpack.c.b16 %v1050, %v1044
    %v1483 = vpack.c.b16 %v1057, %v1051
    %v1484 = vpack.c.b16 %v1058, %v1052
    %v1485 = vpack.c.b16 %v1059, %v1053
    %v1486 = vpack.c.b16 %v1060, %v1054
    %v1487 = vpack.c.b16 %v1061, %v1055
    %v1488 = vpack.c.b16 %v1062, %v1056
    %v1489 = vpack.c.b16 %v1069, %v1063
    %v1490 = vpack.c.b16 %v1070, %v1064
    %v1491 = vpack.c.b16 %v1071, %v1065
    %v1492 = vpack.c.b16 %v1072, %v1066
    %v1493 = vpack.c.b16 %v1073, %v1067
    %v1494 = vpack.c.b16 %v1074, %v1068
    %v1495 = vpack.c.b16 %v1081, %v1075
    %v1496 = vpack.c.b16 %v1082, %v1076
    %v1497 = vpack.c.b16 %v1083, %v1077
    %v1498 = vpack.c.b16 %v1084, %v1078
    %v1499 = vpack.c.b16 %v1085, %v1079
    %v1500 = vpack.c.b16 %v1086, %v1080
    %v1501 = vpack.c.b16 %v1093, %v1087
    %v1502 = vpack.c.b16 %v1094, %v1088
    %v1503 = vpack.c.b16 %v1095, %v1089
    %v1504 = vpack.c.b16 %v1096, %v1090
    %v1505 = vpack.c.b16 %v1097, %v1091
    %v1506 = vpack.c.b16 %v1098, %v1092
    %v1507 = vpack.c.b16 %v1105, %v1099
    %v1508 = vpack.c.b16 %v1106, %v1100
    %v1509 = vpack.c.b16 %v1107, %v1101
    %v1510 = vpack.c.b16 %v1108, %v1102
    %v1511 = vpack.c.b16 %v1109, %v1103
    %v1512 = vpack.c.b16 %v1110, %v1104
    %v1513 = vpack.c.b16 %v1117, %v1111
    %v1514 = vpack.c.b16 %v1118, %v1112
    %v1515 = vpack.c.b16 %v1119, %v1113
    %v1516 = vpack.c.b16 %v1120, %v1114
    %v1517 = vpack.c.b16 %v1121, %v1115
    %v1518 = vpack.c.b16 %v1122, %v1116
    %v1519 = vpack.c.b16 %v1129, %v1123
    %v1520 = vpack.c.b16 %v1130, %v1124
    %v1521 = vpack.c.b16 %v1131, %v1125
    %v1522 = vpack.c.b16 %v1132, %v1126
    %v1523 = vpack.c.b16 %v1133, %v1127
    %v1524 = vpack.c.b16 %v1134, %v1128
    %v1525 = vpack.c.b16 %v1141, %v1135
    %v1526 = vpack.c.b16 %v1142, %v1136
    %v1527 = vpack.c.b16 %v1143, %v1137
    %v1528 = vpack.c.b16 %v1144, %v1138
    %v1529 = vpack.c.b16 %v1145, %v1139
    %v1530 = vpack.c.b16 %v1146, %v1140
    %v1531 = vpack.c.b16 %v1153, %v1147
    %v1532 = vpack.c.b16 %v1154, %v1148
    %v1533 = vpack.c.b16 %v1155, %v1149
    %v1534 = vpack.c.b16 %v1156, %v1150
    %v1535 = vpack.c.b16 %v1157, %v1151
    %v1536 = vpack.c.b16 %v1158, %v1152
    %v1537 = vpack.c.b16 %v1165, %v1159
    %v1538 = vpack.c.b16 %v1166, %v1160
    %v1539 = vpack.c.b16 %v1167, %v1161
    %v1540 = vpack.c.b16 %v1168, %v1162
    %v1541 = vpack.c.b16 %v1169, %v1163
    %v1542 = vpack.c.b16 %v1170, %v1164
    %v1543 = vpack.c.b16 %v1177, %v1171
    %v1544 = vpack.c.b16 %v1178, %v1172
    %v1545 = vpack.c.b16 %v1179, %v1173
    %v1546 = vpack.c.b16 %v1180, %v1174
    %v1547 = vpack.c.b16 %v1181, %v1175
    %v1548 = vpack.c.b16 %v1182, %v1176
    %v1549 = vpack.c.b16 %v1189, %v1183
    %v1550 = vpack.c.b16 %v1190, %v1184
    %v1551 = vpack.c.b16 %v1191, %v1185
    %v1552 = vpack.c.b16 %v1192, %v1186
    %v1553 = vpack.c.b16 %v1193, %v1187
    %v1554 = vpack.c.b16 %v1194, %v1188
    %v1555 = vpack.c.b16 %v1201, %v1195
    %v1556 = vpack.c.b16 %v1202, %v1196
    %v1557 = vpack.c.b16 %v1203, %v1197
    %v1558 = vpack.c.b16 %v1204, %v1198
    %v1559 = vpack.c.b16 %v1205, %v1199
    %v1560 = vpack.c.b16 %v1206, %v1200
    %v1561 = vpack.c.b16 %v1213, %v1207
    %v1562 = vpack.c.b16 %v1214, %v1208
    %v1563 = vpack.c.b16 %v1215, %v1209
    %v1564 = vpack.c.b16 %v1216, %v1210
    %v1565 = vpack.c.b16 %v1217, %v1211
    %v1566 = vpack.c.b16 %v1218, %v1212
    %v1567 = vpack.c.b16 %v1225, %v1219
    %v1568 = vpack.c.b16 %v1226, %v1220
    %v1569 = vpack.c.b16 %v1227, %v1221
    %v1570 = vpack.c.b16 %v1228, %v1222
    %v1571 = vpack.c.b16 %v1229, %v1223
    %v1572 = vpack.c.b16 %v1230, %v1224
    %v1573 = vpack.c.b16 %v1237, %v1231
    %v1574 = vpack.c.b16 %v1238, %v1232
    %v1575 = vpack.c.b16 %v1239, %v1233
    %v1576 = vpack.c.b16 %v1240, %v1234
    %v1577 = vpack.c.b16 %v1241, %v1235
    %v1578 = vpack.c.b16 %v1242, %v1236
    %v1579 = vpack.c.b16 %v1249, %v1243
    %v1580 = vpack.c.b16 %v1250, %v1244
    %v1581 = vpack.c.b16 %v1251, %v1245
    %v1582 = vpack.c.b16 %v1252, %v1246
    %v1583 = vpack.c.b16 %v1253, %v1247
    %v1584 = vpack.c.b16 %v1254, %v1248
    %v1585 = vpack.c.b16 %v1261, %v1255
    %v1586 = vpack.c.b16 %v1262, %v1256
    %v1587 = vpack.c.b16 %v1263, %v1257
    %v1588 = vpack.c.b16 %v1264, %v1258
    %v1589 = vpack.c.b16 %v1265, %v1259
    %v1590 = vpack.c.b16 %v1266, %v1260
    %v1591 = vpack.c.b16 %v1273, %v1267
    %v1592 = vpack.c.b16 %v1274, %v1268
    %v1593 = vpack.c.b16 %v1275, %v1269
    %v1594 = vpack.c.b16 %v1276, %v1270
    %v1595 = vpack.c.b16 %v1277, %v1271
    %v1596 = vpack.c.b16 %v1278, %v1272
    %v1597 = vpack.c.b16 %v1285, %v1279
    %v1598 = vpack.c.b16 %v1286, %v1280
    %v1599 = vpack.c.b16 %v1287, %v1281
    %v1600 = vpack.c.b16 %v1288, %v1282
    %v1601 = vpack.c.b16 %v1289, %v1283
    %v1602 = vpack.c.b16 %v1290, %v1284
    %v1603 = vpack.c.b16 %v1297, %v1291
    %v1604 = vpack.c.b16 %v1298, %v1292
    %v1605 = vpack.c.b16 %v1299, %v1293
    %v1606 = vpack.c.b16 %v1300, %v1294
    %v1607 = vpack.c.b16 %v1301, %v1295
    %v1608 = vpack.c.b16 %v1302, %v1296
    %v1609 = vpack.c.b16 %v1309, %v1303
    %v1610 = vpack.c.b16 %v1310, %v1304
    %v1611 = vpack.c.b16 %v1311, %v1305
    %v1612 = vpack.c.b16 %v1312, %v1306
    %v1613 = vpack.c.b16 %v1313, %v1307
    %v1614 = vpack.c.b16 %v1314, %v1308
    %v1615 = vpack.c.b16 %v1321, %v1315
    %v1616 = vpack.c.b16 %v1322, %v1316
    %v1617 = vpack.c.b16 %v1323, %v1317
    %v1618 = vpack.c.b16 %v1324, %v1318
    %v1619 = vpack.c.b16 %v1325, %v1319
    %v1620 = vpack.c.b16 %v1326, %v1320
    %v1621 = vpack.c.b16 %v1333, %v1327
    %v1622 = vpack.c.b16 %v1334, %v1328
    %v1623 = vpack.c.b16 %v1335, %v1329
    %v1624 = vpack.c.b16 %v1336, %v1330
    %v1625 = vpack.c.b16 %v1337, %v1331
    %v1626 = vpack.c.b16 %v1338, %v1332
    %1915 = vmatprep.subr.bf16.mxu0 %v1382
    %1916 = vmatpush1.bf16.msra.mxu0 %v1381
    %1917 = vmatprep.subr.bf16.mxu0 %v1376
    %1918 = vmatpush1.bf16.msra.mxu0 %v1375
    %1919 = vmatprep.subr.bf16.mxu0 %v1370
    %1920 = vmatpush1.bf16.msra.mxu0 %v1369
    %1921 = vmatprep.subr.bf16.mxu0 %v1364
    %1922 = vmatpush1.bf16.msra.mxu0 %v1363
    %1923 = vmatprep.subr.bf16.mxu0 %v1358
    %1924 = vmatpush1.bf16.msra.mxu0 %v1357
    %1925 = vmatprep.subr.bf16.mxu0 %v1352
    %1926 = vmatpush1.bf16.msra.mxu0 %v1351
    %1927 = vmatprep.subr.bf16.mxu0 %v1346
    %1928 = vmatpush1.bf16.msra.mxu0 %v1345
    %1929 = vmatprep.subr.bf16.mxu0 %v1340
    %1930 = vmatpush1.bf16.msra.mxu0 %v1339
    %1931 = vmatprep.subr.bf16.mxu0 %v1430
    %1932 = vmatpush2.bf16.msra.mxu0 %v1429
    %1933 = vmatprep.subr.bf16.mxu0 %v1424
    %1934 = vmatpush2.bf16.msra.mxu0 %v1423
    %1935 = vmatprep.subr.bf16.mxu0 %v1418
    %1936 = vmatpush2.bf16.msra.mxu0 %v1417
    %1937 = vmatprep.subr.bf16.mxu0 %v1412
    %1938 = vmatpush2.bf16.msra.mxu0 %v1411
    %1939 = vmatprep.subr.bf16.mxu0 %v1406
    %1940 = vmatpush2.bf16.msra.mxu0 %v1405
    %1941 = vmatprep.subr.bf16.mxu0 %v1400
    %1942 = vmatpush2.bf16.msra.mxu0 %v1399
    %1943 = vmatprep.subr.bf16.mxu0 %v1394
    %1944 = vmatpush2.bf16.msra.mxu0 %v1393
    %1945 = vmatprep.subr.bf16.mxu0 %v1388
    %1946 = vmatpush2.bf16.msra.mxu0 %v1387
    %1947 = vmatprep.mubr.bf16.mxu0 %v464
    %1948 = vmatmul.mubr.bf16.gmra.mxu0 %v463
    %v1949 = vpop.f32.mrf.mxu0
    %v1950 = vadd.f32 %v418, %v1949
    %v1951 = vpop.f32.mrf.mxu0
    %v1952 = vadd.f32 %v422, %v1951
    %v1953 = vpop.f32.mrf.mxu0
    %v1954 = vadd.f32 %v418, %v1953
    %v1955 = vpop.f32.mrf.mxu0
    %v1956 = vadd.f32 %v422, %v1955
    %1957 = vdwg.mxu0
    %1958 = vmatprep.subr.bf16.mxu0 %v1478
    %1959 = vmatpush1.bf16.msra.mxu0 %v1477
    %1960 = vmatprep.subr.bf16.mxu0 %v1472
    %1961 = vmatpush1.bf16.msra.mxu0 %v1471
    %1962 = vmatprep.subr.bf16.mxu0 %v1466
    %1963 = vmatpush1.bf16.msra.mxu0 %v1465
    %1964 = vmatprep.subr.bf16.mxu0 %v1460
    %1965 = vmatpush1.bf16.msra.mxu0 %v1459
    %1966 = vmatprep.subr.bf16.mxu0 %v1454
    %1967 = vmatpush1.bf16.msra.mxu0 %v1453
    %1968 = vmatprep.subr.bf16.mxu0 %v1448
    %1969 = vmatpush1.bf16.msra.mxu0 %v1447
    %1970 = vmatprep.subr.bf16.mxu0 %v1442
    %1971 = vmatpush1.bf16.msra.mxu0 %v1441
    %1972 = vmatprep.subr.bf16.mxu0 %v1436
    %1973 = vmatpush1.bf16.msra.mxu0 %v1435
    %1974 = vmatprep.subr.bf16.mxu0 %v1526
    %1975 = vmatpush2.bf16.msra.mxu0 %v1525
    %1976 = vmatprep.subr.bf16.mxu0 %v1520
    %1977 = vmatpush2.bf16.msra.mxu0 %v1519
    %1978 = vmatprep.subr.bf16.mxu0 %v1514
    %1979 = vmatpush2.bf16.msra.mxu0 %v1513
    %1980 = vmatprep.subr.bf16.mxu0 %v1508
    %1981 = vmatpush2.bf16.msra.mxu0 %v1507
    %1982 = vmatprep.subr.bf16.mxu0 %v1502
    %1983 = vmatpush2.bf16.msra.mxu0 %v1501
    %1984 = vmatprep.subr.bf16.mxu0 %v1496
    %1985 = vmatpush2.bf16.msra.mxu0 %v1495
    %1986 = vmatprep.subr.bf16.mxu0 %v1490
    %1987 = vmatpush2.bf16.msra.mxu0 %v1489
    %1988 = vmatprep.subr.bf16.mxu0 %v1484
    %1989 = vmatpush2.bf16.msra.mxu0 %v1483
    %1990 = vmatprep.mubr.bf16.mxu0 %v466
    %1991 = vmatmul.mubr.bf16.gmra.mxu0 %v465
    %v1992 = vpop.f32.mrf.mxu0
    %v1993 = vadd.f32 %v1950, %v1992
    %v1994 = vpop.f32.mrf.mxu0
    %v1995 = vadd.f32 %v1952, %v1994
    %v1996 = vpop.f32.mrf.mxu0
    %v1997 = vadd.f32 %v1954, %v1996
    %v1998 = vpop.f32.mrf.mxu0
    %v1999 = vadd.f32 %v1956, %v1998
    %2000 = vdwg.mxu0
    %2001 = vmatprep.subr.bf16.mxu0 %v1574
    %2002 = vmatpush1.bf16.msra.mxu0 %v1573
    %2003 = vmatprep.subr.bf16.mxu0 %v1568
    %2004 = vmatpush1.bf16.msra.mxu0 %v1567
    %2005 = vmatprep.subr.bf16.mxu0 %v1562
    %2006 = vmatpush1.bf16.msra.mxu0 %v1561
    %2007 = vmatprep.subr.bf16.mxu0 %v1556
    %2008 = vmatpush1.bf16.msra.mxu0 %v1555
    %2009 = vmatprep.subr.bf16.mxu0 %v1550
    %2010 = vmatpush1.bf16.msra.mxu0 %v1549
    %2011 = vmatprep.subr.bf16.mxu0 %v1544
    %2012 = vmatpush1.bf16.msra.mxu0 %v1543
    %2013 = vmatprep.subr.bf16.mxu0 %v1538
    %2014 = vmatpush1.bf16.msra.mxu0 %v1537
    %2015 = vmatprep.subr.bf16.mxu0 %v1532
    %2016 = vmatpush1.bf16.msra.mxu0 %v1531
    %2017 = vmatprep.subr.bf16.mxu0 %v1622
    %2018 = vmatpush2.bf16.msra.mxu0 %v1621
    %2019 = vmatprep.subr.bf16.mxu0 %v1616
    %2020 = vmatpush2.bf16.msra.mxu0 %v1615
    %2021 = vmatprep.subr.bf16.mxu0 %v1610
    %2022 = vmatpush2.bf16.msra.mxu0 %v1609
    %2023 = vmatprep.subr.bf16.mxu0 %v1604
    %2024 = vmatpush2.bf16.msra.mxu0 %v1603
    %2025 = vmatprep.subr.bf16.mxu0 %v1598
    %2026 = vmatpush2.bf16.msra.mxu0 %v1597
    %2027 = vmatprep.subr.bf16.mxu0 %v1592
    %2028 = vmatpush2.bf16.msra.mxu0 %v1591
    %2029 = vmatprep.subr.bf16.mxu0 %v1586
    %2030 = vmatpush2.bf16.msra.mxu0 %v1585
    %2031 = vmatprep.subr.bf16.mxu0 %v1580
    %2032 = vmatpush2.bf16.msra.mxu0 %v1579
    %2033 = vmatprep.mubr.bf16.mxu0 %v468
    %2034 = vmatmul.mubr.bf16.gmra.mxu0 %v467
    %v2035 = vpop.f32.mrf.mxu0
    %v2036 = vadd.f32 %v1993, %v2035
    %v2037 = vpop.f32.mrf.mxu0
    %v2038 = vadd.f32 %v1995, %v2037
    %v2039 = vpop.f32.mrf.mxu0
    %v2040 = vadd.f32 %v1997, %v2039
    %v2041 = vpop.f32.mrf.mxu0
    %v2042 = vadd.f32 %v1999, %v2041
    %2043 = vdwg.mxu0
    %2044 = vmatprep.subr.bf16.mxu0 %v1384
    %2045 = vmatpush1.bf16.msra.mxu0 %v1383
    %2046 = vmatprep.subr.bf16.mxu0 %v1378
    %2047 = vmatpush1.bf16.msra.mxu0 %v1377
    %2048 = vmatprep.subr.bf16.mxu0 %v1372
    %2049 = vmatpush1.bf16.msra.mxu0 %v1371
    %2050 = vmatprep.subr.bf16.mxu0 %v1366
    %2051 = vmatpush1.bf16.msra.mxu0 %v1365
    %2052 = vmatprep.subr.bf16.mxu0 %v1360
    %2053 = vmatpush1.bf16.msra.mxu0 %v1359
    %2054 = vmatprep.subr.bf16.mxu0 %v1354
    %2055 = vmatpush1.bf16.msra.mxu0 %v1353
    %2056 = vmatprep.subr.bf16.mxu0 %v1348
    %2057 = vmatpush1.bf16.msra.mxu0 %v1347
    %2058 = vmatprep.subr.bf16.mxu0 %v1342
    %2059 = vmatpush1.bf16.msra.mxu0 %v1341
    %2060 = vmatprep.subr.bf16.mxu0 %v1432
    %2061 = vmatpush2.bf16.msra.mxu0 %v1431
    %2062 = vmatprep.subr.bf16.mxu0 %v1426
    %2063 = vmatpush2.bf16.msra.mxu0 %v1425
    %2064 = vmatprep.subr.bf16.mxu0 %v1420
    %2065 = vmatpush2.bf16.msra.mxu0 %v1419
    %2066 = vmatprep.subr.bf16.mxu0 %v1414
    %2067 = vmatpush2.bf16.msra.mxu0 %v1413
    %2068 = vmatprep.subr.bf16.mxu0 %v1408
    %2069 = vmatpush2.bf16.msra.mxu0 %v1407
    %2070 = vmatprep.subr.bf16.mxu0 %v1402
    %2071 = vmatpush2.bf16.msra.mxu0 %v1401
    %2072 = vmatprep.subr.bf16.mxu0 %v1396
    %2073 = vmatpush2.bf16.msra.mxu0 %v1395
    %2074 = vmatprep.subr.bf16.mxu0 %v1390
    %2075 = vmatpush2.bf16.msra.mxu0 %v1389
    %2076 = vmatprep.mubr.bf16.mxu0 %v464
    %2077 = vmatmul.mubr.bf16.gmra.mxu0 %v463
    %v2078 = vpop.f32.mrf.mxu0
    %v2079 = vadd.f32 %v426, %v2078
    %v2080 = vpop.f32.mrf.mxu0
    %v2081 = vadd.f32 %v430, %v2080
    %v2082 = vpop.f32.mrf.mxu0
    %v2083 = vadd.f32 %v426, %v2082
    %v2084 = vpop.f32.mrf.mxu0
    %v2085 = vadd.f32 %v430, %v2084
    %2086 = vdwg.mxu0
    %2087 = vmatprep.subr.bf16.mxu0 %v1480
    %2088 = vmatpush1.bf16.msra.mxu0 %v1479
    %2089 = vmatprep.subr.bf16.mxu0 %v1474
    %2090 = vmatpush1.bf16.msra.mxu0 %v1473
    %2091 = vmatprep.subr.bf16.mxu0 %v1468
    %2092 = vmatpush1.bf16.msra.mxu0 %v1467
    %2093 = vmatprep.subr.bf16.mxu0 %v1462
    %2094 = vmatpush1.bf16.msra.mxu0 %v1461
    %2095 = vmatprep.subr.bf16.mxu0 %v1456
    %2096 = vmatpush1.bf16.msra.mxu0 %v1455
    %2097 = vmatprep.subr.bf16.mxu0 %v1450
    %2098 = vmatpush1.bf16.msra.mxu0 %v1449
    %2099 = vmatprep.subr.bf16.mxu0 %v1444
    %2100 = vmatpush1.bf16.msra.mxu0 %v1443
    %2101 = vmatprep.subr.bf16.mxu0 %v1438
    %2102 = vmatpush1.bf16.msra.mxu0 %v1437
    %2103 = vmatprep.subr.bf16.mxu0 %v1528
    %2104 = vmatpush2.bf16.msra.mxu0 %v1527
    %2105 = vmatprep.subr.bf16.mxu0 %v1522
    %2106 = vmatpush2.bf16.msra.mxu0 %v1521
    %2107 = vmatprep.subr.bf16.mxu0 %v1516
    %2108 = vmatpush2.bf16.msra.mxu0 %v1515
    %2109 = vmatprep.subr.bf16.mxu0 %v1510
    %2110 = vmatpush2.bf16.msra.mxu0 %v1509
    %2111 = vmatprep.subr.bf16.mxu0 %v1504
    %2112 = vmatpush2.bf16.msra.mxu0 %v1503
    %2113 = vmatprep.subr.bf16.mxu0 %v1498
    %2114 = vmatpush2.bf16.msra.mxu0 %v1497
    %2115 = vmatprep.subr.bf16.mxu0 %v1492
    %2116 = vmatpush2.bf16.msra.mxu0 %v1491
    %2117 = vmatprep.subr.bf16.mxu0 %v1486
    %2118 = vmatpush2.bf16.msra.mxu0 %v1485
    %2119 = vmatprep.mubr.bf16.mxu0 %v466
    %2120 = vmatmul.mubr.bf16.gmra.mxu0 %v465
    %v2121 = vpop.f32.mrf.mxu0
    %v2122 = vadd.f32 %v2079, %v2121
    %v2123 = vpop.f32.mrf.mxu0
    %v2124 = vadd.f32 %v2081, %v2123
    %v2125 = vpop.f32.mrf.mxu0
    %v2126 = vadd.f32 %v2083, %v2125
    %v2127 = vpop.f32.mrf.mxu0
    %v2128 = vadd.f32 %v2085, %v2127
    %2129 = vdwg.mxu0
    %2130 = vmatprep.subr.bf16.mxu0 %v1576
    %2131 = vmatpush1.bf16.msra.mxu0 %v1575
    %2132 = vmatprep.subr.bf16.mxu0 %v1570
    %2133 = vmatpush1.bf16.msra.mxu0 %v1569
    %2134 = vmatprep.subr.bf16.mxu0 %v1564
    %2135 = vmatpush1.bf16.msra.mxu0 %v1563
    %2136 = vmatprep.subr.bf16.mxu0 %v1558
    %2137 = vmatpush1.bf16.msra.mxu0 %v1557
    %2138 = vmatprep.subr.bf16.mxu0 %v1552
    %2139 = vmatpush1.bf16.msra.mxu0 %v1551
    %2140 = vmatprep.subr.bf16.mxu0 %v1546
    %2141 = vmatpush1.bf16.msra.mxu0 %v1545
    %2142 = vmatprep.subr.bf16.mxu0 %v1540
    %2143 = vmatpush1.bf16.msra.mxu0 %v1539
    %2144 = vmatprep.subr.bf16.mxu0 %v1534
    %2145 = vmatpush1.bf16.msra.mxu0 %v1533
    %2146 = vmatprep.subr.bf16.mxu0 %v1624
    %2147 = vmatpush2.bf16.msra.mxu0 %v1623
    %2148 = vmatprep.subr.bf16.mxu0 %v1618
    %2149 = vmatpush2.bf16.msra.mxu0 %v1617
    %2150 = vmatprep.subr.bf16.mxu0 %v1612
    %2151 = vmatpush2.bf16.msra.mxu0 %v1611
    %2152 = vmatprep.subr.bf16.mxu0 %v1606
    %2153 = vmatpush2.bf16.msra.mxu0 %v1605
    %2154 = vmatprep.subr.bf16.mxu0 %v1600
    %2155 = vmatpush2.bf16.msra.mxu0 %v1599
    %2156 = vmatprep.subr.bf16.mxu0 %v1594
    %2157 = vmatpush2.bf16.msra.mxu0 %v1593
    %2158 = vmatprep.subr.bf16.mxu0 %v1588
    %2159 = vmatpush2.bf16.msra.mxu0 %v1587
    %2160 = vmatprep.subr.bf16.mxu0 %v1582
    %2161 = vmatpush2.bf16.msra.mxu0 %v1581
    %2162 = vmatprep.mubr.bf16.mxu0 %v468
    %2163 = vmatmul.mubr.bf16.gmra.mxu0 %v467
    %v2164 = vpop.f32.mrf.mxu0
    %v2165 = vadd.f32 %v2122, %v2164
    %v2166 = vpop.f32.mrf.mxu0
    %v2167 = vadd.f32 %v2124, %v2166
    %v2168 = vpop.f32.mrf.mxu0
    %v2169 = vadd.f32 %v2126, %v2168
    %v2170 = vpop.f32.mrf.mxu0
    %v2171 = vadd.f32 %v2128, %v2170
    %2172 = vdwg.mxu0
    %2173 = vmatprep.subr.bf16.mxu0 %v1386
    %2174 = vmatpush1.bf16.msra.mxu0 %v1385
    %2175 = vmatprep.subr.bf16.mxu0 %v1380
    %2176 = vmatpush1.bf16.msra.mxu0 %v1379
    %2177 = vmatprep.subr.bf16.mxu0 %v1374
    %2178 = vmatpush1.bf16.msra.mxu0 %v1373
    %2179 = vmatprep.subr.bf16.mxu0 %v1368
    %2180 = vmatpush1.bf16.msra.mxu0 %v1367
    %2181 = vmatprep.subr.bf16.mxu0 %v1362
    %2182 = vmatpush1.bf16.msra.mxu0 %v1361
    %2183 = vmatprep.subr.bf16.mxu0 %v1356
    %2184 = vmatpush1.bf16.msra.mxu0 %v1355
    %2185 = vmatprep.subr.bf16.mxu0 %v1350
    %2186 = vmatpush1.bf16.msra.mxu0 %v1349
    %2187 = vmatprep.subr.bf16.mxu0 %v1344
    %2188 = vmatpush1.bf16.msra.mxu0 %v1343
    %2189 = vmatprep.subr.bf16.mxu0 %v1434
    %2190 = vmatpush2.bf16.msra.mxu0 %v1433
    %2191 = vmatprep.subr.bf16.mxu0 %v1428
    %2192 = vmatpush2.bf16.msra.mxu0 %v1427
    %2193 = vmatprep.subr.bf16.mxu0 %v1422
    %2194 = vmatpush2.bf16.msra.mxu0 %v1421
    %2195 = vmatprep.subr.bf16.mxu0 %v1416
    %2196 = vmatpush2.bf16.msra.mxu0 %v1415
    %2197 = vmatprep.subr.bf16.mxu0 %v1410
    %2198 = vmatpush2.bf16.msra.mxu0 %v1409
    %2199 = vmatprep.subr.bf16.mxu0 %v1404
    %2200 = vmatpush2.bf16.msra.mxu0 %v1403
    %2201 = vmatprep.subr.bf16.mxu0 %v1398
    %2202 = vmatpush2.bf16.msra.mxu0 %v1397
    %2203 = vmatprep.subr.bf16.mxu0 %v1392
    %2204 = vmatpush2.bf16.msra.mxu0 %v1391
    %2205 = vmatprep.mubr.bf16.mxu0 %v464
    %2206 = vmatmul.mubr.bf16.gmra.mxu0 %v463
    %v2207 = vpop.f32.mrf.mxu0
    %v2208 = vadd.f32 %v434, %v2207
    %v2209 = vpop.f32.mrf.mxu0
    %v2210 = vadd.f32 %v438, %v2209
    %v2211 = vpop.f32.mrf.mxu0
    %v2212 = vadd.f32 %v434, %v2211
    %v2213 = vpop.f32.mrf.mxu0
    %v2214 = vadd.f32 %v438, %v2213
    %2215 = vdwg.mxu0
    %2216 = vmatprep.subr.bf16.mxu0 %v1482
    %2217 = vmatpush1.bf16.msra.mxu0 %v1481
    %2218 = vmatprep.subr.bf16.mxu0 %v1476
    %2219 = vmatpush1.bf16.msra.mxu0 %v1475
    %2220 = vmatprep.subr.bf16.mxu0 %v1470
    %2221 = vmatpush1.bf16.msra.mxu0 %v1469
    %2222 = vmatprep.subr.bf16.mxu0 %v1464
    %2223 = vmatpush1.bf16.msra.mxu0 %v1463
    %2224 = vmatprep.subr.bf16.mxu0 %v1458
    %2225 = vmatpush1.bf16.msra.mxu0 %v1457
    %2226 = vmatprep.subr.bf16.mxu0 %v1452
    %2227 = vmatpush1.bf16.msra.mxu0 %v1451
    %2228 = vmatprep.subr.bf16.mxu0 %v1446
    %2229 = vmatpush1.bf16.msra.mxu0 %v1445
    %2230 = vmatprep.subr.bf16.mxu0 %v1440
    %2231 = vmatpush1.bf16.msra.mxu0 %v1439
    %2232 = vmatprep.subr.bf16.mxu0 %v1530
    %2233 = vmatpush2.bf16.msra.mxu0 %v1529
    %2234 = vmatprep.subr.bf16.mxu0 %v1524
    %2235 = vmatpush2.bf16.msra.mxu0 %v1523
    %2236 = vmatprep.subr.bf16.mxu0 %v1518
    %2237 = vmatpush2.bf16.msra.mxu0 %v1517
    %2238 = vmatprep.subr.bf16.mxu0 %v1512
    %2239 = vmatpush2.bf16.msra.mxu0 %v1511
    %2240 = vmatprep.subr.bf16.mxu0 %v1506
    %2241 = vmatpush2.bf16.msra.mxu0 %v1505
    %2242 = vmatprep.subr.bf16.mxu0 %v1500
    %2243 = vmatpush2.bf16.msra.mxu0 %v1499
    %2244 = vmatprep.subr.bf16.mxu0 %v1494
    %2245 = vmatpush2.bf16.msra.mxu0 %v1493
    %2246 = vmatprep.subr.bf16.mxu0 %v1488
    %2247 = vmatpush2.bf16.msra.mxu0 %v1487
    %2248 = vmatprep.mubr.bf16.mxu0 %v466
    %2249 = vmatmul.mubr.bf16.gmra.mxu0 %v465
    %v2250 = vpop.f32.mrf.mxu0
    %v2251 = vadd.f32 %v2208, %v2250
    %v2252 = vpop.f32.mrf.mxu0
    %v2253 = vadd.f32 %v2210, %v2252
    %v2254 = vpop.f32.mrf.mxu0
    %v2255 = vadd.f32 %v2212, %v2254
    %v2256 = vpop.f32.mrf.mxu0
    %v2257 = vadd.f32 %v2214, %v2256
    %2258 = vdwg.mxu0
    %2259 = vmatprep.subr.bf16.mxu0 %v1578
    %2260 = vmatpush1.bf16.msra.mxu0 %v1577
    %2261 = vmatprep.subr.bf16.mxu0 %v1572
    %2262 = vmatpush1.bf16.msra.mxu0 %v1571
    %2263 = vmatprep.subr.bf16.mxu0 %v1566
    %2264 = vmatpush1.bf16.msra.mxu0 %v1565
    %2265 = vmatprep.subr.bf16.mxu0 %v1560
    %2266 = vmatpush1.bf16.msra.mxu0 %v1559
    %2267 = vmatprep.subr.bf16.mxu0 %v1554
    %2268 = vmatpush1.bf16.msra.mxu0 %v1553
    %2269 = vmatprep.subr.bf16.mxu0 %v1548
    %2270 = vmatpush1.bf16.msra.mxu0 %v1547
    %2271 = vmatprep.subr.bf16.mxu0 %v1542
    %2272 = vmatpush1.bf16.msra.mxu0 %v1541
    %2273 = vmatprep.subr.bf16.mxu0 %v1536
    %2274 = vmatpush1.bf16.msra.mxu0 %v1535
    %2275 = vmatprep.subr.bf16.mxu0 %v1626
    %2276 = vmatpush2.bf16.msra.mxu0 %v1625
    %2277 = vmatprep.subr.bf16.mxu0 %v1620
    %2278 = vmatpush2.bf16.msra.mxu0 %v1619
    %2279 = vmatprep.subr.bf16.mxu0 %v1614
    %2280 = vmatpush2.bf16.msra.mxu0 %v1613
    %2281 = vmatprep.subr.bf16.mxu0 %v1608
    %2282 = vmatpush2.bf16.msra.mxu0 %v1607
    %2283 = vmatprep.subr.bf16.mxu0 %v1602
    %2284 = vmatpush2.bf16.msra.mxu0 %v1601
    %2285 = vmatprep.subr.bf16.mxu0 %v1596
    %2286 = vmatpush2.bf16.msra.mxu0 %v1595
    %2287 = vmatprep.subr.bf16.mxu0 %v1590
    %2288 = vmatpush2.bf16.msra.mxu0 %v1589
    %2289 = vmatprep.subr.bf16.mxu0 %v1584
    %2290 = vmatpush2.bf16.msra.mxu0 %v1583
    %2291 = vmatprep.mubr.bf16.mxu0 %v468
    %2292 = vmatmul.mubr.bf16.gmra.mxu0 %v467
    %v2293 = vpop.f32.mrf.mxu0
    %v2294 = vadd.f32 %v2251, %v2293
    %v2295 = vpop.f32.mrf.mxu0
    %v2296 = vadd.f32 %v2253, %v2295
    %v2297 = vpop.f32.mrf.mxu0
    %v2298 = vadd.f32 %v2255, %v2297
    %v2299 = vpop.f32.mrf.mxu0
    %v2300 = vadd.f32 %v2257, %v2299
    %2301 = vdwg.mxu0
    %v2302 = vmul.f32 %v2036, %v401
    %v2303 = vmul.f32 %v2038, %v402
    %v2304 = vmul.f32 %v2165, %v403
    %v2305 = vmul.f32 %v2167, %v404
    %v2306 = vmul.f32 %v2294, %v405
    %v2307 = vmul.f32 %v2296, %v406
    %v2308 = vmul.f32 %v2040, %v407
    %v2309 = vmul.f32 %v2042, %v408
    %v2310 = vmul.f32 %v2169, %v409
    %v2311 = vmul.f32 %v2171, %v410
    %v2312 = vmul.f32 %v2298, %v411
    %v2313 = vmul.f32 %v2300, %v412
    %v2314 = vld [vmem:[#allocation8] sm:$0x3f]
    %v2316 = vlaneseq
    %v2317 = vshrl.u32 %v2316, 7
    %v2318 = vsub.s32 0, %v2317
    %v2319 = vrot.slane %v2314, %v2318
    %v2320 = vlaneseq
    %v2321 = vshrl.u32 %v2320, 7
    %v2322 = vsub.s32 1, %v2321
    %v2323 = vrot.slane %v2314, %v2322
    %v2324 = vlaneseq
    %v2325 = vshrl.u32 %v2324, 7
    %v2326 = vsub.s32 2, %v2325
    %v2327 = vrot.slane %v2314, %v2326
    %v2328 = vlaneseq
    %v2329 = vshrl.u32 %v2328, 7
    %v2330 = vsub.s32 3, %v2329
    %v2331 = vrot.slane %v2314, %v2330
    %v2332 = vlaneseq
    %v2333 = vshrl.u32 %v2332, 7
    %v2334 = vsub.s32 4, %v2333
    %v2335 = vrot.slane %v2314, %v2334
    %v2336 = vlaneseq
    %v2337 = vshrl.u32 %v2336, 7
    %v2338 = vsub.s32 5, %v2337
    %v2339 = vrot.slane %v2314, %v2338
    %v2346 = vmul.f32 %v389, %v2319
    %v2347 = vmul.f32 %v390, %v2323
    %v2348 = vmul.f32 %v391, %v2327
    %v2349 = vmul.f32 %v392, %v2331
    %v2350 = vmul.f32 %v393, %v2335
    %v2351 = vmul.f32 %v394, %v2339
    %v2352 = vmul.f32 %v395, %v2319
    %v2353 = vmul.f32 %v396, %v2323
    %v2354 = vmul.f32 %v397, %v2327
    %v2355 = vmul.f32 %v398, %v2331
    %v2356 = vmul.f32 %v399, %v2335
    %v2357 = vmul.f32 %v400, %v2339
    %v2358 = vadd.f32 %v2302, %v2346
    %v2359 = vadd.f32 %v2303, %v2347
    %v2360 = vadd.f32 %v2304, %v2348
    %v2361 = vadd.f32 %v2305, %v2349
    %v2362 = vadd.f32 %v2306, %v2350
    %v2363 = vadd.f32 %v2307, %v2351
    %v2364 = vadd.f32 %v2308, %v2352
    %v2365 = vadd.f32 %v2309, %v2353
    %v2366 = vadd.f32 %v2310, %v2354
    %v2367 = vadd.f32 %v2311, %v2355
    %v2368 = vadd.f32 %v2312, %v2356
    %v2369 = vadd.f32 %v2313, %v2357
    %v2370 = vadd.f32 %v2358, %v2359
    %v2371 = vadd.f32 %v2370, %v2360
    %v2372 = vadd.f32 %v2371, %v2361
    %v2373 = vadd.f32 %v2372, %v2362
    %v2374 = vadd.f32 %v2373, %v2363
    %2375 = vadd.xlane.f32.xlu0 %v2374
    %v2376 = vpop.xlane.xlu0 %2375
    %v2377 = vadd.f32 %v2364, %v2365
    %v2378 = vadd.f32 %v2377, %v2366
    %v2379 = vadd.f32 %v2378, %v2367
    %v2380 = vadd.f32 %v2379, %v2368
    %v2381 = vadd.f32 %v2380, %v2369
    %2382 = vadd.xlane.f32.xlu0 %v2381
    %v2383 = vpop.xlane.xlu0 %2382
    %v2384 = vld [vmem:[#allocation2] sm:$0x1]
    %v2386 = vlaneseq
    %v2387 = vshrl.u32 %v2386, 7
    %v2388 = vsub.s32 0, %v2387
    %v2389 = vrot.slane %v2384, %v2388
    %v2391 = vadd.f32 %v2376, %v2389
    %v2392 = vadd.f32 %v2383, %v2389
    %v2393 = vmax.f32 %v2391, 0.0
    %v2394 = vmax.f32 %v2392, 0.0
    %vm2395 = vcmask 7168
    %2396 = vst.msk [vmem:[%s6] sm:$0xff] %vm2395, %v2393
    %2397 = vst.msk [vmem:[%s6 + $0x8] sm:$0xff] %vm2395, %v2394
    // Predicated region
    $region46: #{tpu_custom_call.1} parent=1 // pred_check
      _
    $region47: #{tpu_custom_call.1} parent=1 // pred_check_branch
      %2399 = sbr.rel (0) target = $region49
    $region48: #{tpu_custom_call.1} parent=1 // pred_region
      _
    $region49: #{tpu_custom_call.1} parent=1 // pred_fallthru
      _
    // Predicated region
    $region50: #{tpu_custom_call.1} parent=1 // pred_check
      _
    $region51: #{tpu_custom_call.1} parent=1 // pred_check_branch
      %2401 = sbr.rel (0) target = $region53
    $region52: #{tpu_custom_call.1} parent=1 // pred_region
      _
    $region53: #{tpu_custom_call.1} parent=1 // pred_fallthru
      _
    %2402 = vsyncpa [#allocation4], 1
    %2403 = vsyncpa [#allocation6], 1
    %2404 = vsyncpa [#allocation9], 1

</llo_original>
